<compile_context>
chip_gen: v7x
topology: tpu7x:2x2x1
jax: 0.10.0
libtpu: 0.0.40
codegen_flags: <defaults>
</compile_context>

<pallas_src>
import functools

import jax
import jax.numpy as jnp
from jax import lax
from jax.experimental import pallas as pl
from jax.experimental.pallas import tpu as pltpu

EXPANSION = 4
LANE = 128
VMEM_LIMIT = 48 * 1024 * 1024          # > 16/32 MiB defaults, < v7x 64 MiB phys


# ----------------------------------------------------------------------------
# helpers
# ----------------------------------------------------------------------------
def _round_up(x, m):
    return ((x + m - 1) // m) * m


def _pick_tile(m, cap=1024):
    """Largest row tile <= cap dividing m, preferring >= 4 grid steps
    (>= 2 per TensorCore on v7x), then >= 2, then anything."""
    for min_steps in (4, 2, 1):
        for tm in (1024, 512, 256, 128, 64, 32, 16, 8):
            if tm <= cap and m % tm == 0 and m // tm >= min_steps:
                return tm
    return m


def _pick_strip(ho, wo, n, cap=32):
    """stage2 output-row strip height: divides ho, keeps th*wo sublane-aligned,
    prefers >= 4 total grid steps (>= 2 per v7x core)."""
    for min_steps in (4, 2, 1):
        for th in range(min(ho, cap), 0, -1):
            if ho % th == 0 and n * (ho // th) >= min_steps and (th * wo) % 8 == 0:
                return th
    return ho


def _rep(shape, grid_rank):
    """BlockSpec for a small replicated (weight / scale) operand."""
    zeros = (0,) * len(shape)
    if grid_rank == 1:
        return pl.BlockSpec(shape, lambda i, _z=zeros: _z)
    return pl.BlockSpec(shape, lambda n, i, _z=zeros: _z)


# ----------------------------------------------------------------------------
# Stage 1: relu(bn1(x)) -> conv1 (1x1) -> relu(bn2)
#          [+ fused projection-shortcut matmul when stride == 1]
# ----------------------------------------------------------------------------
def _stage1_kernel(x_ref, s1_ref, b1_ref, w1_ref, s2_ref, b2_ref, h_ref):
    a = jnp.maximum(x_ref[...].astype(jnp.float32) * s1_ref[...] + b1_ref[...], 0.0)
    t = jnp.dot(a.astype(jnp.bfloat16), w1_ref[...],
                preferred_element_type=jnp.float32)
    h_ref[...] = jnp.maximum(t * s2_ref[...] + b2_ref[...], 0.0).astype(h_ref.dtype)


def _stage1_proj_kernel(x_ref, s1_ref, b1_ref, w1_ref, s2_ref, b2_ref, ws_ref,
                        h_ref, sc_ref):
    a = jnp.maximum(x_ref[...].astype(jnp.float32) * s1_ref[...] + b1_ref[...], 0.0)
    ab = a.astype(jnp.bfloat16)
    t = jnp.dot(ab, w1_ref[...], preferred_element_type=jnp.float32)
    h_ref[...] = jnp.maximum(t * s2_ref[...] + b2_ref[...], 0.0).astype(h_ref.dtype)
    sc_ref[...] = jnp.dot(ab, ws_ref[...],
                          preferred_element_type=jnp.float32).astype(sc_ref.dtype)


def stage1(x_flat, s1, b1, w1p, s2p, b2p, wsp=None):
    """x_flat: (M, Cin) bf16.  Returns h (M, Pp) bf16 [, sc (M, Coutp) bf16]."""
    M, Cin = x_flat.shape
    Pp = w1p.shape[1]
    TM = _pick_tile(M)
    grid = (M // TM,)
    in_specs = [
        pl.BlockSpec((TM, Cin), lambda i: (i, 0)),
        _rep((1, Cin), 1), _rep((1, Cin), 1), _rep((Cin, Pp), 1),
        _rep((1, Pp), 1), _rep((1, Pp), 1),
    ]
    args = [x_flat, s1.reshape(1, Cin), b1.reshape(1, Cin), w1p,
            s2p.reshape(1, Pp), b2p.reshape(1, Pp)]
    cp = pltpu.CompilerParams(dimension_semantics=("parallel",),
                              vmem_limit_bytes=VMEM_LIMIT)
    if wsp is None:
        return pl.pallas_call(
            _stage1_kernel,
            out_shape=jax.ShapeDtypeStruct((M, Pp), jnp.bfloat16),
            grid_spec=pltpu.PrefetchScalarGridSpec(
                num_scalar_prefetch=0, grid=grid, in_specs=in_specs,
                out_specs=pl.BlockSpec((TM, Pp), lambda i: (i, 0))),
            compiler_params=cp,
        )(*args)

    Coutp = wsp.shape[1]
    return pl.pallas_call(
        _stage1_proj_kernel,
        out_shape=(jax.ShapeDtypeStruct((M, Pp), jnp.bfloat16),
                   jax.ShapeDtypeStruct((M, Coutp), jnp.bfloat16)),
        grid_spec=pltpu.PrefetchScalarGridSpec(
            num_scalar_prefetch=0, grid=grid,
            in_specs=in_specs + [_rep((Cin, Coutp), 1)],
            out_specs=[pl.BlockSpec((TM, Pp), lambda i: (i, 0)),
                       pl.BlockSpec((TM, Coutp), lambda i: (i, 0))]),
        compiler_params=cp,
    )(*args, wsp)


# ----------------------------------------------------------------------------
# Stage 2: conv2 (3x3, stride) + relu(bn3) + conv3 (1x1) + shortcut add,
# gridded over (batch, output-row strips), 3x3 as ONE K=9*Pp im2col matmul.
# ----------------------------------------------------------------------------
def _im2col_dot(patches, w2_ref):
    lhs = jnp.concatenate(patches, axis=-1)            # (TH, Wo, 9*Pp) bf16
    th, wo, k = lhs.shape
    return jnp.dot(lhs.reshape(th * wo, k), w2_ref[...],
                   preferred_element_type=jnp.float32)


def _stage2_kernel_s1(xm_ref, xh0_ref, xh1_ref, w2_ref, s3_ref, b3_ref, w3_ref,
                      sc_ref, out_ref, *, th, wo):
    # th main rows + 2 halo rows of the zero-padded activation, full padded W.
    xf = jnp.concatenate([xm_ref[0], xh0_ref[0], xh1_ref[0]], axis=0)
    pats = [xf[dh:dh + th, dw:dw + wo, :] for dh in range(3) for dw in range(3)]
    acc = _im2col_dot(pats, w2_ref)                              # (th*wo, Pp) f32
    g = jnp.maximum(acc * s3_ref[...] + b3_ref[...], 0.0).astype(jnp.bfloat16)
    y = jnp.dot(g, w3_ref[...], preferred_element_type=jnp.float32)
    out_ref[0] = (y + sc_ref[0].astype(jnp.float32)).astype(out_ref.dtype)


def _stage2_kernel_sN(xm_ref, xh_ref, w2_ref, s3_ref, b3_ref, w3_ref,
                      xs_ref, s1_ref, b1_ref, ws_ref, out_ref, *, stride, th, wo):
    # Parity-split view: xf[a*stride+b, i, j, :] == hp[stride*i+a, stride*j+b, :]
    xf = jnp.concatenate([xm_ref[...], xh_ref[...]], axis=1)   # (s*s, th+1, Ws, Pp)
    pats = []
    for dh in range(3):
        for dw in range(3):
            idx = (dh % stride) * stride + (dw % stride)
            hoff, woff = dh // stride, dw // stride
            pats.append(xf[idx, hoff:hoff + th, woff:woff + wo, :])
    acc = _im2col_dot(pats, w2_ref)
    g = jnp.maximum(acc * s3_ref[...] + b3_ref[...], 0.0).astype(jnp.bfloat16)
    y = jnp.dot(g, w3_ref[...], preferred_element_type=jnp.float32)
    # fused projection shortcut (1x1, stride) on the strided sample points
    a = jnp.maximum(xs_ref[0].astype(jnp.float32) * s1_ref[...] + b1_ref[...], 0.0)
    sc = jnp.dot(a.astype(jnp.bfloat16), ws_ref[...],
                 preferred_element_type=jnp.float32)
    out_ref[0] = (y + sc).astype(out_ref.dtype)


def stage2_stride1(h, w2p, s3p, b3p, w3p, sc_arr, coutp):
    """h: (N,H,W,Pp) bf16; sc_arr: (N, H*W, coutp) bf16."""
    N, H, W, Pp = h.shape
    hp = jnp.pad(h, ((0, 0), (1, 1), (1, 1), (0, 0)))
    Wp = W + 2
    Ho, Wo = H, W
    TH = _pick_strip(Ho, Wo, N)
    ns = Ho // TH
    kern = functools.partial(_stage2_kernel_s1, th=TH, wo=Wo)
    return pl.pallas_call(
        kern,
        out_shape=jax.ShapeDtypeStruct((N, Ho * Wo, coutp), jnp.float32),
        grid_spec=pltpu.PrefetchScalarGridSpec(
            num_scalar_prefetch=0, grid=(N, ns),
            in_specs=[
                pl.BlockSpec((1, TH, Wp, Pp), lambda n, i: (n, i, 0, 0)),
                pl.BlockSpec((1, 1, Wp, Pp), lambda n, i: (n, (i + 1) * TH, 0, 0)),
                pl.BlockSpec((1, 1, Wp, Pp),
                             lambda n, i: (n, (i + 1) * TH + 1, 0, 0)),
                _rep((9 * Pp, Pp), 2),
                _rep((1, Pp), 2), _rep((1, Pp), 2),
                _rep((Pp, coutp), 2),
                pl.BlockSpec((1, TH * Wo, coutp), lambda n, i: (n, i, 0)),
            ],
            out_specs=pl.BlockSpec((1, TH * Wo, coutp), lambda n, i: (n, i, 0))),
        compiler_params=pltpu.CompilerParams(
            dimension_semantics=("parallel", "parallel"),
            vmem_limit_bytes=VMEM_LIMIT),
    )(hp, hp, hp, w2p, s3p.reshape(1, Pp), b3p.reshape(1, Pp), w3p, sc_arr)


def stage2_strideN(h, w2p, s3p, b3p, w3p, x_sub, s1, b1, wsp, stride, coutp):
    """h: (N,H,W,Pp) bf16; x_sub: (N, Ho*Wo, Cin) bf16 strided sample points."""
    N, H, W, Pp = h.shape
    assert H % stride == 0 and W % stride == 0, "even spatial dims required"
    Ho, Wo = H // stride, W // stride
    Hs, Ws, ss = Ho + 1, Wo + 1, stride * stride
    Cin = x_sub.shape[-1]
    hp = jnp.pad(h, ((0, 0), (1, 1), (1, 1), (0, 0)))
    # Parity split so strided taps become contiguous in-kernel slices:
    #   xin[n*ss + a*stride + b, i, j, c] == hp[n, stride*i + a, stride*j + b, c]
    xin = hp.reshape(N, Hs, stride, Ws, stride, Pp)
    xin = xin.transpose(0, 2, 4, 1, 3, 5).reshape(N * ss, Hs, Ws, Pp)
    TH = _pick_strip(Ho, Wo, N)
    ns = Ho // TH
    kern = functools.partial(_stage2_kernel_sN, stride=stride, th=TH, wo=Wo)
    return pl.pallas_call(
        kern,
        out_shape=jax.ShapeDtypeStruct((N, Ho * Wo, coutp), jnp.float32),
        grid_spec=pltpu.PrefetchScalarGridSpec(
            num_scalar_prefetch=0, grid=(N, ns),
            in_specs=[
                pl.BlockSpec((ss, TH, Ws, Pp), lambda n, i: (n, i, 0, 0)),
                pl.BlockSpec((ss, 1, Ws, Pp), lambda n, i: (n, (i + 1) * TH, 0, 0)),
                _rep((9 * Pp, Pp), 2),
                _rep((1, Pp), 2), _rep((1, Pp), 2),
                _rep((Pp, coutp), 2),
                pl.BlockSpec((1, TH * Wo, Cin), lambda n, i: (n, i, 0)),
                _rep((1, Cin), 2), _rep((1, Cin), 2),
                _rep((Cin, coutp), 2),
            ],
            out_specs=pl.BlockSpec((1, TH * Wo, coutp), lambda n, i: (n, i, 0))),
        compiler_params=pltpu.CompilerParams(
            dimension_semantics=("parallel", "parallel"),
            vmem_limit_bytes=VMEM_LIMIT),
    )(xin, xin, w2p, s3p.reshape(1, Pp), b3p.reshape(1, Pp), w3p,
      x_sub, s1.reshape(1, Cin), b1.reshape(1, Cin), wsp)


# ----------------------------------------------------------------------------
# Parameters (BN folded to inference scale/shift; lane-dense padded bf16 weights)
# ----------------------------------------------------------------------------
def init_params(key, in_planes, planes, stride=1):
    cout = EXPANSION * planes
    pp = _round_up(planes, LANE)
    coutp = _round_up(cout, LANE)
    has_proj = (stride != 1) or (in_planes != cout)

    def nk():
        nonlocal key
        key, sub = jax.random.split(key)
        return sub

    def conv_w(shape, fan_in):
        return jax.random.normal(nk(), shape, jnp.float32) * jnp.sqrt(2.0 / fan_in)

    def bn(c):
        gamma = 1.0 + 0.1 * jax.random.normal(nk(), (c,), jnp.float32)
        beta = 0.1 * jax.random.normal(nk(), (c,), jnp.float32)
        mean = 0.1 * jax.random.normal(nk(), (c,), jnp.float32)
        var = 0.5 + jax.random.uniform(nk(), (c,), jnp.float32)
        scale = gamma * jax.lax.rsqrt(var + 1e-5)
        shift = beta - mean * scale
        return scale, shift

    w1 = conv_w((in_planes, planes), in_planes)          # 1x1  (Cin, P)
    w2 = conv_w((3, 3, planes, planes), 9 * planes)      # 3x3  HWIO
    w3 = conv_w((planes, cout), planes)                  # 1x1  (P, Cout)
    bn1, bn2, bn3 = bn(in_planes), bn(planes), bn(planes)

    dp, dc = pp - planes, coutp - cout
    params = dict(
        stride=stride, in_planes=in_planes, planes=planes, cout=cout,
        pp=pp, coutp=coutp, has_proj=has_proj,
        bn1=bn1, bn2=bn2, bn3=bn3,
        s2p=jnp.pad(bn2[0], (0, dp)), b2p=jnp.pad(bn2[1], (0, dp)),
        s3p=jnp.pad(bn3[0], (0, dp)), b3p=jnp.pad(bn3[1], (0, dp)),
        w1=w1, w2=w2, w3=w3,
        w1p=jnp.pad(w1, ((0, 0), (0, dp))).astype(jnp.bfloat16),
        w2p=jnp.pad(w2, ((0, 0), (0, 0), (0, dp), (0, dp)))
            .reshape(9 * pp, pp).astype(jnp.bfloat16),
        w3p=jnp.pad(w3, ((0, dp), (0, dc))).astype(jnp.bfloat16),
    )
    if has_proj:
        ws = conv_w((in_planes, cout), in_planes)
        params["ws"] = ws
        params["wsp"] = jnp.pad(ws, ((0, 0), (0, dc))).astype(jnp.bfloat16)
    return params


# ----------------------------------------------------------------------------
# Block forward (NCHW in / NCHW out, like the PyTorch module)
# ----------------------------------------------------------------------------
def preact_bottleneck_forward(params, x_nchw):
    stride = params["stride"]
    cout, coutp, pp = params["cout"], params["coutp"], params["pp"]
    s1, b1 = params["bn1"]

    x = jnp.transpose(x_nchw, (0, 2, 3, 1))                  # -> NHWC
    N, H, W, Cin = x.shape
    x_bf = x.astype(jnp.bfloat16)                            # single cast, reused
    x_flat = x_bf.reshape(N * H * W, Cin)

    if params["has_proj"] and stride == 1:
        h_flat, sc_flat = stage1(x_flat, s1, b1, params["w1p"],
                                 params["s2p"], params["b2p"],
                                 wsp=params["wsp"])
        sc_arr = sc_flat.reshape(N, H * W, coutp)
    else:
        h_flat = stage1(x_flat, s1, b1, params["w1p"],
                        params["s2p"], params["b2p"])
        sc_arr = None
        if not params["has_proj"]:
            xs = x_bf                                        # identity: Cin == cout
            if coutp != Cin:
                xs = jnp.pad(xs, ((0, 0), (0, 0), (0, 0), (0, coutp - Cin)))
            sc_arr = xs.reshape(N, H * W, coutp)

    h = h_flat.reshape(N, H, W, pp)
    if stride == 1:
        out = stage2_stride1(h, params["w2p"], params["s3p"], params["b3p"],
                             params["w3p"], sc_arr, coutp)
        Ho, Wo = H, W
    else:
        Ho, Wo = H // stride, W // stride
        x_sub = x_bf[:, ::stride, ::stride, :].reshape(N, Ho * Wo, Cin)
        out = stage2_strideN(h, params["w2p"], params["s3p"], params["b3p"],
                             params["w3p"], x_sub, s1, b1, params["wsp"],
                             stride, coutp)

    out = out.reshape(N, Ho, Wo, coutp)[..., :cout]
    # TODO(synk): chained blocks could stay NHWC and skip this transpose.
    return jnp.transpose(out, (0, 3, 1, 2))                  # -> NCHW


# ----------------------------------------------------------------------------
# Pure-JAX f32 reference (same folded BN) for validation
# ----------------------------------------------------------------------------
def reference_forward(params, x_nchw):
    stride = params["stride"]
    dn = ("NHWC", "HWIO", "NHWC")
    x = jnp.transpose(x_nchw, (0, 2, 3, 1)).astype(jnp.float32)
    s1, b1 = params["bn1"]
    s2, b2 = params["bn2"]
    s3, b3 = params["bn3"]
    a = jnp.maximum(x * s1 + b1, 0.0)
    if params["has_proj"]:
        ws = params["ws"].reshape(1, 1, params["in_planes"], params["cout"])
        sc = lax.conv_general_dilated(a, ws, (stride, stride), "VALID",
                                      dimension_numbers=dn)
    else:
        sc = x
    w1 = params["w1"].reshape(1, 1, params["in_planes"], params["planes"])
    t = lax.conv_general_dilated(a, w1, (1, 1), "VALID", dimension_numbers=dn)
    t = jnp.maximum(t * s2 + b2, 0.0)
    g = lax.conv_general_dilated(t, params["w2"], (stride, stride),
                                 ((1, 1), (1, 1)), dimension_numbers=dn)
    g = jnp.maximum(g * s3 + b3, 0.0)
    w3 = params["w3"].reshape(1, 1, params["planes"], params["cout"])
    y = lax.conv_general_dilated(g, w3, (1, 1), "VALID", dimension_numbers=dn)
    return jnp.transpose(y + sc, (0, 3, 1, 2))


def _run_and_check(params, x, expect_shape):
    fwd = jax.jit(lambda inp: preact_bottleneck_forward(params, inp))
    out = jax.block_until_ready(fwd(x))
    assert out.shape == expect_shape, (out.shape, expect_shape)
    assert bool(jnp.all(jnp.isfinite(out)))
    ref = reference_forward(params, x)
    err = float(jnp.max(jnp.abs(out - ref)) / (1.0 + jnp.max(jnp.abs(ref))))
    assert err < 5e-2, err      # bf16 matmuls / activations vs f32 reference
    return out


if __name__ == "__main__":
    key = jax.random.PRNGKey(0)
    k1, kx1, k2, kx2, k3, kx3 = jax.random.split(key, 6)

    # 1) projection shortcut, stride 1 (in_planes != 4*planes)
    p1 = init_params(k1, in_planes=32, planes=16, stride=1)
    x1 = jax.random.normal(kx1, (2, 32, 16, 16), jnp.float32)
    _run_and_check(p1, x1, (2, 64, 16, 16))

    # 2) projection shortcut, stride 2 (fused into stage2)
    p2 = init_params(k2, in_planes=64, planes=16, stride=2)
    x2 = jax.random.normal(kx2, (2, 64, 16, 16), jnp.float32)
    _run_and_check(p2, x2, (2, 64, 8, 8))

    # 3) identity shortcut (in_planes == 4*planes, stride 1)
    p3 = init_params(k3, in_planes=64, planes=16, stride=1)
    x3 = jax.random.normal(kx3, (2, 64, 16, 16), jnp.float32)
    _run_and_check(p3, x3, (2, 64, 16, 16))

    print("KERNEL_OK")
</pallas_src>

<mosaic_0001>
module attributes {stable_mosaic.version = 11 : i64} {
  func.func @_stage2_kernel_s1(%arg0: i32, %arg1: i32, %arg2: memref<1x8x18x128xbf16, #tpu.memory_space<vmem>>, %arg3: memref<1x1x18x128xbf16, #tpu.memory_space<vmem>>, %arg4: memref<1x1x18x128xbf16, #tpu.memory_space<vmem>>, %arg5: memref<1152x128xbf16, #tpu.memory_space<vmem>>, %arg6: memref<1x128xf32, #tpu.memory_space<vmem>>, %arg7: memref<1x128xf32, #tpu.memory_space<vmem>>, %arg8: memref<128x128xbf16, #tpu.memory_space<vmem>>, %arg9: memref<1x128x128xbf16, #tpu.memory_space<vmem>>, %arg10: memref<1x128x128xf32, #tpu.memory_space<vmem>>) attributes {dimension_semantics = [#tpu.dimension_semantics<parallel>, #tpu.dimension_semantics<parallel>], iteration_bounds = array<i64: 2, 2>, scalar_prefetch = 0 : i64, scratch_operands = 0 : i64, tpu.core_type = #tpu.core_type<tc>, window_params = [{transform_indices = @transform_0, window_bounds = array<i64: 1, 8, 18, 128>}, {transform_indices = @transform_1, window_bounds = array<i64: 1, 1, 18, 128>}, {transform_indices = @transform_2, window_bounds = array<i64: 1, 1, 18, 128>}, {pipeline_mode = #tpu.pipeline_mode<synchronous>, transform_indices = @transform_3, window_bounds = array<i64: 1152, 128>}, {pipeline_mode = #tpu.pipeline_mode<synchronous>, transform_indices = @transform_4, window_bounds = array<i64: 1, 128>}, {pipeline_mode = #tpu.pipeline_mode<synchronous>, transform_indices = @transform_5, window_bounds = array<i64: 1, 128>}, {pipeline_mode = #tpu.pipeline_mode<synchronous>, transform_indices = @transform_6, window_bounds = array<i64: 128, 128>}, {transform_indices = @transform_7, window_bounds = array<i64: 1, 128, 128>}, {transform_indices = @transform_8, window_bounds = array<i64: 1, 128, 128>}]} {
    %c0 = arith.constant 0 : index
    %c0_0 = arith.constant 0 : index
    %c0_1 = arith.constant 0 : index
    %c0_2 = arith.constant 0 : index
    %0 = vector.load %arg2[%c0, %c0_0, %c0_1, %c0_2] : memref<1x8x18x128xbf16, #tpu.memory_space<vmem>>, vector<1x8x18x128xbf16>
    %1 = vector.shape_cast %0 : vector<1x8x18x128xbf16> to vector<8x18x128xbf16>
    %c0_3 = arith.constant 0 : index
    %c0_4 = arith.constant 0 : index
    %c0_5 = arith.constant 0 : index
    %c0_6 = arith.constant 0 : index
    %2 = vector.load %arg3[%c0_3, %c0_4, %c0_5, %c0_6] : memref<1x1x18x128xbf16, #tpu.memory_space<vmem>>, vector<1x1x18x128xbf16>
    %3 = vector.shape_cast %2 : vector<1x1x18x128xbf16> to vector<1x18x128xbf16>
    %c0_7 = arith.constant 0 : index
    %c0_8 = arith.constant 0 : index
    %c0_9 = arith.constant 0 : index
    %c0_10 = arith.constant 0 : index
    %4 = vector.load %arg4[%c0_7, %c0_8, %c0_9, %c0_10] : memref<1x1x18x128xbf16, #tpu.memory_space<vmem>>, vector<1x1x18x128xbf16>
    %5 = vector.shape_cast %4 : vector<1x1x18x128xbf16> to vector<1x18x128xbf16>
    %6 = tpu.concatenate %1, %3, %5 in 0 : vector<8x18x128xbf16>, vector<1x18x128xbf16>, vector<1x18x128xbf16> -> vector<10x18x128xbf16>
    %7 = vector.extract_strided_slice %6 {offsets = [0, 0, 0], sizes = [8, 16, 128], strides = [1, 1, 1]} : vector<10x18x128xbf16> to vector<8x16x128xbf16>
    %8 = vector.extract_strided_slice %6 {offsets = [0, 1, 0], sizes = [8, 16, 128], strides = [1, 1, 1]} : vector<10x18x128xbf16> to vector<8x16x128xbf16>
    %9 = vector.extract_strided_slice %6 {offsets = [0, 2, 0], sizes = [8, 16, 128], strides = [1, 1, 1]} : vector<10x18x128xbf16> to vector<8x16x128xbf16>
    %10 = vector.extract_strided_slice %6 {offsets = [1, 0, 0], sizes = [8, 16, 128], strides = [1, 1, 1]} : vector<10x18x128xbf16> to vector<8x16x128xbf16>
    %11 = vector.extract_strided_slice %6 {offsets = [1, 1, 0], sizes = [8, 16, 128], strides = [1, 1, 1]} : vector<10x18x128xbf16> to vector<8x16x128xbf16>
    %12 = vector.extract_strided_slice %6 {offsets = [1, 2, 0], sizes = [8, 16, 128], strides = [1, 1, 1]} : vector<10x18x128xbf16> to vector<8x16x128xbf16>
    %13 = vector.extract_strided_slice %6 {offsets = [2, 0, 0], sizes = [8, 16, 128], strides = [1, 1, 1]} : vector<10x18x128xbf16> to vector<8x16x128xbf16>
    %14 = vector.extract_strided_slice %6 {offsets = [2, 1, 0], sizes = [8, 16, 128], strides = [1, 1, 1]} : vector<10x18x128xbf16> to vector<8x16x128xbf16>
    %15 = vector.extract_strided_slice %6 {offsets = [2, 2, 0], sizes = [8, 16, 128], strides = [1, 1, 1]} : vector<10x18x128xbf16> to vector<8x16x128xbf16>
    %16 = tpu.concatenate %7, %8, %9, %10, %11, %12, %13, %14, %15 in 2 : vector<8x16x128xbf16>, vector<8x16x128xbf16>, vector<8x16x128xbf16>, vector<8x16x128xbf16>, vector<8x16x128xbf16>, vector<8x16x128xbf16>, vector<8x16x128xbf16>, vector<8x16x128xbf16>, vector<8x16x128xbf16> -> vector<8x16x1152xbf16>
    %17 = vector.shape_cast %16 : vector<8x16x1152xbf16> to vector<128x1152xbf16>
    %c0_11 = arith.constant 0 : index
    %c0_12 = arith.constant 0 : index
    %18 = vector.load %arg5[%c0_11, %c0_12] : memref<1152x128xbf16, #tpu.memory_space<vmem>>, vector<1152x128xbf16>
    %cst = arith.constant dense<0.000000e+00> : vector<128x128xf32>
    %19 = tpu.matmul %17, %18, %cst {dimension_numbers = #tpu.dot_dimension_numbers<[1], [0], [0], [1], [0, 0, 1, 1], [], []>} : vector<128x1152xbf16>, vector<1152x128xbf16>, vector<128x128xf32> -> vector<128x128xf32>
    %c0_13 = arith.constant 0 : index
    %c0_14 = arith.constant 0 : index
    %20 = vector.load %arg6[%c0_13, %c0_14] : memref<1x128xf32, #tpu.memory_space<vmem>>, vector<1x128xf32>
    %21 = vector.broadcast %20 : vector<1x128xf32> to vector<128x128xf32>
    %22 = arith.mulf %19, %21 : vector<128x128xf32>
    %c0_15 = arith.constant 0 : index
    %c0_16 = arith.constant 0 : index
    %23 = vector.load %arg7[%c0_15, %c0_16] : memref<1x128xf32, #tpu.memory_space<vmem>>, vector<1x128xf32>
    %24 = vector.broadcast %23 : vector<1x128xf32> to vector<128x128xf32>
    %25 = arith.addf %22, %24 : vector<128x128xf32>
    %cst_17 = arith.constant 0.000000e+00 : f32
    %26 = vector.broadcast %cst_17 : f32 to vector<128x128xf32>
    %27 = arith.maximumf %25, %26 : vector<128x128xf32>
    %28 = arith.truncf %27 : vector<128x128xf32> to vector<128x128xbf16>
    %c0_18 = arith.constant 0 : index
    %c0_19 = arith.constant 0 : index
    %29 = vector.load %arg8[%c0_18, %c0_19] : memref<128x128xbf16, #tpu.memory_space<vmem>>, vector<128x128xbf16>
    %cst_20 = arith.constant dense<0.000000e+00> : vector<128x128xf32>
    %30 = tpu.matmul %28, %29, %cst_20 {dimension_numbers = #tpu.dot_dimension_numbers<[1], [0], [0], [1], [0, 0, 1, 1], [], []>} : vector<128x128xbf16>, vector<128x128xbf16>, vector<128x128xf32> -> vector<128x128xf32>
    %c0_21 = arith.constant 0 : index
    %c0_22 = arith.constant 0 : index
    %c0_23 = arith.constant 0 : index
    %31 = vector.load %arg9[%c0_21, %c0_22, %c0_23] : memref<1x128x128xbf16, #tpu.memory_space<vmem>>, vector<1x128x128xbf16>
    %32 = vector.shape_cast %31 : vector<1x128x128xbf16> to vector<128x128xbf16>
    %33 = arith.extf %32 : vector<128x128xbf16> to vector<128x128xf32>
    %34 = arith.addf %30, %33 : vector<128x128xf32>
    %c0_24 = arith.constant 0 : index
    %c0_25 = arith.constant 0 : index
    %c0_26 = arith.constant 0 : index
    %35 = vector.load %arg10[%c0_24, %c0_25, %c0_26] : memref<1x128x128xf32, #tpu.memory_space<vmem>>, vector<1x128x128xf32>
    %36 = vector.shape_cast %35 : vector<1x128x128xf32> to vector<128x128xf32>
    %37 = vector.shape_cast %34 : vector<128x128xf32> to vector<1x128x128xf32>
    tpu.vector_store %arg10[%c0_24, %c0_25, %c0_26], %37 {strides = array<i32>} : memref<1x128x128xf32, #tpu.memory_space<vmem>>, vector<1x128x128xf32>,
    return
  }
  func.func @transform_0(%arg0: i32, %arg1: i32) -> (i32, i32, i32, i32) {
    %c0_i32 = arith.constant 0 : i32
    %c0_i32_0 = arith.constant 0 : i32
    %c0_i32_1 = arith.constant 0 : i32
    return %arg0, %arg1, %c0_i32, %c0_i32_0 : i32, i32, i32, i32
  }
  func.func @transform_1(%arg0: i32, %arg1: i32) -> (i32, i32, i32, i32) {
    %c1_i32 = arith.constant 1 : i32
    %0 = arith.addi %arg1, %c1_i32 : i32
    %c8_i32 = arith.constant 8 : i32
    %1 = arith.muli %0, %c8_i32 : i32
    %c0_i32 = arith.constant 0 : i32
    %c0_i32_0 = arith.constant 0 : i32
    %c0_i32_1 = arith.constant 0 : i32
    return %arg0, %1, %c0_i32, %c0_i32_0 : i32, i32, i32, i32
  }
  func.func @transform_2(%arg0: i32, %arg1: i32) -> (i32, i32, i32, i32) {
    %c1_i32 = arith.constant 1 : i32
    %0 = arith.addi %arg1, %c1_i32 : i32
    %c8_i32 = arith.constant 8 : i32
    %1 = arith.muli %0, %c8_i32 : i32
    %c1_i32_0 = arith.constant 1 : i32
    %2 = arith.addi %1, %c1_i32_0 : i32
    %c0_i32 = arith.constant 0 : i32
    %c0_i32_1 = arith.constant 0 : i32
    %c0_i32_2 = arith.constant 0 : i32
    return %arg0, %2, %c0_i32, %c0_i32_1 : i32, i32, i32, i32
  }
  func.func @transform_3(%arg0: i32, %arg1: i32) -> (i32, i32) {
    %c0_i32 = arith.constant 0 : i32
    %c0_i32_0 = arith.constant 0 : i32
    %c0_i32_1 = arith.constant 0 : i32
    return %c0_i32, %c0_i32_0 : i32, i32
  }
  func.func @transform_4(%arg0: i32, %arg1: i32) -> (i32, i32) {
    %c0_i32 = arith.constant 0 : i32
    %c0_i32_0 = arith.constant 0 : i32
    %c0_i32_1 = arith.constant 0 : i32
    return %c0_i32, %c0_i32_0 : i32, i32
  }
  func.func @transform_5(%arg0: i32, %arg1: i32) -> (i32, i32) {
    %c0_i32 = arith.constant 0 : i32
    %c0_i32_0 = arith.constant 0 : i32
    %c0_i32_1 = arith.constant 0 : i32
    return %c0_i32, %c0_i32_0 : i32, i32
  }
  func.func @transform_6(%arg0: i32, %arg1: i32) -> (i32, i32) {
    %c0_i32 = arith.constant 0 : i32
    %c0_i32_0 = arith.constant 0 : i32
    %c0_i32_1 = arith.constant 0 : i32
    return %c0_i32, %c0_i32_0 : i32, i32
  }
  func.func @transform_7(%arg0: i32, %arg1: i32) -> (i32, i32, i32) {
    %c0_i32 = arith.constant 0 : i32
    %c0_i32_0 = arith.constant 0 : i32
    return %arg0, %arg1, %c0_i32 : i32, i32, i32
  }
  func.func @transform_8(%arg0: i32, %arg1: i32) -> (i32, i32, i32) {
    %c0_i32 = arith.constant 0 : i32
    %c0_i32_0 = arith.constant 0 : i32
    return %arg0, %arg1, %c0_i32 : i32, i32, i32
  }
}

module attributes {stable_mosaic.version = 11 : i64} {
  func.func @_stage1_proj_kernel(%arg0: i32, %arg1: memref<128x32xbf16, #tpu.memory_space<vmem>>, %arg2: memref<1x32xf32, #tpu.memory_space<vmem>>, %arg3: memref<1x32xf32, #tpu.memory_space<vmem>>, %arg4: memref<32x128xbf16, #tpu.memory_space<vmem>>, %arg5: memref<1x128xf32, #tpu.memory_space<vmem>>, %arg6: memref<1x128xf32, #tpu.memory_space<vmem>>, %arg7: memref<32x128xbf16, #tpu.memory_space<vmem>>, %arg8: memref<128x128xbf16, #tpu.memory_space<vmem>>, %arg9: memref<128x128xbf16, #tpu.memory_space<vmem>>) attributes {dimension_semantics = [#tpu.dimension_semantics<parallel>], iteration_bounds = array<i64: 4>, scalar_prefetch = 0 : i64, scratch_operands = 0 : i64, tpu.core_type = #tpu.core_type<tc>, window_params = [{transform_indices = @transform_0, window_bounds = array<i64: 128, 32>}, {pipeline_mode = #tpu.pipeline_mode<synchronous>, transform_indices = @transform_1, window_bounds = array<i64: 1, 32>}, {pipeline_mode = #tpu.pipeline_mode<synchronous>, transform_indices = @transform_2, window_bounds = array<i64: 1, 32>}, {pipeline_mode = #tpu.pipeline_mode<synchronous>, transform_indices = @transform_3, window_bounds = array<i64: 32, 128>}, {pipeline_mode = #tpu.pipeline_mode<synchronous>, transform_indices = @transform_4, window_bounds = array<i64: 1, 128>}, {pipeline_mode = #tpu.pipeline_mode<synchronous>, transform_indices = @transform_5, window_bounds = array<i64: 1, 128>}, {pipeline_mode = #tpu.pipeline_mode<synchronous>, transform_indices = @transform_6, window_bounds = array<i64: 32, 128>}, {transform_indices = @transform_7, window_bounds = array<i64: 128, 128>}, {transform_indices = @transform_8, window_bounds = array<i64: 128, 128>}]} {
    %c0 = arith.constant 0 : index
    %c0_0 = arith.constant 0 : index
    %0 = vector.load %arg1[%c0, %c0_0] : memref<128x32xbf16, #tpu.memory_space<vmem>>, vector<128x32xbf16>
    %1 = arith.extf %0 : vector<128x32xbf16> to vector<128x32xf32>
    %c0_1 = arith.constant 0 : index
    %c0_2 = arith.constant 0 : index
    %2 = vector.load %arg2[%c0_1, %c0_2] : memref<1x32xf32, #tpu.memory_space<vmem>>, vector<1x32xf32>
    %3 = vector.broadcast %2 : vector<1x32xf32> to vector<128x32xf32>
    %4 = arith.mulf %1, %3 : vector<128x32xf32>
    %c0_3 = arith.constant 0 : index
    %c0_4 = arith.constant 0 : index
    %5 = vector.load %arg3[%c0_3, %c0_4] : memref<1x32xf32, #tpu.memory_space<vmem>>, vector<1x32xf32>
    %6 = vector.broadcast %5 : vector<1x32xf32> to vector<128x32xf32>
    %7 = arith.addf %4, %6 : vector<128x32xf32>
    %cst = arith.constant 0.000000e+00 : f32
    %8 = vector.broadcast %cst : f32 to vector<128x32xf32>
    %9 = arith.maximumf %7, %8 : vector<128x32xf32>
    %10 = arith.truncf %9 : vector<128x32xf32> to vector<128x32xbf16>
    %c0_5 = arith.constant 0 : index
    %c0_6 = arith.constant 0 : index
    %11 = vector.load %arg4[%c0_5, %c0_6] : memref<32x128xbf16, #tpu.memory_space<vmem>>, vector<32x128xbf16>
    %cst_7 = arith.constant dense<0.000000e+00> : vector<128x128xf32>
    %12 = tpu.matmul %10, %11, %cst_7 {dimension_numbers = #tpu.dot_dimension_numbers<[1], [0], [0], [1], [0, 0, 1, 1], [], []>} : vector<128x32xbf16>, vector<32x128xbf16>, vector<128x128xf32> -> vector<128x128xf32>
    %c0_8 = arith.constant 0 : index
    %c0_9 = arith.constant 0 : index
    %13 = vector.load %arg5[%c0_8, %c0_9] : memref<1x128xf32, #tpu.memory_space<vmem>>, vector<1x128xf32>
    %14 = vector.broadcast %13 : vector<1x128xf32> to vector<128x128xf32>
    %15 = arith.mulf %12, %14 : vector<128x128xf32>
    %c0_10 = arith.constant 0 : index
    %c0_11 = arith.constant 0 : index
    %16 = vector.load %arg6[%c0_10, %c0_11] : memref<1x128xf32, #tpu.memory_space<vmem>>, vector<1x128xf32>
    %17 = vector.broadcast %16 : vector<1x128xf32> to vector<128x128xf32>
    %18 = arith.addf %15, %17 : vector<128x128xf32>
    %cst_12 = arith.constant 0.000000e+00 : f32
    %19 = vector.broadcast %cst_12 : f32 to vector<128x128xf32>
    %20 = arith.maximumf %18, %19 : vector<128x128xf32>
    %21 = arith.truncf %20 : vector<128x128xf32> to vector<128x128xbf16>
    %c0_13 = arith.constant 0 : index
    %c0_14 = arith.constant 0 : index
    %22 = vector.load %arg8[%c0_13, %c0_14] : memref<128x128xbf16, #tpu.memory_space<vmem>>, vector<128x128xbf16>
    tpu.vector_store %arg8[%c0_13, %c0_14], %21 {strides = array<i32>} : memref<128x128xbf16, #tpu.memory_space<vmem>>, vector<128x128xbf16>,
    %c0_15 = arith.constant 0 : index
    %c0_16 = arith.constant 0 : index
    %23 = vector.load %arg7[%c0_15, %c0_16] : memref<32x128xbf16, #tpu.memory_space<vmem>>, vector<32x128xbf16>
    %cst_17 = arith.constant dense<0.000000e+00> : vector<128x128xf32>
    %24 = tpu.matmul %10, %23, %cst_17 {dimension_numbers = #tpu.dot_dimension_numbers<[1], [0], [0], [1], [0, 0, 1, 1], [], []>} : vector<128x32xbf16>, vector<32x128xbf16>, vector<128x128xf32> -> vector<128x128xf32>
    %25 = arith.truncf %24 : vector<128x128xf32> to vector<128x128xbf16>
    %c0_18 = arith.constant 0 : index
    %c0_19 = arith.constant 0 : index
    %26 = vector.load %arg9[%c0_18, %c0_19] : memref<128x128xbf16, #tpu.memory_space<vmem>>, vector<128x128xbf16>
    tpu.vector_store %arg9[%c0_18, %c0_19], %25 {strides = array<i32>} : memref<128x128xbf16, #tpu.memory_space<vmem>>, vector<128x128xbf16>,
    return
  }
  func.func @transform_0(%arg0: i32) -> (i32, i32) {
    %c0_i32 = arith.constant 0 : i32
    %c0_i32_0 = arith.constant 0 : i32
    return %arg0, %c0_i32 : i32, i32
  }
  func.func @transform_1(%arg0: i32) -> (i32, i32) {
    %c0_i32 = arith.constant 0 : i32
    %c0_i32_0 = arith.constant 0 : i32
    %c0_i32_1 = arith.constant 0 : i32
    return %c0_i32, %c0_i32_0 : i32, i32
  }
  func.func @transform_2(%arg0: i32) -> (i32, i32) {
    %c0_i32 = arith.constant 0 : i32
    %c0_i32_0 = arith.constant 0 : i32
    %c0_i32_1 = arith.constant 0 : i32
    return %c0_i32, %c0_i32_0 : i32, i32
  }
  func.func @transform_3(%arg0: i32) -> (i32, i32) {
    %c0_i32 = arith.constant 0 : i32
    %c0_i32_0 = arith.constant 0 : i32
    %c0_i32_1 = arith.constant 0 : i32
    return %c0_i32, %c0_i32_0 : i32, i32
  }
  func.func @transform_4(%arg0: i32) -> (i32, i32) {
    %c0_i32 = arith.constant 0 : i32
    %c0_i32_0 = arith.constant 0 : i32
    %c0_i32_1 = arith.constant 0 : i32
    return %c0_i32, %c0_i32_0 : i32, i32
  }
  func.func @transform_5(%arg0: i32) -> (i32, i32) {
    %c0_i32 = arith.constant 0 : i32
    %c0_i32_0 = arith.constant 0 : i32
    %c0_i32_1 = arith.constant 0 : i32
    return %c0_i32, %c0_i32_0 : i32, i32
  }
  func.func @transform_6(%arg0: i32) -> (i32, i32) {
    %c0_i32 = arith.constant 0 : i32
    %c0_i32_0 = arith.constant 0 : i32
    %c0_i32_1 = arith.constant 0 : i32
    return %c0_i32, %c0_i32_0 : i32, i32
  }
  func.func @transform_7(%arg0: i32) -> (i32, i32) {
    %c0_i32 = arith.constant 0 : i32
    %c0_i32_0 = arith.constant 0 : i32
    return %arg0, %c0_i32 : i32, i32
  }
  func.func @transform_8(%arg0: i32) -> (i32, i32) {
    %c0_i32 = arith.constant 0 : i32
    %c0_i32_0 = arith.constant 0 : i32
    return %arg0, %c0_i32 : i32, i32
  }
}

</mosaic_0001>

<llo_original>
// kernel: _lambda_.2
$region0: #{_lambda_.2}
  #allocation0 [shape = 'u32[]', space=smem, size = 0x4, offset = 0x4, fixed_abs, tag = 'smem constant byte address 0x4 - core index']
  #allocation1 [shape = 'u32[144,128]{1,0:T(1,128)}', space=vmem, size = 0x12000, scoped, tag = 'internal scratch']
  %s0 = inlined_call_operand.vmem [shape: bf16[512,32], index: 0, kind: input, shape index: {}]
  %s1 = inlined_call_operand.vmem [shape: f32[1,32], index: 1, kind: input, shape index: {}]
  %s2 = inlined_call_operand.vmem [shape: f32[1,32], index: 2, kind: input, shape index: {}]
  %s3 = inlined_call_operand.vmem [shape: bf16[32,128], index: 3, kind: input, shape index: {}]
  %s4 = inlined_call_operand.vmem [shape: f32[1,128], index: 4, kind: input, shape index: {}]
  %s5 = inlined_call_operand.vmem [shape: f32[1,128], index: 5, kind: input, shape index: {}]
  %s6 = inlined_call_operand.vmem [shape: bf16[32,128], index: 6, kind: input, shape index: {}]
  %s7 = inlined_call_operand.vmem [shape: bf16[512,128], index: 7, kind: output, shape index: {0}]
  %s8 = inlined_call_operand.vmem [shape: bf16[512,128], index: 8, kind: output, shape index: {1}]
  %9 = xla_tuple %s7, %s8
  %s10 = sld [smem:[#allocation0]]
  $region69: #{_lambda_.2} parent=0
    _
  %s12 = ssub.s32 1, %s10
  %s13 = scalar_select 0, %s12, %s10
  loop: start=0, step=1, limit=6
  $region2: #{_lambda_.2} parent=0 // loop_pre_header
    _
  $region3: #{_lambda_.2} parent=0 // loop_header
    %s15 = sphi 0, %s19
    %p16 = scmp.ge.s32.totalorder %s15, 6
    %s25 = sphi 0, %s27
    %s28 = sphi 0, %s25
    %s29 = sphi 0, %s28
    %s45 = sphi 0, %s29
    %s49 = sphi 0, %s49
    %s51 = sphi 0, %s49
    %s52 = sphi 0, %s51
    %s66 = sphi 0, %s52
    %s70 = sphi 0, %s70
    %s72 = sphi 0, %s70
    %s73 = sphi 0, %s72
    %s87 = sphi 0, %s73
    %s91 = sphi 0, %s91
    %s93 = sphi 0, %s91
    %s94 = sphi 0, %s93
    %s108 = sphi 0, %s94
    %s112 = sphi 0, %s112
    %s114 = sphi 0, %s112
    %s115 = sphi 0, %s114
    %s129 = sphi 0, %s115
    %s133 = sphi 0, %s133
    %s135 = sphi 0, %s133
    %s136 = sphi 0, %s135
    %s150 = sphi 0, %s136
    %s154 = sphi 0, %s154
    %s156 = sphi 0, %s154
    %s157 = sphi 0, %s156
    %s171 = sphi 0, %s157
    %s177 = sphi 0, %s179
    %s180 = sphi 0, %s177
    %s181 = sphi 0, %s180
    %s197 = sphi 0, %s181
    %s203 = sphi 0, %s205
    %s206 = sphi 0, %s203
    %s207 = sphi 0, %s206
    %s223 = sphi 0, %s207
  $region4: #{_lambda_.2} parent=0 // loop_header_branch
    %18 = sbr.rel (%p16) target = $region8
  $region5: #{_lambda_.2} parent=0 // loop_body
    %s20 = ssub.s32 %s15, 1
    %s21 = ssub.s32 %s15, 2
    %s22 = sadd.s32 %s15, 1
    %s23 = ssub.s32 %s15, %s22
    %p24 = scmp.eq.s32.totalorder %s23, 0
    %s26 = sadd.s32 %s25, 1
    %s27 = scalar_select %p24, %s25, %s26
    %p30 = pneg %p24
    %p31 = scmp.eq.s32.totalorder %s15, 3
    %p32 = por %p30, %p31
    %p33 = scmp.ne.s32.totalorder %s25, %s28
    %p34 = scmp.eq.s32.totalorder %s15, 0
    %p35 = por %p33, %p34
    %p36 = scmp.ne.s32.totalorder %s25, %s28
    %p37 = scmp.eq.s32.totalorder %s20, 3
    %p38 = por %p36, %p37
    %p39 = scmp.ne.s32.totalorder %s28, %s29
    %p40 = scmp.eq.s32.totalorder %s20, 0
    %p41 = por %p39, %p40
    %p42 = scmp.ne.s32.totalorder %s28, %s29
    %p43 = scmp.eq.s32.totalorder %s21, 3
    %p44 = por %p42, %p43
    %p46 = scmp.ne.s32.totalorder %s29, %s45
    %p47 = scmp.eq.s32.totalorder %s21, 0
    %p48 = por %p46, %p47
    %s50 = sadd.s32 %s49, 1
    %p53 = scmp.eq.s32.totalorder %s15, 3
    %p54 = scmp.ne.s32.totalorder %s49, %s51
    %p55 = scmp.eq.s32.totalorder %s15, 0
    %p56 = por %p54, %p55
    %p57 = scmp.ne.s32.totalorder %s49, %s51
    %p58 = scmp.eq.s32.totalorder %s20, 3
    %p59 = por %p57, %p58
    %p60 = scmp.ne.s32.totalorder %s51, %s52
    %p61 = scmp.eq.s32.totalorder %s20, 0
    %p62 = por %p60, %p61
    %p63 = scmp.ne.s32.totalorder %s51, %s52
    %p64 = scmp.eq.s32.totalorder %s21, 3
    %p65 = por %p63, %p64
    %p67 = scmp.ne.s32.totalorder %s52, %s66
    %p68 = scmp.eq.s32.totalorder %s21, 0
    %p69 = por %p67, %p68
    %s71 = sadd.s32 %s70, 1
    %p74 = scmp.eq.s32.totalorder %s15, 3
    %p75 = scmp.ne.s32.totalorder %s70, %s72
    %p76 = scmp.eq.s32.totalorder %s15, 0
    %p77 = por %p75, %p76
    %p78 = scmp.ne.s32.totalorder %s70, %s72
    %p79 = scmp.eq.s32.totalorder %s20, 3
    %p80 = por %p78, %p79
    %p81 = scmp.ne.s32.totalorder %s72, %s73
    %p82 = scmp.eq.s32.totalorder %s20, 0
    %p83 = por %p81, %p82
    %p84 = scmp.ne.s32.totalorder %s72, %s73
    %p85 = scmp.eq.s32.totalorder %s21, 3
    %p86 = por %p84, %p85
    %p88 = scmp.ne.s32.totalorder %s73, %s87
    %p89 = scmp.eq.s32.totalorder %s21, 0
    %p90 = por %p88, %p89
    %s92 = sadd.s32 %s91, 1
    %p95 = scmp.eq.s32.totalorder %s15, 3
    %p96 = scmp.ne.s32.totalorder %s91, %s93
    %p97 = scmp.eq.s32.totalorder %s15, 0
    %p98 = por %p96, %p97
    %p99 = scmp.ne.s32.totalorder %s91, %s93
    %p100 = scmp.eq.s32.totalorder %s20, 3
    %p101 = por %p99, %p100
    %p102 = scmp.ne.s32.totalorder %s93, %s94
    %p103 = scmp.eq.s32.totalorder %s20, 0
    %p104 = por %p102, %p103
    %p105 = scmp.ne.s32.totalorder %s93, %s94
    %p106 = scmp.eq.s32.totalorder %s21, 3
    %p107 = por %p105, %p106
    %p109 = scmp.ne.s32.totalorder %s94, %s108
    %p110 = scmp.eq.s32.totalorder %s21, 0
    %p111 = por %p109, %p110
    %s113 = sadd.s32 %s112, 1
    %p116 = scmp.eq.s32.totalorder %s15, 3
    %p117 = scmp.ne.s32.totalorder %s112, %s114
    %p118 = scmp.eq.s32.totalorder %s15, 0
    %p119 = por %p117, %p118
    %p120 = scmp.ne.s32.totalorder %s112, %s114
    %p121 = scmp.eq.s32.totalorder %s20, 3
    %p122 = por %p120, %p121
    %p123 = scmp.ne.s32.totalorder %s114, %s115
    %p124 = scmp.eq.s32.totalorder %s20, 0
    %p125 = por %p123, %p124
    %p126 = scmp.ne.s32.totalorder %s114, %s115
    %p127 = scmp.eq.s32.totalorder %s21, 3
    %p128 = por %p126, %p127
    %p130 = scmp.ne.s32.totalorder %s115, %s129
    %p131 = scmp.eq.s32.totalorder %s21, 0
    %p132 = por %p130, %p131
    %s134 = sadd.s32 %s133, 1
    %p137 = scmp.eq.s32.totalorder %s15, 3
    %p138 = scmp.ne.s32.totalorder %s133, %s135
    %p139 = scmp.eq.s32.totalorder %s15, 0
    %p140 = por %p138, %p139
    %p141 = scmp.ne.s32.totalorder %s133, %s135
    %p142 = scmp.eq.s32.totalorder %s20, 3
    %p143 = por %p141, %p142
    %p144 = scmp.ne.s32.totalorder %s135, %s136
    %p145 = scmp.eq.s32.totalorder %s20, 0
    %p146 = por %p144, %p145
    %p147 = scmp.ne.s32.totalorder %s135, %s136
    %p148 = scmp.eq.s32.totalorder %s21, 3
    %p149 = por %p147, %p148
    %p151 = scmp.ne.s32.totalorder %s136, %s150
    %p152 = scmp.eq.s32.totalorder %s21, 0
    %p153 = por %p151, %p152
    %s155 = sadd.s32 %s154, 1
    %p158 = scmp.eq.s32.totalorder %s15, 3
    %p159 = scmp.ne.s32.totalorder %s154, %s156
    %p160 = scmp.eq.s32.totalorder %s15, 0
    %p161 = por %p159, %p160
    %p162 = scmp.ne.s32.totalorder %s154, %s156
    %p163 = scmp.eq.s32.totalorder %s20, 3
    %p164 = por %p162, %p163
    %p165 = scmp.ne.s32.totalorder %s156, %s157
    %p166 = scmp.eq.s32.totalorder %s20, 0
    %p167 = por %p165, %p166
    %p168 = scmp.ne.s32.totalorder %s156, %s157
    %p169 = scmp.eq.s32.totalorder %s21, 3
    %p170 = por %p168, %p169
    %p172 = scmp.ne.s32.totalorder %s157, %s171
    %p173 = scmp.eq.s32.totalorder %s21, 0
    %p174 = por %p172, %p173
    %s175 = ssub.s32 %s15, %s22
    %p176 = scmp.eq.s32.totalorder %s175, 0
    %s178 = sadd.s32 %s177, 1
    %s179 = scalar_select %p176, %s177, %s178
    %p182 = pneg %p176
    %p183 = scmp.eq.s32.totalorder %s15, 3
    %p184 = por %p182, %p183
    %p185 = scmp.ne.s32.totalorder %s177, %s180
    %p186 = scmp.eq.s32.totalorder %s15, 0
    %p187 = por %p185, %p186
    %p188 = scmp.ne.s32.totalorder %s177, %s180
    %p189 = scmp.eq.s32.totalorder %s20, 3
    %p190 = por %p188, %p189
    %p191 = scmp.ne.s32.totalorder %s180, %s181
    %p192 = scmp.eq.s32.totalorder %s20, 0
    %p193 = por %p191, %p192
    %p194 = scmp.ne.s32.totalorder %s180, %s181
    %p195 = scmp.eq.s32.totalorder %s21, 3
    %p196 = por %p194, %p195
    %p198 = scmp.ne.s32.totalorder %s181, %s197
    %p199 = scmp.eq.s32.totalorder %s21, 0
    %p200 = por %p198, %p199
    %s201 = ssub.s32 %s15, %s22
    %p202 = scmp.eq.s32.totalorder %s201, 0
    %s204 = sadd.s32 %s203, 1
    %s205 = scalar_select %p202, %s203, %s204
    %p208 = pneg %p202
    %p209 = scmp.eq.s32.totalorder %s15, 3
    %p210 = por %p208, %p209
    %p211 = scmp.ne.s32.totalorder %s203, %s206
    %p212 = scmp.eq.s32.totalorder %s15, 0
    %p213 = por %p211, %p212
    %p214 = scmp.ne.s32.totalorder %s203, %s206
    %p215 = scmp.eq.s32.totalorder %s20, 3
    %p216 = por %p214, %p215
    %p217 = scmp.ne.s32.totalorder %s206, %s207
    %p218 = scmp.eq.s32.totalorder %s20, 0
    %p219 = por %p217, %p218
    %p220 = scmp.ne.s32.totalorder %s206, %s207
    %p221 = scmp.eq.s32.totalorder %s21, 3
    %p222 = por %p220, %p221
    %p224 = scmp.ne.s32.totalorder %s207, %s223
    %p225 = scmp.eq.s32.totalorder %s21, 0
    %p226 = por %p224, %p225
    %p227 = scmp.le.s32.totalorder 1, %s15
    %p228 = scmp.lt.s32.totalorder %s15, 5
    %p229 = pnand %p227, %p228
    %p230 = pneg %p229
    // Predicated region
    $region9: #{_lambda_.2} parent=5 // pred_check
      _
    $region10: #{_lambda_.2} parent=5 // pred_check_branch
      %232 = sbr.rel (%p229) target = $region12
    $region11: #{_lambda_.2} parent=5 // pred_region
      %s233 = ssub.s32 %s15, 1
      // Predicated region
      $region13: #{_lambda_.2} parent=11 // pred_check
        %p234 = pneg %p62
      $region14: #{_lambda_.2} parent=11 // pred_check_branch
        %236 = sbr.rel (%p234) target = $region16
      $region15: #{_lambda_.2} parent=11 // pred_region
        _
      $region16: #{_lambda_.2} parent=11 // pred_fallthru
        _
      // Predicated region
      $region17: #{_lambda_.2} parent=11 // pred_check
        %p237 = pneg %p83
      $region18: #{_lambda_.2} parent=11 // pred_check_branch
        %239 = sbr.rel (%p237) target = $region20
      $region19: #{_lambda_.2} parent=11 // pred_region
        _
      $region20: #{_lambda_.2} parent=11 // pred_fallthru
        _
      // Predicated region
      $region21: #{_lambda_.2} parent=11 // pred_check
        %p240 = pneg %p104
      $region22: #{_lambda_.2} parent=11 // pred_check_branch
        %242 = sbr.rel (%p240) target = $region24
      $region23: #{_lambda_.2} parent=11 // pred_region
        _
      $region24: #{_lambda_.2} parent=11 // pred_fallthru
        _
      // Predicated region
      $region25: #{_lambda_.2} parent=11 // pred_check
        %p243 = pneg %p125
      $region26: #{_lambda_.2} parent=11 // pred_check_branch
        %245 = sbr.rel (%p243) target = $region28
      $region27: #{_lambda_.2} parent=11 // pred_region
        _
      $region28: #{_lambda_.2} parent=11 // pred_fallthru
        _
      // Predicated region
      $region29: #{_lambda_.2} parent=11 // pred_check
        %p246 = pneg %p146
      $region30: #{_lambda_.2} parent=11 // pred_check_branch
        %248 = sbr.rel (%p246) target = $region32
      $region31: #{_lambda_.2} parent=11 // pred_region
        _
      $region32: #{_lambda_.2} parent=11 // pred_fallthru
        _
      // Predicated region
      $region33: #{_lambda_.2} parent=11 // pred_check
        %p249 = pneg %p167
      $region34: #{_lambda_.2} parent=11 // pred_check_branch
        %251 = sbr.rel (%p249) target = $region36
      $region35: #{_lambda_.2} parent=11 // pred_region
        _
      $region36: #{_lambda_.2} parent=11 // pred_fallthru
        _
    $region12: #{_lambda_.2} parent=5 // pred_fallthru
      _
    %p252 = scmp.lt.s32.totalorder %s15, 4
    // Predicated region
    $region37: #{_lambda_.2} parent=5 // pred_check
      %p253 = pneg %p252
    $region38: #{_lambda_.2} parent=5 // pred_check_branch
      %255 = sbr.rel (%p253) target = $region40
    $region39: #{_lambda_.2} parent=5 // pred_region
      // Predicated region
      $region41: #{_lambda_.2} parent=39 // pred_check
        %p256 = pneg %p35
      $region42: #{_lambda_.2} parent=39 // pred_check_branch
        %258 = sbr.rel (%p256) target = $region44
      $region43: #{_lambda_.2} parent=39 // pred_region
        %s259 = smul.u32 16, %s15
        %p260 = scmp.lt.s32.totalorder %s259, 63
        %s261 = scalar_select %p260, %s259, 63
        %s262 = smul.addr %s261, 4
        %s263 = scalar_lea.vmem %s0, %s262
        %s264 = smul.u32 16, %s15
      $region44: #{_lambda_.2} parent=39 // pred_fallthru
        _
    $region40: #{_lambda_.2} parent=5 // pred_fallthru
      _
    %p265 = scmp.le.s32.totalorder 1, %s15
    %p266 = scmp.lt.s32.totalorder %s15, 5
    %p267 = pnand %p265, %p266
    %p268 = pneg %p267
    // Predicated region
    $region45: #{_lambda_.2} parent=5 // pred_check
      _
    $region46: #{_lambda_.2} parent=5 // pred_check_branch
      %270 = sbr.rel (%p267) target = $region48
    $region47: #{_lambda_.2} parent=5 // pred_region
      %s271 = ssub.s32 %s15, 1
      %s272 = smul.u32 16, %s20
      %p273 = scmp.lt.s32.totalorder %s272, 63
      %s274 = scalar_select %p273, %s272, 63
      %s275 = smul.addr %s274, 4
      %s276 = scalar_lea.vmem %s0, %s275
      %p277 = pneg %p41
      %p278 = pneg %p38
      %p279 = pneg %p62
      %p280 = pneg %p59
      %p281 = pneg %p83
      %p282 = pneg %p80
      %p283 = pneg %p104
      %p284 = pneg %p101
      %p285 = pneg %p125
      %p286 = pneg %p122
      %p287 = pneg %p146
      %p288 = pneg %p143
      %p289 = pneg %p167
      %p290 = pneg %p164
      %p291 = pneg %p193
      %p292 = pneg %p190
      %s293 = smul.u32 16, %s20
      %p294 = scmp.lt.s32.totalorder %s293, 63
      %s295 = scalar_select %p294, %s293, 63
      %s296 = smul.addr %s295, 4
      %s297 = scalar_lea.vmem %s7, %s296
      %p298 = pneg %p219
      %p299 = pneg %p216
      %s300 = smul.u32 16, %s20
      %p301 = scmp.lt.s32.totalorder %s300, 63
      %s302 = scalar_select %p301, %s300, 63
      %s303 = smul.addr %s302, 4
      %s304 = scalar_lea.vmem %s8, %s303
      %s305 = smul.u32 16, %s20
      %p306 = scmp.lt.s32.totalorder %s305, 63
      %s307 = scalar_select %p306, %s305, 63
      %s308 = smul.addr %s307, 4
      %s309 = scalar_lea.vmem %s0, %s308
      %s310 = smul.u32 16, %s20
      %s311 = smul.u32 16, %s20
      %p312 = scmp.lt.s32.totalorder %s311, 63
      %s313 = scalar_select %p312, %s311, 63
      %s314 = smul.addr %s313, 4
      %s315 = scalar_lea.vmem %s7, %s314
      %s316 = smul.u32 16, %s20
      %s317 = smul.u32 16, %s20
      %p318 = scmp.lt.s32.totalorder %s317, 63
      %s319 = scalar_select %p318, %s317, 63
      %s320 = smul.addr %s319, 4
      %s321 = scalar_lea.vmem %s8, %s320
      %s322 = smul.u32 16, %s20
      %v324 = vld [vmem:[%s309] sm:$0xf]
      %v325 = vld [vmem:[%s309 + $0x4] sm:$0xf]
      %v326 = vld [vmem:[%s309 + $0x8] sm:$0xf]
      %v327 = vld [vmem:[%s309 + $0xc] sm:$0xf]
      %v328 = vld [vmem:[%s309 + $0x10] sm:$0xf]
      %v329 = vld [vmem:[%s309 + $0x14] sm:$0xf]
      %v330 = vld [vmem:[%s309 + $0x18] sm:$0xf]
      %v331 = vld [vmem:[%s309 + $0x1c] sm:$0xf]
      %v332 = vld [vmem:[%s309 + $0x20] sm:$0xf]
      %v333 = vld [vmem:[%s309 + $0x24] sm:$0xf]
      %v334 = vld [vmem:[%s309 + $0x28] sm:$0xf]
      %v335 = vld [vmem:[%s309 + $0x2c] sm:$0xf]
      %v336 = vld [vmem:[%s309 + $0x30] sm:$0xf]
      %v337 = vld [vmem:[%s309 + $0x34] sm:$0xf]
      %v338 = vld [vmem:[%s309 + $0x38] sm:$0xf]
      %v339 = vld [vmem:[%s309 + $0x3c] sm:$0xf]
      %v340 = vunpack.c.l.bf16 %v324
      %v341 = vunpack.c.l.bf16 %v325
      %v342 = vunpack.c.l.bf16 %v326
      %v343 = vunpack.c.l.bf16 %v327
      %v344 = vunpack.c.l.bf16 %v328
      %v345 = vunpack.c.l.bf16 %v329
      %v346 = vunpack.c.l.bf16 %v330
      %v347 = vunpack.c.l.bf16 %v331
      %v348 = vunpack.c.l.bf16 %v332
      %v349 = vunpack.c.l.bf16 %v333
      %v350 = vunpack.c.l.bf16 %v334
      %v351 = vunpack.c.l.bf16 %v335
      %v352 = vunpack.c.l.bf16 %v336
      %v353 = vunpack.c.l.bf16 %v337
      %v354 = vunpack.c.l.bf16 %v338
      %v355 = vunpack.c.l.bf16 %v339
      %v356 = vld [vmem:[%s1] sm:$0x1]
      %v358 = vlaneseq
      %v359 = vshrl.u32 %v358, 7
      %v360 = vsub.s32 0, %v359
      %v361 = vrot.slane %v356, %v360
      %v363 = vmul.f32 %v340, %v361
      %v364 = vmul.f32 %v341, %v361
      %v365 = vmul.f32 %v342, %v361
      %v366 = vmul.f32 %v343, %v361
      %v367 = vmul.f32 %v344, %v361
      %v368 = vmul.f32 %v345, %v361
      %v369 = vmul.f32 %v346, %v361
      %v370 = vmul.f32 %v347, %v361
      %v371 = vmul.f32 %v348, %v361
      %v372 = vmul.f32 %v349, %v361
      %v373 = vmul.f32 %v350, %v361
      %v374 = vmul.f32 %v351, %v361
      %v375 = vmul.f32 %v352, %v361
      %v376 = vmul.f32 %v353, %v361
      %v377 = vmul.f32 %v354, %v361
      %v378 = vmul.f32 %v355, %v361
      %v379 = vld [vmem:[%s2] sm:$0x1]
      %v381 = vlaneseq
      %v382 = vshrl.u32 %v381, 7
      %v383 = vsub.s32 0, %v382
      %v384 = vrot.slane %v379, %v383
      %v386 = vadd.f32 %v363, %v384
      %v387 = vadd.f32 %v364, %v384
      %v388 = vadd.f32 %v365, %v384
      %v389 = vadd.f32 %v366, %v384
      %v390 = vadd.f32 %v367, %v384
      %v391 = vadd.f32 %v368, %v384
      %v392 = vadd.f32 %v369, %v384
      %v393 = vadd.f32 %v370, %v384
      %v394 = vadd.f32 %v371, %v384
      %v395 = vadd.f32 %v372, %v384
      %v396 = vadd.f32 %v373, %v384
      %v397 = vadd.f32 %v374, %v384
      %v398 = vadd.f32 %v375, %v384
      %v399 = vadd.f32 %v376, %v384
      %v400 = vadd.f32 %v377, %v384
      %v401 = vadd.f32 %v378, %v384
      %v402 = vmax.f32 %v386, 0.0
      %v403 = vmax.f32 %v387, 0.0
      %v404 = vmax.f32 %v388, 0.0
      %v405 = vmax.f32 %v389, 0.0
      %v406 = vmax.f32 %v390, 0.0
      %v407 = vmax.f32 %v391, 0.0
      %v408 = vmax.f32 %v392, 0.0
      %v409 = vmax.f32 %v393, 0.0
      %v410 = vmax.f32 %v394, 0.0
      %v411 = vmax.f32 %v395, 0.0
      %v412 = vmax.f32 %v396, 0.0
      %v413 = vmax.f32 %v397, 0.0
      %v414 = vmax.f32 %v398, 0.0
      %v415 = vmax.f32 %v399, 0.0
      %v416 = vmax.f32 %v400, 0.0
      %v417 = vmax.f32 %v401, 0.0
      %v418 = vpack.c.bf16 %v403, %v402
      %v419 = vpack.c.bf16 %v405, %v404
      %v420 = vpack.c.bf16 %v407, %v406
      %v421 = vpack.c.bf16 %v409, %v408
      %v422 = vpack.c.bf16 %v411, %v410
      %v423 = vpack.c.bf16 %v413, %v412
      %v424 = vpack.c.bf16 %v415, %v414
      %v425 = vpack.c.bf16 %v417, %v416
      %v426 = vld [vmem:[%s3] sm:$0xf]
      %v427 = vld [vmem:[%s3 + $0x4] sm:$0xf]
      %v428 = vld [vmem:[%s3 + $0x8] sm:$0xf]
      %v429 = vld [vmem:[%s3 + $0xc] sm:$0xf]
      %v434 = vunpack.c.l.b16 %v426
      %v435 = vunpack.c.l.b16 %v427
      %v436 = vunpack.c.l.b16 %v428
      %v437 = vunpack.c.l.b16 %v429
      %v438 = vpack.c.b16 %v435, %v434
      %v439 = vpack.c.b16 %v437, %v436
      %vm442 = vcmask 261120
      %v444 = vsel %vm442, %v418, 0
      %v447 = vsel %vm442, %v419, 0
      %v450 = vsel %vm442, %v420, 0
      %v453 = vsel %vm442, %v421, 0
      %v456 = vsel %vm442, %v422, 0
      %v459 = vsel %vm442, %v423, 0
      %v462 = vsel %vm442, %v424, 0
      %v465 = vsel %vm442, %v425, 0
      %467 = vmatprep.subr.bf16.mxu0 0
      %468 = vmatpush1.bf16.msra.mxu0 %v438
      %469 = vmatprep.subr.bf16.mxu0 0
      %470 = vmatpush1.bf16.msra.mxu0 %v439
      %471 = vmatprep.subr.bf16.mxu0 0
      %472 = vmatpush1.bf16.msra.mxu0 0
      %473 = vmatprep.subr.bf16.mxu0 0
      %474 = vmatpush1.bf16.msra.mxu0 0
      %475 = vmatprep.subr.bf16.mxu0 0
      %476 = vmatpush1.bf16.msra.mxu0 0
      %477 = vmatprep.subr.bf16.mxu0 0
      %478 = vmatpush1.bf16.msra.mxu0 0
      %479 = vmatprep.subr.bf16.mxu0 0
      %480 = vmatpush1.bf16.msra.mxu0 0
      %481 = vmatprep.subr.bf16.mxu0 0
      %482 = vmatpush1.bf16.msra.mxu0 0
      %483 = vmatprep.subr.bf16.mxu0 0
      %484 = vmatpush1.bf16.msra.mxu0 0
      %485 = vmatprep.subr.bf16.mxu0 0
      %486 = vmatpush1.bf16.msra.mxu0 0
      %487 = vmatprep.subr.bf16.mxu0 0
      %488 = vmatpush1.bf16.msra.mxu0 0
      %489 = vmatprep.subr.bf16.mxu0 0
      %490 = vmatpush1.bf16.msra.mxu0 0
      %491 = vmatprep.subr.bf16.mxu0 0
      %492 = vmatpush1.bf16.msra.mxu0 0
      %493 = vmatprep.subr.bf16.mxu0 0
      %494 = vmatpush1.bf16.msra.mxu0 0
      %495 = vmatprep.subr.bf16.mxu0 0
      %496 = vmatpush1.bf16.msra.mxu0 0
      %497 = vmatprep.subr.bf16.mxu0 0
      %498 = vmatpush1.bf16.msra.mxu0 0
      %499 = vmatprep.mubr.bf16.mxu0 0
      %500 = vmatmul.mubr.bf16.gmra.mrb[0].mxu0 %v444
      %v501 = vpop.f32.mrb[0].mxu0
      %v502 = vadd.f32 0.0, %v501
      %v503 = vpop.f32.mrb[0].mxu0
      %v504 = vpop.f32.mrb[0].mxu0
      %v505 = vadd.f32 0.0, %v504
      %v506 = vpop.f32.mrb[0].mxu0
      %507 = vmatprep.mubr.bf16.mxu0 0
      %508 = vmatmul.mubr.bf16.gmra.mrb[0].mxu0 %v447
      %v509 = vpop.f32.mrb[0].mxu0
      %v510 = vadd.f32 0.0, %v509
      %v511 = vpop.f32.mrb[0].mxu0
      %v512 = vpop.f32.mrb[0].mxu0
      %v513 = vadd.f32 0.0, %v512
      %v514 = vpop.f32.mrb[0].mxu0
      %515 = vmatprep.mubr.bf16.mxu0 0
      %516 = vmatmul.mubr.bf16.gmra.mrb[0].mxu0 %v450
      %v517 = vpop.f32.mrb[0].mxu0
      %v518 = vadd.f32 0.0, %v517
      %v519 = vpop.f32.mrb[0].mxu0
      %v520 = vpop.f32.mrb[0].mxu0
      %v521 = vadd.f32 0.0, %v520
      %v522 = vpop.f32.mrb[0].mxu0
      %523 = vmatprep.mubr.bf16.mxu0 0
      %524 = vmatmul.mubr.bf16.gmra.mrb[0].mxu0 %v453
      %v525 = vpop.f32.mrb[0].mxu0
      %v526 = vadd.f32 0.0, %v525
      %v527 = vpop.f32.mrb[0].mxu0
      %v528 = vpop.f32.mrb[0].mxu0
      %v529 = vadd.f32 0.0, %v528
      %v530 = vpop.f32.mrb[0].mxu0
      %531 = vmatprep.mubr.bf16.mxu0 0
      %532 = vmatmul.mubr.bf16.gmra.mrb[0].mxu0 %v456
      %v533 = vpop.f32.mrb[0].mxu0
      %v534 = vadd.f32 0.0, %v533
      %v535 = vpop.f32.mrb[0].mxu0
      %v536 = vpop.f32.mrb[0].mxu0
      %v537 = vadd.f32 0.0, %v536
      %v538 = vpop.f32.mrb[0].mxu0
      %539 = vmatprep.mubr.bf16.mxu0 0
      %540 = vmatmul.mubr.bf16.gmra.mrb[0].mxu0 %v459
      %v541 = vpop.f32.mrb[0].mxu0
      %v542 = vadd.f32 0.0, %v541
      %v543 = vpop.f32.mrb[0].mxu0
      %v544 = vpop.f32.mrb[0].mxu0
      %v545 = vadd.f32 0.0, %v544
      %v546 = vpop.f32.mrb[0].mxu0
      %547 = vmatprep.mubr.bf16.mxu0 0
      %548 = vmatmul.mubr.bf16.gmra.mrb[0].mxu0 %v462
      %v549 = vpop.f32.mrb[0].mxu0
      %v550 = vadd.f32 0.0, %v549
      %v551 = vpop.f32.mrb[0].mxu0
      %v552 = vpop.f32.mrb[0].mxu0
      %v553 = vadd.f32 0.0, %v552
      %v554 = vpop.f32.mrb[0].mxu0
      %555 = vmatprep.mubr.bf16.mxu0 0
      %556 = vmatmul.mubr.bf16.gmra.mrb[0].mxu0 %v465
      %v557 = vpop.f32.mrb[0].mxu0
      %v558 = vadd.f32 0.0, %v557
      %v559 = vpop.f32.mrb[0].mxu0
      %v560 = vpop.f32.mrb[0].mxu0
      %v561 = vadd.f32 0.0, %v560
      %v562 = vpop.f32.mrb[0].mxu0
      %563 = vdwg.mxu0
      %v564 = vld [vmem:[%s4] sm:$0x1]
      %v566 = vlaneseq
      %v567 = vshrl.u32 %v566, 7
      %v568 = vsub.s32 0, %v567
      %v569 = vrot.slane %v564, %v568
      %v571 = vmul.f32 %v502, %v569
      %v572 = vmul.f32 %v505, %v569
      %v573 = vmul.f32 %v510, %v569
      %v574 = vmul.f32 %v513, %v569
      %v575 = vmul.f32 %v518, %v569
      %v576 = vmul.f32 %v521, %v569
      %v577 = vmul.f32 %v526, %v569
      %v578 = vmul.f32 %v529, %v569
      %v579 = vmul.f32 %v534, %v569
      %v580 = vmul.f32 %v537, %v569
      %v581 = vmul.f32 %v542, %v569
      %v582 = vmul.f32 %v545, %v569
      %v583 = vmul.f32 %v550, %v569
      %v584 = vmul.f32 %v553, %v569
      %v585 = vmul.f32 %v558, %v569
      %v586 = vmul.f32 %v561, %v569
      %v587 = vld [vmem:[%s5] sm:$0x1]
      %v589 = vlaneseq
      %v590 = vshrl.u32 %v589, 7
      %v591 = vsub.s32 0, %v590
      %v592 = vrot.slane %v587, %v591
      %v594 = vadd.f32 %v571, %v592
      %v595 = vadd.f32 %v572, %v592
      %v596 = vadd.f32 %v573, %v592
      %v597 = vadd.f32 %v574, %v592
      %v598 = vadd.f32 %v575, %v592
      %v599 = vadd.f32 %v576, %v592
      %v600 = vadd.f32 %v577, %v592
      %v601 = vadd.f32 %v578, %v592
      %v602 = vadd.f32 %v579, %v592
      %v603 = vadd.f32 %v580, %v592
      %v604 = vadd.f32 %v581, %v592
      %v605 = vadd.f32 %v582, %v592
      %v606 = vadd.f32 %v583, %v592
      %v607 = vadd.f32 %v584, %v592
      %v608 = vadd.f32 %v585, %v592
      %v609 = vadd.f32 %v586, %v592
      %v610 = vmax.f32 %v594, 0.0
      %v611 = vmax.f32 %v595, 0.0
      %v612 = vmax.f32 %v596, 0.0
      %v613 = vmax.f32 %v597, 0.0
      %v614 = vmax.f32 %v598, 0.0
      %v615 = vmax.f32 %v599, 0.0
      %v616 = vmax.f32 %v600, 0.0
      %v617 = vmax.f32 %v601, 0.0
      %v618 = vmax.f32 %v602, 0.0
      %v619 = vmax.f32 %v603, 0.0
      %v620 = vmax.f32 %v604, 0.0
      %v621 = vmax.f32 %v605, 0.0
      %v622 = vmax.f32 %v606, 0.0
      %v623 = vmax.f32 %v607, 0.0
      %v624 = vmax.f32 %v608, 0.0
      %v625 = vmax.f32 %v609, 0.0
      %v626 = vpack.c.bf16 %v611, %v610
      %v627 = vpack.c.bf16 %v613, %v612
      %v628 = vpack.c.bf16 %v615, %v614
      %v629 = vpack.c.bf16 %v617, %v616
      %v630 = vpack.c.bf16 %v619, %v618
      %v631 = vpack.c.bf16 %v621, %v620
      %v632 = vpack.c.bf16 %v623, %v622
      %v633 = vpack.c.bf16 %v625, %v624
      %v642 = vunpack.c.l.b16 %v626
      %v643 = vunpack.c.h.b16 %v626
      %v644 = vunpack.c.l.b16 %v627
      %v645 = vunpack.c.h.b16 %v627
      %v646 = vunpack.c.l.b16 %v628
      %v647 = vunpack.c.h.b16 %v628
      %v648 = vunpack.c.l.b16 %v629
      %v649 = vunpack.c.h.b16 %v629
      %v650 = vunpack.c.l.b16 %v630
      %v651 = vunpack.c.h.b16 %v630
      %v652 = vunpack.c.l.b16 %v631
      %v653 = vunpack.c.h.b16 %v631
      %v654 = vunpack.c.l.b16 %v632
      %v655 = vunpack.c.h.b16 %v632
      %v656 = vunpack.c.l.b16 %v633
      %v657 = vunpack.c.h.b16 %v633
      %v658 = vpack.c.b16 %v642, %v642
      %v659 = vpack.c.b16 %v643, %v643
      %v660 = vpack.c.b16 %v644, %v644
      %v661 = vpack.c.b16 %v645, %v645
      %v662 = vpack.c.b16 %v646, %v646
      %v663 = vpack.c.b16 %v647, %v647
      %v664 = vpack.c.b16 %v648, %v648
      %v665 = vpack.c.b16 %v649, %v649
      %v666 = vpack.c.b16 %v650, %v650
      %v667 = vpack.c.b16 %v651, %v651
      %v668 = vpack.c.b16 %v652, %v652
      %v669 = vpack.c.b16 %v653, %v653
      %v670 = vpack.c.b16 %v654, %v654
      %v671 = vpack.c.b16 %v655, %v655
      %v672 = vpack.c.b16 %v656, %v656
      %v673 = vpack.c.b16 %v657, %v657
      %690 = vst [vmem:[%s315] sm:$0xf] %v658
      %691 = vst [vmem:[%s315 + $0x4] sm:$0xf] %v659
      %692 = vst [vmem:[%s315 + $0x8] sm:$0xf] %v660
      %693 = vst [vmem:[%s315 + $0xc] sm:$0xf] %v661
      %694 = vst [vmem:[%s315 + $0x10] sm:$0xf] %v662
      %695 = vst [vmem:[%s315 + $0x14] sm:$0xf] %v663
      %696 = vst [vmem:[%s315 + $0x18] sm:$0xf] %v664
      %697 = vst [vmem:[%s315 + $0x1c] sm:$0xf] %v665
      %698 = vst [vmem:[%s315 + $0x20] sm:$0xf] %v666
      %699 = vst [vmem:[%s315 + $0x24] sm:$0xf] %v667
      %700 = vst [vmem:[%s315 + $0x28] sm:$0xf] %v668
      %701 = vst [vmem:[%s315 + $0x2c] sm:$0xf] %v669
      %702 = vst [vmem:[%s315 + $0x30] sm:$0xf] %v670
      %703 = vst [vmem:[%s315 + $0x34] sm:$0xf] %v671
      %704 = vst [vmem:[%s315 + $0x38] sm:$0xf] %v672
      %705 = vst [vmem:[%s315 + $0x3c] sm:$0xf] %v673
      %v706 = vld [vmem:[%s6] sm:$0xf]
      %v707 = vld [vmem:[%s6 + $0x4] sm:$0xf]
      %v708 = vld [vmem:[%s6 + $0x8] sm:$0xf]
      %v709 = vld [vmem:[%s6 + $0xc] sm:$0xf]
      %v714 = vunpack.c.l.b16 %v706
      %v715 = vunpack.c.l.b16 %v707
      %v716 = vunpack.c.l.b16 %v708
      %v717 = vunpack.c.l.b16 %v709
      %v718 = vpack.c.b16 %v715, %v714
      %v719 = vpack.c.b16 %v717, %v716
      %722 = vmatprep.subr.bf16.mxu0 0
      %723 = vmatpush1.bf16.msra.mxu0 %v718
      %724 = vmatprep.subr.bf16.mxu0 0
      %725 = vmatpush1.bf16.msra.mxu0 %v719
      %726 = vmatprep.subr.bf16.mxu0 0
      %727 = vmatpush1.bf16.msra.mxu0 0
      %728 = vmatprep.subr.bf16.mxu0 0
      %729 = vmatpush1.bf16.msra.mxu0 0
      %730 = vmatprep.subr.bf16.mxu0 0
      %731 = vmatpush1.bf16.msra.mxu0 0
      %732 = vmatprep.subr.bf16.mxu0 0
      %733 = vmatpush1.bf16.msra.mxu0 0
      %734 = vmatprep.subr.bf16.mxu0 0
      %735 = vmatpush1.bf16.msra.mxu0 0
      %736 = vmatprep.subr.bf16.mxu0 0
      %737 = vmatpush1.bf16.msra.mxu0 0
      %738 = vmatprep.subr.bf16.mxu0 0
      %739 = vmatpush1.bf16.msra.mxu0 0
      %740 = vmatprep.subr.bf16.mxu0 0
      %741 = vmatpush1.bf16.msra.mxu0 0
      %742 = vmatprep.subr.bf16.mxu0 0
      %743 = vmatpush1.bf16.msra.mxu0 0
      %744 = vmatprep.subr.bf16.mxu0 0
      %745 = vmatpush1.bf16.msra.mxu0 0
      %746 = vmatprep.subr.bf16.mxu0 0
      %747 = vmatpush1.bf16.msra.mxu0 0
      %748 = vmatprep.subr.bf16.mxu0 0
      %749 = vmatpush1.bf16.msra.mxu0 0
      %750 = vmatprep.subr.bf16.mxu0 0
      %751 = vmatpush1.bf16.msra.mxu0 0
      %752 = vmatprep.subr.bf16.mxu0 0
      %753 = vmatpush1.bf16.msra.mxu0 0
      %754 = vmatprep.mubr.bf16.mxu0 0
      %755 = vmatmul.mubr.bf16.gmra.mrb[0].mxu0 %v444
      %v756 = vpop.f32.mrb[0].mxu0
      %v757 = vadd.f32 0.0, %v756
      %v758 = vpop.f32.mrb[0].mxu0
      %v759 = vpop.f32.mrb[0].mxu0
      %v760 = vadd.f32 0.0, %v759
      %v761 = vpop.f32.mrb[0].mxu0
      %762 = vmatprep.mubr.bf16.mxu0 0
      %763 = vmatmul.mubr.bf16.gmra.mrb[0].mxu0 %v447
      %v764 = vpop.f32.mrb[0].mxu0
      %v765 = vadd.f32 0.0, %v764
      %v766 = vpop.f32.mrb[0].mxu0
      %v767 = vpop.f32.mrb[0].mxu0
      %v768 = vadd.f32 0.0, %v767
      %v769 = vpop.f32.mrb[0].mxu0
      %770 = vmatprep.mubr.bf16.mxu0 0
      %771 = vmatmul.mubr.bf16.gmra.mrb[0].mxu0 %v450
      %v772 = vpop.f32.mrb[0].mxu0
      %v773 = vadd.f32 0.0, %v772
      %v774 = vpop.f32.mrb[0].mxu0
      %v775 = vpop.f32.mrb[0].mxu0
      %v776 = vadd.f32 0.0, %v775
      %v777 = vpop.f32.mrb[0].mxu0
      %778 = vmatprep.mubr.bf16.mxu0 0
      %779 = vmatmul.mubr.bf16.gmra.mrb[0].mxu0 %v453
      %v780 = vpop.f32.mrb[0].mxu0
      %v781 = vadd.f32 0.0, %v780
      %v782 = vpop.f32.mrb[0].mxu0
      %v783 = vpop.f32.mrb[0].mxu0
      %v784 = vadd.f32 0.0, %v783
      %v785 = vpop.f32.mrb[0].mxu0
      %786 = vmatprep.mubr.bf16.mxu0 0
      %787 = vmatmul.mubr.bf16.gmra.mrb[0].mxu0 %v456
      %v788 = vpop.f32.mrb[0].mxu0
      %v789 = vadd.f32 0.0, %v788
      %v790 = vpop.f32.mrb[0].mxu0
      %v791 = vpop.f32.mrb[0].mxu0
      %v792 = vadd.f32 0.0, %v791
      %v793 = vpop.f32.mrb[0].mxu0
      %794 = vmatprep.mubr.bf16.mxu0 0
      %795 = vmatmul.mubr.bf16.gmra.mrb[0].mxu0 %v459
      %v796 = vpop.f32.mrb[0].mxu0
      %v797 = vadd.f32 0.0, %v796
      %v798 = vpop.f32.mrb[0].mxu0
      %v799 = vpop.f32.mrb[0].mxu0
      %v800 = vadd.f32 0.0, %v799
      %v801 = vpop.f32.mrb[0].mxu0
      %802 = vmatprep.mubr.bf16.mxu0 0
      %803 = vmatmul.mubr.bf16.gmra.mrb[0].mxu0 %v462
      %v804 = vpop.f32.mrb[0].mxu0
      %v805 = vadd.f32 0.0, %v804
      %v806 = vpop.f32.mrb[0].mxu0
      %v807 = vpop.f32.mrb[0].mxu0
      %v808 = vadd.f32 0.0, %v807
      %v809 = vpop.f32.mrb[0].mxu0
      %810 = vmatprep.mubr.bf16.mxu0 0
      %811 = vmatmul.mubr.bf16.gmra.mrb[0].mxu0 %v465
      %v812 = vpop.f32.mrb[0].mxu0
      %v813 = vadd.f32 0.0, %v812
      %v814 = vpop.f32.mrb[0].mxu0
      %v815 = vpop.f32.mrb[0].mxu0
      %v816 = vadd.f32 0.0, %v815
      %v817 = vpop.f32.mrb[0].mxu0
      %818 = vdwg.mxu0
      %v819 = vpack.c.bf16 %v760, %v757
      %v820 = vpack.c.bf16 %v768, %v765
      %v821 = vpack.c.bf16 %v776, %v773
      %v822 = vpack.c.bf16 %v784, %v781
      %v823 = vpack.c.bf16 %v792, %v789
      %v824 = vpack.c.bf16 %v800, %v797
      %v825 = vpack.c.bf16 %v808, %v805
      %v826 = vpack.c.bf16 %v816, %v813
      %v835 = vunpack.c.l.b16 %v819
      %v836 = vunpack.c.h.b16 %v819
      %v837 = vunpack.c.l.b16 %v820
      %v838 = vunpack.c.h.b16 %v820
      %v839 = vunpack.c.l.b16 %v821
      %v840 = vunpack.c.h.b16 %v821
      %v841 = vunpack.c.l.b16 %v822
      %v842 = vunpack.c.h.b16 %v822
      %v843 = vunpack.c.l.b16 %v823
      %v844 = vunpack.c.h.b16 %v823
      %v845 = vunpack.c.l.b16 %v824
      %v846 = vunpack.c.h.b16 %v824
      %v847 = vunpack.c.l.b16 %v825
      %v848 = vunpack.c.h.b16 %v825
      %v849 = vunpack.c.l.b16 %v826
      %v850 = vunpack.c.h.b16 %v826
      %v851 = vpack.c.b16 %v835, %v835
      %v852 = vpack.c.b16 %v836, %v836
      %v853 = vpack.c.b16 %v837, %v837
      %v854 = vpack.c.b16 %v838, %v838
      %v855 = vpack.c.b16 %v839, %v839
      %v856 = vpack.c.b16 %v840, %v840
      %v857 = vpack.c.b16 %v841, %v841
      %v858 = vpack.c.b16 %v842, %v842
      %v859 = vpack.c.b16 %v843, %v843
      %v860 = vpack.c.b16 %v844, %v844
      %v861 = vpack.c.b16 %v845, %v845
      %v862 = vpack.c.b16 %v846, %v846
      %v863 = vpack.c.b16 %v847, %v847
      %v864 = vpack.c.b16 %v848, %v848
      %v865 = vpack.c.b16 %v849, %v849
      %v866 = vpack.c.b16 %v850, %v850
      %883 = vst [vmem:[%s321] sm:$0xf] %v851
      %884 = vst [vmem:[%s321 + $0x4] sm:$0xf] %v852
      %885 = vst [vmem:[%s321 + $0x8] sm:$0xf] %v853
      %886 = vst [vmem:[%s321 + $0xc] sm:$0xf] %v854
      %887 = vst [vmem:[%s321 + $0x10] sm:$0xf] %v855
      %888 = vst [vmem:[%s321 + $0x14] sm:$0xf] %v856
      %889 = vst [vmem:[%s321 + $0x18] sm:$0xf] %v857
      %890 = vst [vmem:[%s321 + $0x1c] sm:$0xf] %v858
      %891 = vst [vmem:[%s321 + $0x20] sm:$0xf] %v859
      %892 = vst [vmem:[%s321 + $0x24] sm:$0xf] %v860
      %893 = vst [vmem:[%s321 + $0x28] sm:$0xf] %v861
      %894 = vst [vmem:[%s321 + $0x2c] sm:$0xf] %v862
      %895 = vst [vmem:[%s321 + $0x30] sm:$0xf] %v863
      %896 = vst [vmem:[%s321 + $0x34] sm:$0xf] %v864
      %897 = vst [vmem:[%s321 + $0x38] sm:$0xf] %v865
      %898 = vst [vmem:[%s321 + $0x3c] sm:$0xf] %v866
      %s899 = smul.u32 16, %s20
      %p900 = scmp.lt.s32.totalorder %s899, 63
      %s901 = scalar_select %p900, %s899, 63
      %s902 = smul.addr %s901, 4
      %s903 = scalar_lea.vmem %s7, %s902
      %s904 = smul.u32 16, %s20
      %p905 = scmp.lt.s32.totalorder %s904, 63
      %s906 = scalar_select %p905, %s904, 63
      %s907 = smul.addr %s906, 4
      %s908 = scalar_lea.vmem %s8, %s907
      // Predicated region
      $region49: #{_lambda_.2} parent=47 // pred_check
        %p909 = pneg %p190
      $region50: #{_lambda_.2} parent=47 // pred_check_branch
        %911 = sbr.rel (%p909) target = $region52
      $region51: #{_lambda_.2} parent=47 // pred_region
        %s912 = smul.u32 16, %s20
      $region52: #{_lambda_.2} parent=47 // pred_fallthru
        _
      // Predicated region
      $region53: #{_lambda_.2} parent=47 // pred_check
        %p913 = pneg %p216
      $region54: #{_lambda_.2} parent=47 // pred_check_branch
        %915 = sbr.rel (%p913) target = $region56
      $region55: #{_lambda_.2} parent=47 // pred_region
        %s916 = smul.u32 16, %s20
      $region56: #{_lambda_.2} parent=47 // pred_fallthru
        _
    $region48: #{_lambda_.2} parent=5 // pred_fallthru
      _
    %p917 = scmp.le.s32.totalorder 2, %s15
    // Predicated region
    $region57: #{_lambda_.2} parent=5 // pred_check
      %p918 = pneg %p917
    $region58: #{_lambda_.2} parent=5 // pred_check_branch
      %920 = sbr.rel (%p918) target = $region60
    $region59: #{_lambda_.2} parent=5 // pred_region
      %s921 = ssub.s32 %s15, 2
      // Predicated region
      $region61: #{_lambda_.2} parent=59 // pred_check
        %p922 = pneg %p196
      $region62: #{_lambda_.2} parent=59 // pred_check_branch
        %924 = sbr.rel (%p922) target = $region64
      $region63: #{_lambda_.2} parent=59 // pred_region
        %s925 = smul.u32 16, %s21
        %p926 = scmp.lt.s32.totalorder %s925, 63
        %s927 = scalar_select %p926, %s925, 63
        %s928 = smul.addr %s927, 4
        %s929 = scalar_lea.vmem %s7, %s928
      $region64: #{_lambda_.2} parent=59 // pred_fallthru
        _
      // Predicated region
      $region65: #{_lambda_.2} parent=59 // pred_check
        %p930 = pneg %p222
      $region66: #{_lambda_.2} parent=59 // pred_check_branch
        %932 = sbr.rel (%p930) target = $region68
      $region67: #{_lambda_.2} parent=59 // pred_region
        %s933 = smul.u32 16, %s21
        %p934 = scmp.lt.s32.totalorder %s933, 63
        %s935 = scalar_select %p934, %s933, 63
        %s936 = smul.addr %s935, 4
        %s937 = scalar_lea.vmem %s8, %s936
      $region68: #{_lambda_.2} parent=59 // pred_fallthru
        _
    $region60: #{_lambda_.2} parent=5 // pred_fallthru
      _
  $region6: #{_lambda_.2} parent=0 // loop_footer
    %s19 = sadd.s32 1, %s15
  $region7: #{_lambda_.2} parent=0 // loop_footer_branch
    %14 = sbr.rel target = $region3
  $region8: #{_lambda_.2} parent=0 // loop_exit
    _

// kernel: _lambda_.3
$region0: #{_lambda_.3}
  #allocation0 [shape = 'u32[]', space=smem, size = 0x4, offset = 0x4, fixed_abs, tag = 'smem constant byte address 0x4 - core index']
  #allocation1 [shape = 'u32[144,128]{1,0:T(1,128)}', space=vmem, size = 0x12000, scoped, tag = 'internal scratch']
  %s0 = inlined_call_operand.vmem [shape: bf16[2,18,18,128], index: 0, kind: input, shape index: {}, may-alias: {0,1,2}]
  %s1 = inlined_call_operand.vmem [shape: bf16[2,18,18,128], index: 1, kind: input, shape index: {}, may-alias: {0,1,2}]
  %s2 = inlined_call_operand.vmem [shape: bf16[2,18,18,128], index: 2, kind: input, shape index: {}, may-alias: {0,1,2}]
  %s3 = inlined_call_operand.vmem [shape: bf16[1152,128], index: 3, kind: input, shape index: {}]
  %s4 = inlined_call_operand.vmem [shape: f32[1,128], index: 4, kind: input, shape index: {}]
  %s5 = inlined_call_operand.vmem [shape: f32[1,128], index: 5, kind: input, shape index: {}]
  %s6 = inlined_call_operand.vmem [shape: bf16[128,128], index: 6, kind: input, shape index: {}]
  %s7 = inlined_call_operand.vmem [shape: bf16[2,256,128], index: 7, kind: input, shape index: {}]
  %s8 = inlined_call_operand.vmem [shape: f32[2,256,128], index: 8, kind: output, shape index: {}]
  %s9 = sld [smem:[#allocation0]]
  $region65: #{_lambda_.3} parent=0
    _
  %s11 = ssub.s32 1, %s9
  %s12 = scalar_select 0, %s11, %s9
  loop: start=0, step=1, limit=6
  $region2: #{_lambda_.3} parent=0 // loop_pre_header
    _
  $region3: #{_lambda_.3} parent=0 // loop_header
    %s14 = sphi 0, %s18
    %p15 = scmp.ge.s32.totalorder %s14, 6
    %s21 = sphi 0, %s33
    %s22 = sphi 0, %s29
    %s23 = sphi 0, %s21
    %s24 = sphi 0, %s22
    %s25 = sphi 0, %s23
    %s26 = sphi 0, %s24
    %s38 = sphi 0, %s40
    %s41 = sphi 0, %s38
    %s42 = sphi 0, %s41
    %s58 = sphi 0, %s42
    %s70 = sphi 0, %s72
    %s73 = sphi 0, %s70
    %s74 = sphi 0, %s73
    %s90 = sphi 0, %s74
    %s104 = sphi 0, %s106
    %s107 = sphi 0, %s104
    %s108 = sphi 0, %s107
    %s124 = sphi 0, %s108
    %s128 = sphi 0, %s128
    %s130 = sphi 0, %s128
    %s131 = sphi 0, %s130
    %s145 = sphi 0, %s131
    %s149 = sphi 0, %s149
    %s151 = sphi 0, %s149
    %s152 = sphi 0, %s151
    %s166 = sphi 0, %s152
    %s170 = sphi 0, %s170
    %s172 = sphi 0, %s170
    %s173 = sphi 0, %s172
    %s187 = sphi 0, %s173
    %s191 = sphi 0, %s191
    %s193 = sphi 0, %s191
    %s194 = sphi 0, %s193
    %s208 = sphi 0, %s194
    %s216 = sphi 0, %s218
    %s219 = sphi 0, %s216
    %s220 = sphi 0, %s219
    %s236 = sphi 0, %s220
    %s244 = sphi 0, %s246
    %s247 = sphi 0, %s244
    %s248 = sphi 0, %s247
    %s264 = sphi 0, %s248
  $region4: #{_lambda_.3} parent=0 // loop_header_branch
    %17 = sbr.rel (%p15) target = $region8
  $region5: #{_lambda_.3} parent=0 // loop_body
    %s19 = ssub.s32 %s14, 1
    %s20 = ssub.s32 %s14, 2
    %s27 = sadd.s32 1, %s22
    %p28 = scmp.ge.s32.totalorder %s27, 2
    %s29 = scalar_select %p28, 0, %s27
    %s30 = sadd.s32 1, %s21
    %s31 = scalar_select %p28, %s30, %s21
    %p32 = scmp.ge.s32.totalorder %s31, 2
    %s33 = scalar_select %p32, 0, %s31
    %s34 = ssub.s32 %s21, %s33
    %s35 = ssub.s32 %s22, %s29
    %s36 = sor.u32 %s34, %s35
    %p37 = scmp.eq.s32.totalorder %s36, 0
    %s39 = sadd.s32 %s38, 1
    %s40 = scalar_select %p37, %s38, %s39
    %p43 = pneg %p37
    %p44 = scmp.eq.s32.totalorder %s14, 3
    %p45 = por %p43, %p44
    %p46 = scmp.ne.s32.totalorder %s38, %s41
    %p47 = scmp.eq.s32.totalorder %s14, 0
    %p48 = por %p46, %p47
    %p49 = scmp.ne.s32.totalorder %s38, %s41
    %p50 = scmp.eq.s32.totalorder %s19, 3
    %p51 = por %p49, %p50
    %p52 = scmp.ne.s32.totalorder %s41, %s42
    %p53 = scmp.eq.s32.totalorder %s19, 0
    %p54 = por %p52, %p53
    %p55 = scmp.ne.s32.totalorder %s41, %s42
    %p56 = scmp.eq.s32.totalorder %s20, 3
    %p57 = por %p55, %p56
    %p59 = scmp.ne.s32.totalorder %s42, %s58
    %p60 = scmp.eq.s32.totalorder %s20, 0
    %p61 = por %p59, %p60
    %s62 = sadd.s32 %s22, 1
    %s63 = smul.u32 %s62, 8
    %s64 = sadd.s32 %s29, 1
    %s65 = smul.u32 %s64, 8
    %s66 = ssub.s32 %s21, %s33
    %s67 = ssub.s32 %s63, %s65
    %s68 = sor.u32 %s66, %s67
    %p69 = scmp.eq.s32.totalorder %s68, 0
    %s71 = sadd.s32 %s70, 1
    %s72 = scalar_select %p69, %s70, %s71
    %p75 = pneg %p69
    %p76 = scmp.eq.s32.totalorder %s14, 3
    %p77 = por %p75, %p76
    %p78 = scmp.ne.s32.totalorder %s70, %s73
    %p79 = scmp.eq.s32.totalorder %s14, 0
    %p80 = por %p78, %p79
    %p81 = scmp.ne.s32.totalorder %s70, %s73
    %p82 = scmp.eq.s32.totalorder %s19, 3
    %p83 = por %p81, %p82
    %p84 = scmp.ne.s32.totalorder %s73, %s74
    %p85 = scmp.eq.s32.totalorder %s19, 0
    %p86 = por %p84, %p85
    %p87 = scmp.ne.s32.totalorder %s73, %s74
    %p88 = scmp.eq.s32.totalorder %s20, 3
    %p89 = por %p87, %p88
    %p91 = scmp.ne.s32.totalorder %s74, %s90
    %p92 = scmp.eq.s32.totalorder %s20, 0
    %p93 = por %p91, %p92
    %s94 = sadd.s32 %s22, 1
    %s95 = smul.u32 %s94, 8
    %s96 = sadd.s32 %s95, 1
    %s97 = sadd.s32 %s29, 1
    %s98 = smul.u32 %s97, 8
    %s99 = sadd.s32 %s98, 1
    %s100 = ssub.s32 %s21, %s33
    %s101 = ssub.s32 %s96, %s99
    %s102 = sor.u32 %s100, %s101
    %p103 = scmp.eq.s32.totalorder %s102, 0
    %s105 = sadd.s32 %s104, 1
    %s106 = scalar_select %p103, %s104, %s105
    %p109 = pneg %p103
    %p110 = scmp.eq.s32.totalorder %s14, 3
    %p111 = por %p109, %p110
    %p112 = scmp.ne.s32.totalorder %s104, %s107
    %p113 = scmp.eq.s32.totalorder %s14, 0
    %p114 = por %p112, %p113
    %p115 = scmp.ne.s32.totalorder %s104, %s107
    %p116 = scmp.eq.s32.totalorder %s19, 3
    %p117 = por %p115, %p116
    %p118 = scmp.ne.s32.totalorder %s107, %s108
    %p119 = scmp.eq.s32.totalorder %s19, 0
    %p120 = por %p118, %p119
    %p121 = scmp.ne.s32.totalorder %s107, %s108
    %p122 = scmp.eq.s32.totalorder %s20, 3
    %p123 = por %p121, %p122
    %p125 = scmp.ne.s32.totalorder %s108, %s124
    %p126 = scmp.eq.s32.totalorder %s20, 0
    %p127 = por %p125, %p126
    %s129 = sadd.s32 %s128, 1
    %p132 = scmp.eq.s32.totalorder %s14, 3
    %p133 = scmp.ne.s32.totalorder %s128, %s130
    %p134 = scmp.eq.s32.totalorder %s14, 0
    %p135 = por %p133, %p134
    %p136 = scmp.ne.s32.totalorder %s128, %s130
    %p137 = scmp.eq.s32.totalorder %s19, 3
    %p138 = por %p136, %p137
    %p139 = scmp.ne.s32.totalorder %s130, %s131
    %p140 = scmp.eq.s32.totalorder %s19, 0
    %p141 = por %p139, %p140
    %p142 = scmp.ne.s32.totalorder %s130, %s131
    %p143 = scmp.eq.s32.totalorder %s20, 3
    %p144 = por %p142, %p143
    %p146 = scmp.ne.s32.totalorder %s131, %s145
    %p147 = scmp.eq.s32.totalorder %s20, 0
    %p148 = por %p146, %p147
    %s150 = sadd.s32 %s149, 1
    %p153 = scmp.eq.s32.totalorder %s14, 3
    %p154 = scmp.ne.s32.totalorder %s149, %s151
    %p155 = scmp.eq.s32.totalorder %s14, 0
    %p156 = por %p154, %p155
    %p157 = scmp.ne.s32.totalorder %s149, %s151
    %p158 = scmp.eq.s32.totalorder %s19, 3
    %p159 = por %p157, %p158
    %p160 = scmp.ne.s32.totalorder %s151, %s152
    %p161 = scmp.eq.s32.totalorder %s19, 0
    %p162 = por %p160, %p161
    %p163 = scmp.ne.s32.totalorder %s151, %s152
    %p164 = scmp.eq.s32.totalorder %s20, 3
    %p165 = por %p163, %p164
    %p167 = scmp.ne.s32.totalorder %s152, %s166
    %p168 = scmp.eq.s32.totalorder %s20, 0
    %p169 = por %p167, %p168
    %s171 = sadd.s32 %s170, 1
    %p174 = scmp.eq.s32.totalorder %s14, 3
    %p175 = scmp.ne.s32.totalorder %s170, %s172
    %p176 = scmp.eq.s32.totalorder %s14, 0
    %p177 = por %p175, %p176
    %p178 = scmp.ne.s32.totalorder %s170, %s172
    %p179 = scmp.eq.s32.totalorder %s19, 3
    %p180 = por %p178, %p179
    %p181 = scmp.ne.s32.totalorder %s172, %s173
    %p182 = scmp.eq.s32.totalorder %s19, 0
    %p183 = por %p181, %p182
    %p184 = scmp.ne.s32.totalorder %s172, %s173
    %p185 = scmp.eq.s32.totalorder %s20, 3
    %p186 = por %p184, %p185
    %p188 = scmp.ne.s32.totalorder %s173, %s187
    %p189 = scmp.eq.s32.totalorder %s20, 0
    %p190 = por %p188, %p189
    %s192 = sadd.s32 %s191, 1
    %p195 = scmp.eq.s32.totalorder %s14, 3
    %p196 = scmp.ne.s32.totalorder %s191, %s193
    %p197 = scmp.eq.s32.totalorder %s14, 0
    %p198 = por %p196, %p197
    %p199 = scmp.ne.s32.totalorder %s191, %s193
    %p200 = scmp.eq.s32.totalorder %s19, 3
    %p201 = por %p199, %p200
    %p202 = scmp.ne.s32.totalorder %s193, %s194
    %p203 = scmp.eq.s32.totalorder %s19, 0
    %p204 = por %p202, %p203
    %p205 = scmp.ne.s32.totalorder %s193, %s194
    %p206 = scmp.eq.s32.totalorder %s20, 3
    %p207 = por %p205, %p206
    %p209 = scmp.ne.s32.totalorder %s194, %s208
    %p210 = scmp.eq.s32.totalorder %s20, 0
    %p211 = por %p209, %p210
    %s212 = ssub.s32 %s21, %s33
    %s213 = ssub.s32 %s22, %s29
    %s214 = sor.u32 %s212, %s213
    %p215 = scmp.eq.s32.totalorder %s214, 0
    %s217 = sadd.s32 %s216, 1
    %s218 = scalar_select %p215, %s216, %s217
    %p221 = pneg %p215
    %p222 = scmp.eq.s32.totalorder %s14, 3
    %p223 = por %p221, %p222
    %p224 = scmp.ne.s32.totalorder %s216, %s219
    %p225 = scmp.eq.s32.totalorder %s14, 0
    %p226 = por %p224, %p225
    %p227 = scmp.ne.s32.totalorder %s216, %s219
    %p228 = scmp.eq.s32.totalorder %s19, 3
    %p229 = por %p227, %p228
    %p230 = scmp.ne.s32.totalorder %s219, %s220
    %p231 = scmp.eq.s32.totalorder %s19, 0
    %p232 = por %p230, %p231
    %p233 = scmp.ne.s32.totalorder %s219, %s220
    %p234 = scmp.eq.s32.totalorder %s20, 3
    %p235 = por %p233, %p234
    %p237 = scmp.ne.s32.totalorder %s220, %s236
    %p238 = scmp.eq.s32.totalorder %s20, 0
    %p239 = por %p237, %p238
    %s240 = ssub.s32 %s21, %s33
    %s241 = ssub.s32 %s22, %s29
    %s242 = sor.u32 %s240, %s241
    %p243 = scmp.eq.s32.totalorder %s242, 0
    %s245 = sadd.s32 %s244, 1
    %s246 = scalar_select %p243, %s244, %s245
    %p249 = pneg %p243
    %p250 = scmp.eq.s32.totalorder %s14, 3
    %p251 = por %p249, %p250
    %p252 = scmp.ne.s32.totalorder %s244, %s247
    %p253 = scmp.eq.s32.totalorder %s14, 0
    %p254 = por %p252, %p253
    %p255 = scmp.ne.s32.totalorder %s244, %s247
    %p256 = scmp.eq.s32.totalorder %s19, 3
    %p257 = por %p255, %p256
    %p258 = scmp.ne.s32.totalorder %s247, %s248
    %p259 = scmp.eq.s32.totalorder %s19, 0
    %p260 = por %p258, %p259
    %p261 = scmp.ne.s32.totalorder %s247, %s248
    %p262 = scmp.eq.s32.totalorder %s20, 3
    %p263 = por %p261, %p262
    %p265 = scmp.ne.s32.totalorder %s248, %s264
    %p266 = scmp.eq.s32.totalorder %s20, 0
    %p267 = por %p265, %p266
    %p268 = scmp.le.s32.totalorder 1, %s14
    %p269 = scmp.lt.s32.totalorder %s14, 5
    %p270 = pnand %p268, %p269
    %p271 = pneg %p270
    // Predicated region
    $region9: #{_lambda_.3} parent=5 // pred_check
      _
    $region10: #{_lambda_.3} parent=5 // pred_check_branch
      %273 = sbr.rel (%p270) target = $region12
    $region11: #{_lambda_.3} parent=5 // pred_region
      %s274 = ssub.s32 %s14, 1
      // Predicated region
      $region13: #{_lambda_.3} parent=11 // pred_check
        %p275 = pneg %p141
      $region14: #{_lambda_.3} parent=11 // pred_check_branch
        %277 = sbr.rel (%p275) target = $region16
      $region15: #{_lambda_.3} parent=11 // pred_region
        _
      $region16: #{_lambda_.3} parent=11 // pred_fallthru
        _
      // Predicated region
      $region17: #{_lambda_.3} parent=11 // pred_check
        %p278 = pneg %p162
      $region18: #{_lambda_.3} parent=11 // pred_check_branch
        %280 = sbr.rel (%p278) target = $region20
      $region19: #{_lambda_.3} parent=11 // pred_region
        _
      $region20: #{_lambda_.3} parent=11 // pred_fallthru
        _
      // Predicated region
      $region21: #{_lambda_.3} parent=11 // pred_check
        %p281 = pneg %p183
      $region22: #{_lambda_.3} parent=11 // pred_check_branch
        %283 = sbr.rel (%p281) target = $region24
      $region23: #{_lambda_.3} parent=11 // pred_region
        _
      $region24: #{_lambda_.3} parent=11 // pred_fallthru
        _
      // Predicated region
      $region25: #{_lambda_.3} parent=11 // pred_check
        %p284 = pneg %p204
      $region26: #{_lambda_.3} parent=11 // pred_check_branch
        %286 = sbr.rel (%p284) target = $region28
      $region27: #{_lambda_.3} parent=11 // pred_region
        _
      $region28: #{_lambda_.3} parent=11 // pred_fallthru
        _
    $region12: #{_lambda_.3} parent=5 // pred_fallthru
      _
    %p287 = scmp.lt.s32.totalorder %s14, 4
    // Predicated region
    $region29: #{_lambda_.3} parent=5 // pred_check
      %p288 = pneg %p287
    $region30: #{_lambda_.3} parent=5 // pred_check_branch
      %290 = sbr.rel (%p288) target = $region32
    $region31: #{_lambda_.3} parent=5 // pred_region
      // Predicated region
      $region33: #{_lambda_.3} parent=31 // pred_check
        %p291 = pneg %p48
      $region34: #{_lambda_.3} parent=31 // pred_check_branch
        %293 = sbr.rel (%p291) target = $region36
      $region35: #{_lambda_.3} parent=31 // pred_region
        %s294 = smul.u32 8, %s22
        %s295 = ssub.s32 18, %s294
        %p296 = scmp.lt.s32.totalorder %s295, 8
        %s297 = scalar_select %p296, %s295, 8
        %s298 = smul.u32 64, %s297
        %s299 = smul.u32 %s298, 3
        %p300 = scmp.lt.s32.totalorder %s21, 1
        %s301 = scalar_select %p300, %s21, 1
        %p302 = scmp.lt.s32.totalorder %s294, 17
        %s303 = scalar_select %p302, %s294, 17
        %s304 = smul.addr %s303, 3
        %s305 = smul.addr %s301, 54
        %s306 = sadd.s32 %s304, %s305
        %s307 = smul.addr %s306, 4
        %s308 = scalar_lea.vmem %s0, %s307
        %s309 = smul.u32 8, %s22
        %s310 = ssub.s32 18, %s309
        %p311 = scmp.lt.s32.totalorder %s310, 8
        %s312 = scalar_select %p311, %s310, 8
        %s313 = smul.u32 64, %s312
        %s314 = smul.u32 %s313, 3
      $region36: #{_lambda_.3} parent=31 // pred_fallthru
        _
      // Predicated region
      $region37: #{_lambda_.3} parent=31 // pred_check
        %p315 = pneg %p80
      $region38: #{_lambda_.3} parent=31 // pred_check_branch
        %317 = sbr.rel (%p315) target = $region40
      $region39: #{_lambda_.3} parent=31 // pred_region
        %s318 = sadd.s32 %s22, 1
        %s319 = smul.u32 %s318, 8
        %p320 = scmp.lt.s32.totalorder %s21, 1
        %s321 = scalar_select %p320, %s21, 1
        %p322 = scmp.lt.s32.totalorder %s319, 17
        %s323 = scalar_select %p322, %s319, 17
        %s324 = smul.addr %s323, 3
        %s325 = smul.addr %s321, 54
        %s326 = sadd.s32 %s324, %s325
        %s327 = smul.addr %s326, 4
        %s328 = scalar_lea.vmem %s1, %s327
        %s329 = sadd.s32 %s22, 1
        %s330 = smul.u32 %s329, 8
      $region40: #{_lambda_.3} parent=31 // pred_fallthru
        _
      // Predicated region
      $region41: #{_lambda_.3} parent=31 // pred_check
        %p331 = pneg %p114
      $region42: #{_lambda_.3} parent=31 // pred_check_branch
        %333 = sbr.rel (%p331) target = $region44
      $region43: #{_lambda_.3} parent=31 // pred_region
        %s334 = sadd.s32 %s22, 1
        %s335 = smul.u32 %s334, 8
        %s336 = sadd.s32 %s335, 1
        %p337 = scmp.lt.s32.totalorder %s21, 1
        %s338 = scalar_select %p337, %s21, 1
        %p339 = scmp.lt.s32.totalorder %s336, 17
        %s340 = scalar_select %p339, %s336, 17
        %s341 = smul.addr %s340, 3
        %s342 = smul.addr %s338, 54
        %s343 = sadd.s32 %s341, %s342
        %s344 = smul.addr %s343, 4
        %s345 = scalar_lea.vmem %s2, %s344
        %s346 = sadd.s32 %s22, 1
        %s347 = smul.u32 %s346, 8
        %s348 = sadd.s32 %s347, 1
      $region44: #{_lambda_.3} parent=31 // pred_fallthru
        _
      // Predicated region
      $region45: #{_lambda_.3} parent=31 // pred_check
        %p349 = pneg %p226
      $region46: #{_lambda_.3} parent=31 // pred_check_branch
        %351 = sbr.rel (%p349) target = $region48
      $region47: #{_lambda_.3} parent=31 // pred_region
        %s352 = smul.u32 16, %s22
        %p353 = scmp.lt.s32.totalorder %s21, 1
        %s354 = scalar_select %p353, %s21, 1
        %p355 = scmp.lt.s32.totalorder %s352, 31
        %s356 = scalar_select %p355, %s352, 31
        %s357 = smul.addr %s354, 32
        %s358 = sadd.s32 %s356, %s357
        %s359 = smul.addr %s358, 4
        %s360 = scalar_lea.vmem %s7, %s359
        %s361 = smul.u32 16, %s22
      $region48: #{_lambda_.3} parent=31 // pred_fallthru
        _
    $region32: #{_lambda_.3} parent=5 // pred_fallthru
      _
    %p362 = scmp.le.s32.totalorder 1, %s14
    %p363 = scmp.lt.s32.totalorder %s14, 5
    %p364 = pnand %p362, %p363
    %p365 = pneg %p364
    // Predicated region
    $region49: #{_lambda_.3} parent=5 // pred_check
      _
    $region50: #{_lambda_.3} parent=5 // pred_check_branch
      %367 = sbr.rel (%p364) target = $region52
    $region51: #{_lambda_.3} parent=5 // pred_region
      %s368 = ssub.s32 %s14, 1
      %s369 = smul.u32 8, %s24
      %s370 = ssub.s32 18, %s369
      %p371 = scmp.lt.s32.totalorder %s370, 8
      %s372 = scalar_select %p371, %s370, 8
      %s373 = smul.u32 64, %s372
      %s374 = smul.u32 %s373, 3
      %p375 = scmp.lt.s32.totalorder %s23, 1
      %s376 = scalar_select %p375, %s23, 1
      %p377 = scmp.lt.s32.totalorder %s369, 17
      %s378 = scalar_select %p377, %s369, 17
      %s379 = smul.addr %s378, 3
      %s380 = smul.addr %s376, 54
      %s381 = sadd.s32 %s379, %s380
      %s382 = smul.addr %s381, 4
      %s383 = scalar_lea.vmem %s0, %s382
      %p384 = pneg %p54
      %p385 = pneg %p51
      %s386 = sadd.s32 %s24, 1
      %s387 = smul.u32 %s386, 8
      %p388 = scmp.lt.s32.totalorder %s23, 1
      %s389 = scalar_select %p388, %s23, 1
      %p390 = scmp.lt.s32.totalorder %s387, 17
      %s391 = scalar_select %p390, %s387, 17
      %s392 = smul.addr %s391, 3
      %s393 = smul.addr %s389, 54
      %s394 = sadd.s32 %s392, %s393
      %s395 = smul.addr %s394, 4
      %s396 = scalar_lea.vmem %s1, %s395
      %p397 = pneg %p86
      %p398 = pneg %p83
      %s399 = sadd.s32 %s24, 1
      %s400 = smul.u32 %s399, 8
      %s401 = sadd.s32 %s400, 1
      %p402 = scmp.lt.s32.totalorder %s23, 1
      %s403 = scalar_select %p402, %s23, 1
      %p404 = scmp.lt.s32.totalorder %s401, 17
      %s405 = scalar_select %p404, %s401, 17
      %s406 = smul.addr %s405, 3
      %s407 = smul.addr %s403, 54
      %s408 = sadd.s32 %s406, %s407
      %s409 = smul.addr %s408, 4
      %s410 = scalar_lea.vmem %s2, %s409
      %p411 = pneg %p120
      %p412 = pneg %p117
      %p413 = pneg %p141
      %p414 = pneg %p138
      %p415 = pneg %p162
      %p416 = pneg %p159
      %p417 = pneg %p183
      %p418 = pneg %p180
      %p419 = pneg %p204
      %p420 = pneg %p201
      %s421 = smul.u32 16, %s24
      %p422 = scmp.lt.s32.totalorder %s23, 1
      %s423 = scalar_select %p422, %s23, 1
      %p424 = scmp.lt.s32.totalorder %s421, 31
      %s425 = scalar_select %p424, %s421, 31
      %s426 = smul.addr %s423, 32
      %s427 = sadd.s32 %s425, %s426
      %s428 = smul.addr %s427, 4
      %s429 = scalar_lea.vmem %s7, %s428
      %p430 = pneg %p232
      %p431 = pneg %p229
      %p432 = pneg %p260
      %p433 = pneg %p257
      %s434 = smul.u32 16, %s24
      %p435 = scmp.lt.s32.totalorder %s23, 1
      %s436 = scalar_select %p435, %s23, 1
      %p437 = scmp.lt.s32.totalorder %s434, 31
      %s438 = scalar_select %p437, %s434, 31
      %s439 = smul.addr %s436, 32
      %s440 = sadd.s32 %s438, %s439
      %s441 = smul.addr %s440, 8
      %s442 = scalar_lea.vmem %s8, %s441
      %s443 = smul.u32 8, %s24
      %s444 = ssub.s32 18, %s443
      %p445 = scmp.lt.s32.totalorder %s444, 8
      %s446 = scalar_select %p445, %s444, 8
      %s447 = smul.u32 64, %s446
      %s448 = smul.u32 %s447, 3
      %p449 = scmp.lt.s32.totalorder %s23, 1
      %s450 = scalar_select %p449, %s23, 1
      %p451 = scmp.lt.s32.totalorder %s443, 17
      %s452 = scalar_select %p451, %s443, 17
      %s453 = smul.addr %s452, 3
      %s454 = smul.addr %s450, 54
      %s455 = sadd.s32 %s453, %s454
      %s456 = smul.addr %s455, 4
      %s457 = scalar_lea.vmem %s0, %s456
      %s458 = smul.u32 8, %s24
      %s459 = ssub.s32 18, %s458
      %p460 = scmp.lt.s32.totalorder %s459, 8
      %s461 = scalar_select %p460, %s459, 8
      %s462 = smul.u32 64, %s461
      %s463 = smul.u32 %s462, 3
      %s464 = sadd.s32 %s24, 1
      %s465 = smul.u32 %s464, 8
      %p466 = scmp.lt.s32.totalorder %s23, 1
      %s467 = scalar_select %p466, %s23, 1
      %p468 = scmp.lt.s32.totalorder %s465, 17
      %s469 = scalar_select %p468, %s465, 17
      %s470 = smul.addr %s469, 3
      %s471 = smul.addr %s467, 54
      %s472 = sadd.s32 %s470, %s471
      %s473 = smul.addr %s472, 4
      %s474 = scalar_lea.vmem %s1, %s473
      %s475 = sadd.s32 %s24, 1
      %s476 = smul.u32 %s475, 8
      %s477 = sadd.s32 %s24, 1
      %s478 = smul.u32 %s477, 8
      %s479 = sadd.s32 %s478, 1
      %p480 = scmp.lt.s32.totalorder %s23, 1
      %s481 = scalar_select %p480, %s23, 1
      %p482 = scmp.lt.s32.totalorder %s479, 17
      %s483 = scalar_select %p482, %s479, 17
      %s484 = smul.addr %s483, 3
      %s485 = smul.addr %s481, 54
      %s486 = sadd.s32 %s484, %s485
      %s487 = smul.addr %s486, 4
      %s488 = scalar_lea.vmem %s2, %s487
      %s489 = sadd.s32 %s24, 1
      %s490 = smul.u32 %s489, 8
      %s491 = sadd.s32 %s490, 1
      %s492 = smul.u32 16, %s24
      %p493 = scmp.lt.s32.totalorder %s23, 1
      %s494 = scalar_select %p493, %s23, 1
      %p495 = scmp.lt.s32.totalorder %s492, 31
      %s496 = scalar_select %p495, %s492, 31
      %s497 = smul.addr %s494, 32
      %s498 = sadd.s32 %s496, %s497
      %s499 = smul.addr %s498, 4
      %s500 = scalar_lea.vmem %s7, %s499
      %s501 = smul.u32 16, %s24
      %s502 = smul.u32 16, %s24
      %p503 = scmp.lt.s32.totalorder %s23, 1
      %s504 = scalar_select %p503, %s23, 1
      %p505 = scmp.lt.s32.totalorder %s502, 31
      %s506 = scalar_select %p505, %s502, 31
      %s507 = smul.addr %s504, 32
      %s508 = sadd.s32 %s506, %s507
      %s509 = smul.addr %s508, 8
      %s510 = scalar_lea.vmem %s8, %s509
      %s511 = smul.u32 16, %s24
      %v513 = vld [vmem:[%s457] sm:$0xf]
      %v514 = vld [vmem:[%s457 + $0x4] sm:$0xf]
      %v515 = vld [vmem:[%s457 + $0x8] sm:$0x1]
      %v516 = vld [vmem:[%s457 + $0xc] sm:$0xf]
      %v517 = vld [vmem:[%s457 + $0x10] sm:$0xf]
      %v518 = vld [vmem:[%s457 + $0x14] sm:$0x1]
      %v519 = vld [vmem:[%s457 + $0x18] sm:$0xf]
      %v520 = vld [vmem:[%s457 + $0x1c] sm:$0xf]
      %v521 = vld [vmem:[%s457 + $0x20] sm:$0x1]
      %v522 = vld [vmem:[%s457 + $0x24] sm:$0xf]
      %v523 = vld [vmem:[%s457 + $0x28] sm:$0xf]
      %v524 = vld [vmem:[%s457 + $0x2c] sm:$0x1]
      %v525 = vld [vmem:[%s457 + $0x30] sm:$0xf]
      %v526 = vld [vmem:[%s457 + $0x34] sm:$0xf]
      %v527 = vld [vmem:[%s457 + $0x38] sm:$0x1]
      %v528 = vld [vmem:[%s457 + $0x3c] sm:$0xf]
      %v529 = vld [vmem:[%s457 + $0x40] sm:$0xf]
      %v530 = vld [vmem:[%s457 + $0x44] sm:$0x1]
      %v531 = vld [vmem:[%s457 + $0x48] sm:$0xf]
      %v532 = vld [vmem:[%s457 + $0x4c] sm:$0xf]
      %v533 = vld [vmem:[%s457 + $0x50] sm:$0x1]
      %v534 = vld [vmem:[%s457 + $0x54] sm:$0xf]
      %v535 = vld [vmem:[%s457 + $0x58] sm:$0xf]
      %v536 = vld [vmem:[%s457 + $0x5c] sm:$0x1]
      %v537 = vld [vmem:[%s474] sm:$0xf]
      %v538 = vld [vmem:[%s474 + $0x4] sm:$0xf]
      %v539 = vld [vmem:[%s474 + $0x8] sm:$0x1]
      %v540 = vld [vmem:[%s488] sm:$0xf]
      %v541 = vld [vmem:[%s488 + $0x4] sm:$0xf]
      %v542 = vld [vmem:[%s488 + $0x8] sm:$0x1]
      %v559 = vunpack.c.l.b16 %v513
      %v560 = vunpack.c.l.b16 %v514
      %v561 = vunpack.c.l.b16 %v516
      %v562 = vunpack.c.l.b16 %v517
      %v563 = vunpack.c.l.b16 %v519
      %v564 = vunpack.c.l.b16 %v520
      %v565 = vunpack.c.l.b16 %v522
      %v566 = vunpack.c.l.b16 %v523
      %v567 = vunpack.c.l.b16 %v525
      %v568 = vunpack.c.l.b16 %v526
      %v569 = vunpack.c.l.b16 %v528
      %v570 = vunpack.c.l.b16 %v529
      %v571 = vunpack.c.l.b16 %v531
      %v572 = vunpack.c.l.b16 %v532
      %v573 = vunpack.c.l.b16 %v534
      %v574 = vunpack.c.l.b16 %v535
      %v575 = vpack.c.b16 %v560, %v559
      %v576 = vpack.c.b16 %v562, %v561
      %v577 = vpack.c.b16 %v564, %v563
      %v578 = vpack.c.b16 %v566, %v565
      %v579 = vpack.c.b16 %v568, %v567
      %v580 = vpack.c.b16 %v570, %v569
      %v581 = vpack.c.b16 %v572, %v571
      %v582 = vpack.c.b16 %v574, %v573
      %v599 = vunpack.c.l.b16 %v515
      %v600 = vunpack.c.l.b16 %v518
      %v601 = vunpack.c.l.b16 %v521
      %v602 = vunpack.c.l.b16 %v524
      %v603 = vunpack.c.l.b16 %v527
      %v604 = vunpack.c.l.b16 %v530
      %v605 = vunpack.c.l.b16 %v533
      %v606 = vunpack.c.l.b16 %v536
      %v607 = vpack.c.b16 %v599, %v599
      %v608 = vpack.c.b16 %v600, %v600
      %v609 = vpack.c.b16 %v601, %v601
      %v610 = vpack.c.b16 %v602, %v602
      %v611 = vpack.c.b16 %v603, %v603
      %v612 = vpack.c.b16 %v604, %v604
      %v613 = vpack.c.b16 %v605, %v605
      %v614 = vpack.c.b16 %v606, %v606
      %vm615 = vsmask.f32 7424
      %v617 = vshrl.u32 %v575, 16
      %v619 = vshll.u32 %v575, 16
      %v621 = vrot.slane %v619, 1
      %v622 = vor.u32 %v617, %v621
      %v624 = vshll.u32 %v607, 16
      %v626 = vrot.slane %v624, 1
      %v627 = vsel %vm615, %v622, %v626
      %v629 = vshrl.u32 %v576, 16
      %v631 = vshll.u32 %v576, 16
      %v633 = vrot.slane %v631, 1
      %v634 = vor.u32 %v629, %v633
      %v636 = vshll.u32 %v608, 16
      %v638 = vrot.slane %v636, 1
      %v639 = vsel %vm615, %v634, %v638
      %v641 = vshrl.u32 %v577, 16
      %v643 = vshll.u32 %v577, 16
      %v645 = vrot.slane %v643, 1
      %v646 = vor.u32 %v641, %v645
      %v648 = vshll.u32 %v609, 16
      %v650 = vrot.slane %v648, 1
      %v651 = vsel %vm615, %v646, %v650
      %v653 = vshrl.u32 %v578, 16
      %v655 = vshll.u32 %v578, 16
      %v657 = vrot.slane %v655, 1
      %v658 = vor.u32 %v653, %v657
      %v660 = vshll.u32 %v610, 16
      %v662 = vrot.slane %v660, 1
      %v663 = vsel %vm615, %v658, %v662
      %v665 = vshrl.u32 %v579, 16
      %v667 = vshll.u32 %v579, 16
      %v669 = vrot.slane %v667, 1
      %v670 = vor.u32 %v665, %v669
      %v672 = vshll.u32 %v611, 16
      %v674 = vrot.slane %v672, 1
      %v675 = vsel %vm615, %v670, %v674
      %v677 = vshrl.u32 %v580, 16
      %v679 = vshll.u32 %v580, 16
      %v681 = vrot.slane %v679, 1
      %v682 = vor.u32 %v677, %v681
      %v684 = vshll.u32 %v612, 16
      %v686 = vrot.slane %v684, 1
      %v687 = vsel %vm615, %v682, %v686
      %v689 = vshrl.u32 %v581, 16
      %v691 = vshll.u32 %v581, 16
      %v693 = vrot.slane %v691, 1
      %v694 = vor.u32 %v689, %v693
      %v696 = vshll.u32 %v613, 16
      %v698 = vrot.slane %v696, 1
      %v699 = vsel %vm615, %v694, %v698
      %v701 = vshrl.u32 %v582, 16
      %v703 = vshll.u32 %v582, 16
      %v705 = vrot.slane %v703, 1
      %v706 = vor.u32 %v701, %v705
      %v708 = vshll.u32 %v614, 16
      %v710 = vrot.slane %v708, 1
      %v711 = vsel %vm615, %v706, %v710
      %vm720 = vcmask 1046528
      %v721 = vrot.slane %v575, 1
      %v722 = vrot.slane %v607, 1
      %v723 = vsel %vm720, %v721, %v722
      %v724 = vrot.slane %v576, 1
      %v725 = vrot.slane %v608, 1
      %v726 = vsel %vm720, %v724, %v725
      %v727 = vrot.slane %v577, 1
      %v728 = vrot.slane %v609, 1
      %v729 = vsel %vm720, %v727, %v728
      %v730 = vrot.slane %v578, 1
      %v731 = vrot.slane %v610, 1
      %v732 = vsel %vm720, %v730, %v731
      %v733 = vrot.slane %v579, 1
      %v734 = vrot.slane %v611, 1
      %v735 = vsel %vm720, %v733, %v734
      %v736 = vrot.slane %v580, 1
      %v737 = vrot.slane %v612, 1
      %v738 = vsel %vm720, %v736, %v737
      %v739 = vrot.slane %v581, 1
      %v740 = vrot.slane %v613, 1
      %v741 = vsel %vm720, %v739, %v740
      %v742 = vrot.slane %v582, 1
      %v743 = vrot.slane %v614, 1
      %v744 = vsel %vm720, %v742, %v743
      %v755 = vunpack.c.l.b16 %v537
      %v756 = vunpack.c.l.b16 %v538
      %v757 = vpack.c.b16 %v756, %v755
      %v760 = vunpack.c.l.b16 %v539
      %v761 = vpack.c.b16 %v760, %v760
      %v763 = vshrl.u32 %v757, 16
      %v765 = vshll.u32 %v757, 16
      %v767 = vrot.slane %v765, 1
      %v768 = vor.u32 %v763, %v767
      %v770 = vshll.u32 %v761, 16
      %v772 = vrot.slane %v770, 1
      %v773 = vsel %vm615, %v768, %v772
      %v775 = vrot.slane %v757, 1
      %v776 = vrot.slane %v761, 1
      %v777 = vsel %vm720, %v775, %v776
      %v781 = vunpack.c.l.b16 %v540
      %v782 = vunpack.c.l.b16 %v541
      %v783 = vpack.c.b16 %v782, %v781
      %v786 = vunpack.c.l.b16 %v542
      %v787 = vpack.c.b16 %v786, %v786
      %v789 = vshrl.u32 %v783, 16
      %v791 = vshll.u32 %v783, 16
      %v793 = vrot.slane %v791, 1
      %v794 = vor.u32 %v789, %v793
      %v796 = vshll.u32 %v787, 16
      %v798 = vrot.slane %v796, 1
      %v799 = vsel %vm615, %v794, %v798
      %v801 = vrot.slane %v783, 1
      %v802 = vrot.slane %v787, 1
      %v803 = vsel %vm720, %v801, %v802
      %v805 = vld [vmem:[%s3] sm:$0xf]
      %v806 = vld [vmem:[%s3 + $0x4] sm:$0xf]
      %v807 = vld [vmem:[%s3 + $0x8] sm:$0xf]
      %v808 = vld [vmem:[%s3 + $0xc] sm:$0xf]
      %v809 = vld [vmem:[%s3 + $0x10] sm:$0xf]
      %v810 = vld [vmem:[%s3 + $0x14] sm:$0xf]
      %v811 = vld [vmem:[%s3 + $0x18] sm:$0xf]
      %v812 = vld [vmem:[%s3 + $0x1c] sm:$0xf]
      %v813 = vld [vmem:[%s3 + $0x20] sm:$0xf]
      %v814 = vld [vmem:[%s3 + $0x24] sm:$0xf]
      %v815 = vld [vmem:[%s3 + $0x28] sm:$0xf]
      %v816 = vld [vmem:[%s3 + $0x2c] sm:$0xf]
      %v817 = vld [vmem:[%s3 + $0x30] sm:$0xf]
      %v818 = vld [vmem:[%s3 + $0x34] sm:$0xf]
      %v819 = vld [vmem:[%s3 + $0x38] sm:$0xf]
      %v820 = vld [vmem:[%s3 + $0x3c] sm:$0xf]
      %v821 = vld [vmem:[%s3 + $0x40] sm:$0xf]
      %v822 = vld [vmem:[%s3 + $0x44] sm:$0xf]
      %v823 = vld [vmem:[%s3 + $0x48] sm:$0xf]
      %v824 = vld [vmem:[%s3 + $0x4c] sm:$0xf]
      %v825 = vld [vmem:[%s3 + $0x50] sm:$0xf]
      %v826 = vld [vmem:[%s3 + $0x54] sm:$0xf]
      %v827 = vld [vmem:[%s3 + $0x58] sm:$0xf]
      %v828 = vld [vmem:[%s3 + $0x5c] sm:$0xf]
      %v829 = vld [vmem:[%s3 + $0x60] sm:$0xf]
      %v830 = vld [vmem:[%s3 + $0x64] sm:$0xf]
      %v831 = vld [vmem:[%s3 + $0x68] sm:$0xf]
      %v832 = vld [vmem:[%s3 + $0x6c] sm:$0xf]
      %v833 = vld [vmem:[%s3 + $0x70] sm:$0xf]
      %v834 = vld [vmem:[%s3 + $0x74] sm:$0xf]
      %v835 = vld [vmem:[%s3 + $0x78] sm:$0xf]
      %v836 = vld [vmem:[%s3 + $0x7c] sm:$0xf]
      %v837 = vld [vmem:[%s3 + $0x80] sm:$0xf]
      %v838 = vld [vmem:[%s3 + $0x84] sm:$0xf]
      %v839 = vld [vmem:[%s3 + $0x88] sm:$0xf]
      %v840 = vld [vmem:[%s3 + $0x8c] sm:$0xf]
      %v841 = vld [vmem:[%s3 + $0x90] sm:$0xf]
      %v842 = vld [vmem:[%s3 + $0x94] sm:$0xf]
      %v843 = vld [vmem:[%s3 + $0x98] sm:$0xf]
      %v844 = vld [vmem:[%s3 + $0x9c] sm:$0xf]
      %v845 = vld [vmem:[%s3 + $0xa0] sm:$0xf]
      %v846 = vld [vmem:[%s3 + $0xa4] sm:$0xf]
      %v847 = vld [vmem:[%s3 + $0xa8] sm:$0xf]
      %v848 = vld [vmem:[%s3 + $0xac] sm:$0xf]
      %v849 = vld [vmem:[%s3 + $0xb0] sm:$0xf]
      %v850 = vld [vmem:[%s3 + $0xb4] sm:$0xf]
      %v851 = vld [vmem:[%s3 + $0xb8] sm:$0xf]
      %v852 = vld [vmem:[%s3 + $0xbc] sm:$0xf]
      %v853 = vld [vmem:[%s3 + $0xc0] sm:$0xf]
      %v854 = vld [vmem:[%s3 + $0xc4] sm:$0xf]
      %v855 = vld [vmem:[%s3 + $0xc8] sm:$0xf]
      %v856 = vld [vmem:[%s3 + $0xcc] sm:$0xf]
      %v857 = vld [vmem:[%s3 + $0xd0] sm:$0xf]
      %v858 = vld [vmem:[%s3 + $0xd4] sm:$0xf]
      %v859 = vld [vmem:[%s3 + $0xd8] sm:$0xf]
      %v860 = vld [vmem:[%s3 + $0xdc] sm:$0xf]
      %v861 = vld [vmem:[%s3 + $0xe0] sm:$0xf]
      %v862 = vld [vmem:[%s3 + $0xe4] sm:$0xf]
      %v863 = vld [vmem:[%s3 + $0xe8] sm:$0xf]
      %v864 = vld [vmem:[%s3 + $0xec] sm:$0xf]
      %v865 = vld [vmem:[%s3 + $0xf0] sm:$0xf]
      %v866 = vld [vmem:[%s3 + $0xf4] sm:$0xf]
      %v867 = vld [vmem:[%s3 + $0xf8] sm:$0xf]
      %v868 = vld [vmem:[%s3 + $0xfc] sm:$0xf]
      %v869 = vld [vmem:[%s3 + $0x100] sm:$0xf]
      %v870 = vld [vmem:[%s3 + $0x104] sm:$0xf]
      %v871 = vld [vmem:[%s3 + $0x108] sm:$0xf]
      %v872 = vld [vmem:[%s3 + $0x10c] sm:$0xf]
      %v873 = vld [vmem:[%s3 + $0x110] sm:$0xf]
      %v874 = vld [vmem:[%s3 + $0x114] sm:$0xf]
      %v875 = vld [vmem:[%s3 + $0x118] sm:$0xf]
      %v876 = vld [vmem:[%s3 + $0x11c] sm:$0xf]
      %v877 = vld [vmem:[%s3 + $0x120] sm:$0xf]
      %v878 = vld [vmem:[%s3 + $0x124] sm:$0xf]
      %v879 = vld [vmem:[%s3 + $0x128] sm:$0xf]
      %v880 = vld [vmem:[%s3 + $0x12c] sm:$0xf]
      %v881 = vld [vmem:[%s3 + $0x130] sm:$0xf]
      %v882 = vld [vmem:[%s3 + $0x134] sm:$0xf]
      %v883 = vld [vmem:[%s3 + $0x138] sm:$0xf]
      %v884 = vld [vmem:[%s3 + $0x13c] sm:$0xf]
      %v885 = vld [vmem:[%s3 + $0x140] sm:$0xf]
      %v886 = vld [vmem:[%s3 + $0x144] sm:$0xf]
      %v887 = vld [vmem:[%s3 + $0x148] sm:$0xf]
      %v888 = vld [vmem:[%s3 + $0x14c] sm:$0xf]
      %v889 = vld [vmem:[%s3 + $0x150] sm:$0xf]
      %v890 = vld [vmem:[%s3 + $0x154] sm:$0xf]
      %v891 = vld [vmem:[%s3 + $0x158] sm:$0xf]
      %v892 = vld [vmem:[%s3 + $0x15c] sm:$0xf]
      %v893 = vld [vmem:[%s3 + $0x160] sm:$0xf]
      %v894 = vld [vmem:[%s3 + $0x164] sm:$0xf]
      %v895 = vld [vmem:[%s3 + $0x168] sm:$0xf]
      %v896 = vld [vmem:[%s3 + $0x16c] sm:$0xf]
      %v897 = vld [vmem:[%s3 + $0x170] sm:$0xf]
      %v898 = vld [vmem:[%s3 + $0x174] sm:$0xf]
      %v899 = vld [vmem:[%s3 + $0x178] sm:$0xf]
      %v900 = vld [vmem:[%s3 + $0x17c] sm:$0xf]
      %v901 = vld [vmem:[%s3 + $0x180] sm:$0xf]
      %v902 = vld [vmem:[%s3 + $0x184] sm:$0xf]
      %v903 = vld [vmem:[%s3 + $0x188] sm:$0xf]
      %v904 = vld [vmem:[%s3 + $0x18c] sm:$0xf]
      %v905 = vld [vmem:[%s3 + $0x190] sm:$0xf]
      %v906 = vld [vmem:[%s3 + $0x194] sm:$0xf]
      %v907 = vld [vmem:[%s3 + $0x198] sm:$0xf]
      %v908 = vld [vmem:[%s3 + $0x19c] sm:$0xf]
      %v909 = vld [vmem:[%s3 + $0x1a0] sm:$0xf]
      %v910 = vld [vmem:[%s3 + $0x1a4] sm:$0xf]
      %v911 = vld [vmem:[%s3 + $0x1a8] sm:$0xf]
      %v912 = vld [vmem:[%s3 + $0x1ac] sm:$0xf]
      %v913 = vld [vmem:[%s3 + $0x1b0] sm:$0xf]
      %v914 = vld [vmem:[%s3 + $0x1b4] sm:$0xf]
      %v915 = vld [vmem:[%s3 + $0x1b8] sm:$0xf]
      %v916 = vld [vmem:[%s3 + $0x1bc] sm:$0xf]
      %v917 = vld [vmem:[%s3 + $0x1c0] sm:$0xf]
      %v918 = vld [vmem:[%s3 + $0x1c4] sm:$0xf]
      %v919 = vld [vmem:[%s3 + $0x1c8] sm:$0xf]
      %v920 = vld [vmem:[%s3 + $0x1cc] sm:$0xf]
      %v921 = vld [vmem:[%s3 + $0x1d0] sm:$0xf]
      %v922 = vld [vmem:[%s3 + $0x1d4] sm:$0xf]
      %v923 = vld [vmem:[%s3 + $0x1d8] sm:$0xf]
      %v924 = vld [vmem:[%s3 + $0x1dc] sm:$0xf]
      %v925 = vld [vmem:[%s3 + $0x1e0] sm:$0xf]
      %v926 = vld [vmem:[%s3 + $0x1e4] sm:$0xf]
      %v927 = vld [vmem:[%s3 + $0x1e8] sm:$0xf]
      %v928 = vld [vmem:[%s3 + $0x1ec] sm:$0xf]
      %v929 = vld [vmem:[%s3 + $0x1f0] sm:$0xf]
      %v930 = vld [vmem:[%s3 + $0x1f4] sm:$0xf]
      %v931 = vld [vmem:[%s3 + $0x1f8] sm:$0xf]
      %v932 = vld [vmem:[%s3 + $0x1fc] sm:$0xf]
      %v933 = vld [vmem:[%s3 + $0x200] sm:$0xf]
      %v934 = vld [vmem:[%s3 + $0x204] sm:$0xf]
      %v935 = vld [vmem:[%s3 + $0x208] sm:$0xf]
      %v936 = vld [vmem:[%s3 + $0x20c] sm:$0xf]
      %v937 = vld [vmem:[%s3 + $0x210] sm:$0xf]
      %v938 = vld [vmem:[%s3 + $0x214] sm:$0xf]
      %v939 = vld [vmem:[%s3 + $0x218] sm:$0xf]
      %v940 = vld [vmem:[%s3 + $0x21c] sm:$0xf]
      %v941 = vld [vmem:[%s3 + $0x220] sm:$0xf]
      %v942 = vld [vmem:[%s3 + $0x224] sm:$0xf]
      %v943 = vld [vmem:[%s3 + $0x228] sm:$0xf]
      %v944 = vld [vmem:[%s3 + $0x22c] sm:$0xf]
      %v945 = vld [vmem:[%s3 + $0x230] sm:$0xf]
      %v946 = vld [vmem:[%s3 + $0x234] sm:$0xf]
      %v947 = vld [vmem:[%s3 + $0x238] sm:$0xf]
      %v948 = vld [vmem:[%s3 + $0x23c] sm:$0xf]
      %v1093 = vunpack.c.l.b16 %v805
      %v1094 = vunpack.c.l.b16 %v806
      %v1095 = vunpack.c.l.b16 %v807
      %v1096 = vunpack.c.l.b16 %v808
      %v1097 = vunpack.c.l.b16 %v809
      %v1098 = vunpack.c.l.b16 %v810
      %v1099 = vunpack.c.l.b16 %v811
      %v1100 = vunpack.c.l.b16 %v812
      %v1101 = vunpack.c.l.b16 %v813
      %v1102 = vunpack.c.l.b16 %v814
      %v1103 = vunpack.c.l.b16 %v815
      %v1104 = vunpack.c.l.b16 %v816
      %v1105 = vunpack.c.l.b16 %v817
      %v1106 = vunpack.c.l.b16 %v818
      %v1107 = vunpack.c.l.b16 %v819
      %v1108 = vunpack.c.l.b16 %v820
      %v1109 = vunpack.c.l.b16 %v821
      %v1110 = vunpack.c.l.b16 %v822
      %v1111 = vunpack.c.l.b16 %v823
      %v1112 = vunpack.c.l.b16 %v824
      %v1113 = vunpack.c.l.b16 %v825
      %v1114 = vunpack.c.l.b16 %v826
      %v1115 = vunpack.c.l.b16 %v827
      %v1116 = vunpack.c.l.b16 %v828
      %v1117 = vunpack.c.l.b16 %v829
      %v1118 = vunpack.c.l.b16 %v830
      %v1119 = vunpack.c.l.b16 %v831
      %v1120 = vunpack.c.l.b16 %v832
      %v1121 = vunpack.c.l.b16 %v833
      %v1122 = vunpack.c.l.b16 %v834
      %v1123 = vunpack.c.l.b16 %v835
      %v1124 = vunpack.c.l.b16 %v836
      %v1125 = vunpack.c.l.b16 %v837
      %v1126 = vunpack.c.l.b16 %v838
      %v1127 = vunpack.c.l.b16 %v839
      %v1128 = vunpack.c.l.b16 %v840
      %v1129 = vunpack.c.l.b16 %v841
      %v1130 = vunpack.c.l.b16 %v842
      %v1131 = vunpack.c.l.b16 %v843
      %v1132 = vunpack.c.l.b16 %v844
      %v1133 = vunpack.c.l.b16 %v845
      %v1134 = vunpack.c.l.b16 %v846
      %v1135 = vunpack.c.l.b16 %v847
      %v1136 = vunpack.c.l.b16 %v848
      %v1137 = vunpack.c.l.b16 %v849
      %v1138 = vunpack.c.l.b16 %v850
      %v1139 = vunpack.c.l.b16 %v851
      %v1140 = vunpack.c.l.b16 %v852
      %v1141 = vunpack.c.l.b16 %v853
      %v1142 = vunpack.c.l.b16 %v854
      %v1143 = vunpack.c.l.b16 %v855
      %v1144 = vunpack.c.l.b16 %v856
      %v1145 = vunpack.c.l.b16 %v857
      %v1146 = vunpack.c.l.b16 %v858
      %v1147 = vunpack.c.l.b16 %v859
      %v1148 = vunpack.c.l.b16 %v860
      %v1149 = vunpack.c.l.b16 %v861
      %v1150 = vunpack.c.l.b16 %v862
      %v1151 = vunpack.c.l.b16 %v863
      %v1152 = vunpack.c.l.b16 %v864
      %v1153 = vunpack.c.l.b16 %v865
      %v1154 = vunpack.c.l.b16 %v866
      %v1155 = vunpack.c.l.b16 %v867
      %v1156 = vunpack.c.l.b16 %v868
      %v1157 = vunpack.c.l.b16 %v869
      %v1158 = vunpack.c.l.b16 %v870
      %v1159 = vunpack.c.l.b16 %v871
      %v1160 = vunpack.c.l.b16 %v872
      %v1161 = vunpack.c.l.b16 %v873
      %v1162 = vunpack.c.l.b16 %v874
      %v1163 = vunpack.c.l.b16 %v875
      %v1164 = vunpack.c.l.b16 %v876
      %v1165 = vunpack.c.l.b16 %v877
      %v1166 = vunpack.c.l.b16 %v878
      %v1167 = vunpack.c.l.b16 %v879
      %v1168 = vunpack.c.l.b16 %v880
      %v1169 = vunpack.c.l.b16 %v881
      %v1170 = vunpack.c.l.b16 %v882
      %v1171 = vunpack.c.l.b16 %v883
      %v1172 = vunpack.c.l.b16 %v884
      %v1173 = vunpack.c.l.b16 %v885
      %v1174 = vunpack.c.l.b16 %v886
      %v1175 = vunpack.c.l.b16 %v887
      %v1176 = vunpack.c.l.b16 %v888
      %v1177 = vunpack.c.l.b16 %v889
      %v1178 = vunpack.c.l.b16 %v890
      %v1179 = vunpack.c.l.b16 %v891
      %v1180 = vunpack.c.l.b16 %v892
      %v1181 = vunpack.c.l.b16 %v893
      %v1182 = vunpack.c.l.b16 %v894
      %v1183 = vunpack.c.l.b16 %v895
      %v1184 = vunpack.c.l.b16 %v896
      %v1185 = vunpack.c.l.b16 %v897
      %v1186 = vunpack.c.l.b16 %v898
      %v1187 = vunpack.c.l.b16 %v899
      %v1188 = vunpack.c.l.b16 %v900
      %v1189 = vunpack.c.l.b16 %v901
      %v1190 = vunpack.c.l.b16 %v902
      %v1191 = vunpack.c.l.b16 %v903
      %v1192 = vunpack.c.l.b16 %v904
      %v1193 = vunpack.c.l.b16 %v905
      %v1194 = vunpack.c.l.b16 %v906
      %v1195 = vunpack.c.l.b16 %v907
      %v1196 = vunpack.c.l.b16 %v908
      %v1197 = vunpack.c.l.b16 %v909
      %v1198 = vunpack.c.l.b16 %v910
      %v1199 = vunpack.c.l.b16 %v911
      %v1200 = vunpack.c.l.b16 %v912
      %v1201 = vunpack.c.l.b16 %v913
      %v1202 = vunpack.c.l.b16 %v914
      %v1203 = vunpack.c.l.b16 %v915
      %v1204 = vunpack.c.l.b16 %v916
      %v1205 = vunpack.c.l.b16 %v917
      %v1206 = vunpack.c.l.b16 %v918
      %v1207 = vunpack.c.l.b16 %v919
      %v1208 = vunpack.c.l.b16 %v920
      %v1209 = vunpack.c.l.b16 %v921
      %v1210 = vunpack.c.l.b16 %v922
      %v1211 = vunpack.c.l.b16 %v923
      %v1212 = vunpack.c.l.b16 %v924
      %v1213 = vunpack.c.l.b16 %v925
      %v1214 = vunpack.c.l.b16 %v926
      %v1215 = vunpack.c.l.b16 %v927
      %v1216 = vunpack.c.l.b16 %v928
      %v1217 = vunpack.c.l.b16 %v929
      %v1218 = vunpack.c.l.b16 %v930
      %v1219 = vunpack.c.l.b16 %v931
      %v1220 = vunpack.c.l.b16 %v932
      %v1221 = vunpack.c.l.b16 %v933
      %v1222 = vunpack.c.l.b16 %v934
      %v1223 = vunpack.c.l.b16 %v935
      %v1224 = vunpack.c.l.b16 %v936
      %v1225 = vunpack.c.l.b16 %v937
      %v1226 = vunpack.c.l.b16 %v938
      %v1227 = vunpack.c.l.b16 %v939
      %v1228 = vunpack.c.l.b16 %v940
      %v1229 = vunpack.c.l.b16 %v941
      %v1230 = vunpack.c.l.b16 %v942
      %v1231 = vunpack.c.l.b16 %v943
      %v1232 = vunpack.c.l.b16 %v944
      %v1233 = vunpack.c.l.b16 %v945
      %v1234 = vunpack.c.l.b16 %v946
      %v1235 = vunpack.c.l.b16 %v947
      %v1236 = vunpack.c.l.b16 %v948
      %v1237 = vpack.c.b16 %v1094, %v1093
      %v1238 = vpack.c.b16 %v1096, %v1095
      %v1239 = vpack.c.b16 %v1098, %v1097
      %v1240 = vpack.c.b16 %v1100, %v1099
      %v1241 = vpack.c.b16 %v1102, %v1101
      %v1242 = vpack.c.b16 %v1104, %v1103
      %v1243 = vpack.c.b16 %v1106, %v1105
      %v1244 = vpack.c.b16 %v1108, %v1107
      %v1245 = vpack.c.b16 %v1110, %v1109
      %v1246 = vpack.c.b16 %v1112, %v1111
      %v1247 = vpack.c.b16 %v1114, %v1113
      %v1248 = vpack.c.b16 %v1116, %v1115
      %v1249 = vpack.c.b16 %v1118, %v1117
      %v1250 = vpack.c.b16 %v1120, %v1119
      %v1251 = vpack.c.b16 %v1122, %v1121
      %v1252 = vpack.c.b16 %v1124, %v1123
      %v1253 = vpack.c.b16 %v1126, %v1125
      %v1254 = vpack.c.b16 %v1128, %v1127
      %v1255 = vpack.c.b16 %v1130, %v1129
      %v1256 = vpack.c.b16 %v1132, %v1131
      %v1257 = vpack.c.b16 %v1134, %v1133
      %v1258 = vpack.c.b16 %v1136, %v1135
      %v1259 = vpack.c.b16 %v1138, %v1137
      %v1260 = vpack.c.b16 %v1140, %v1139
      %v1261 = vpack.c.b16 %v1142, %v1141
      %v1262 = vpack.c.b16 %v1144, %v1143
      %v1263 = vpack.c.b16 %v1146, %v1145
      %v1264 = vpack.c.b16 %v1148, %v1147
      %v1265 = vpack.c.b16 %v1150, %v1149
      %v1266 = vpack.c.b16 %v1152, %v1151
      %v1267 = vpack.c.b16 %v1154, %v1153
      %v1268 = vpack.c.b16 %v1156, %v1155
      %v1269 = vpack.c.b16 %v1158, %v1157
      %v1270 = vpack.c.b16 %v1160, %v1159
      %v1271 = vpack.c.b16 %v1162, %v1161
      %v1272 = vpack.c.b16 %v1164, %v1163
      %v1273 = vpack.c.b16 %v1166, %v1165
      %v1274 = vpack.c.b16 %v1168, %v1167
      %v1275 = vpack.c.b16 %v1170, %v1169
      %v1276 = vpack.c.b16 %v1172, %v1171
      %v1277 = vpack.c.b16 %v1174, %v1173
      %v1278 = vpack.c.b16 %v1176, %v1175
      %v1279 = vpack.c.b16 %v1178, %v1177
      %v1280 = vpack.c.b16 %v1180, %v1179
      %v1281 = vpack.c.b16 %v1182, %v1181
      %v1282 = vpack.c.b16 %v1184, %v1183
      %v1283 = vpack.c.b16 %v1186, %v1185
      %v1284 = vpack.c.b16 %v1188, %v1187
      %v1285 = vpack.c.b16 %v1190, %v1189
      %v1286 = vpack.c.b16 %v1192, %v1191
      %v1287 = vpack.c.b16 %v1194, %v1193
      %v1288 = vpack.c.b16 %v1196, %v1195
      %v1289 = vpack.c.b16 %v1198, %v1197
      %v1290 = vpack.c.b16 %v1200, %v1199
      %v1291 = vpack.c.b16 %v1202, %v1201
      %v1292 = vpack.c.b16 %v1204, %v1203
      %v1293 = vpack.c.b16 %v1206, %v1205
      %v1294 = vpack.c.b16 %v1208, %v1207
      %v1295 = vpack.c.b16 %v1210, %v1209
      %v1296 = vpack.c.b16 %v1212, %v1211
      %v1297 = vpack.c.b16 %v1214, %v1213
      %v1298 = vpack.c.b16 %v1216, %v1215
      %v1299 = vpack.c.b16 %v1218, %v1217
      %v1300 = vpack.c.b16 %v1220, %v1219
      %v1301 = vpack.c.b16 %v1222, %v1221
      %v1302 = vpack.c.b16 %v1224, %v1223
      %v1303 = vpack.c.b16 %v1226, %v1225
      %v1304 = vpack.c.b16 %v1228, %v1227
      %v1305 = vpack.c.b16 %v1230, %v1229
      %v1306 = vpack.c.b16 %v1232, %v1231
      %v1307 = vpack.c.b16 %v1234, %v1233
      %v1308 = vpack.c.b16 %v1236, %v1235
      %1381 = vmatprep.subr.bf16.mxu0 0
      %1382 = vmatpush1.bf16.msra.mxu0 %v1237
      %1383 = vmatprep.subr.bf16.mxu0 0
      %1384 = vmatpush1.bf16.msra.mxu0 %v1238
      %1385 = vmatprep.subr.bf16.mxu0 0
      %1386 = vmatpush1.bf16.msra.mxu0 %v1239
      %1387 = vmatprep.subr.bf16.mxu0 0
      %1388 = vmatpush1.bf16.msra.mxu0 %v1240
      %1389 = vmatprep.subr.bf16.mxu0 0
      %1390 = vmatpush1.bf16.msra.mxu0 %v1241
      %1391 = vmatprep.subr.bf16.mxu0 0
      %1392 = vmatpush1.bf16.msra.mxu0 %v1242
      %1393 = vmatprep.subr.bf16.mxu0 0
      %1394 = vmatpush1.bf16.msra.mxu0 %v1243
      %1395 = vmatprep.subr.bf16.mxu0 0
      %1396 = vmatpush1.bf16.msra.mxu0 %v1244
      %1397 = vmatprep.subr.bf16.mxu0 0
      %1398 = vmatpush1.bf16.msra.mxu0 %v1245
      %1399 = vmatprep.subr.bf16.mxu0 0
      %1400 = vmatpush1.bf16.msra.mxu0 %v1246
      %1401 = vmatprep.subr.bf16.mxu0 0
      %1402 = vmatpush1.bf16.msra.mxu0 %v1247
      %1403 = vmatprep.subr.bf16.mxu0 0
      %1404 = vmatpush1.bf16.msra.mxu0 %v1248
      %1405 = vmatprep.subr.bf16.mxu0 0
      %1406 = vmatpush1.bf16.msra.mxu0 %v1249
      %1407 = vmatprep.subr.bf16.mxu0 0
      %1408 = vmatpush1.bf16.msra.mxu0 %v1250
      %1409 = vmatprep.subr.bf16.mxu0 0
      %1410 = vmatpush1.bf16.msra.mxu0 %v1251
      %1411 = vmatprep.subr.bf16.mxu0 0
      %1412 = vmatpush1.bf16.msra.mxu0 %v1252
      %1413 = vmatprep.mubr.bf16.mxu0 %v627
      %1414 = vmatmul.mubr.bf16.gmra.mrb[0].mxu0 %v575
      %v1415 = vpop.f32.mrb[0].mxu0
      %v1416 = vadd.f32 0.0, %v1415
      %v1417 = vpop.f32.mrb[0].mxu0
      %v1418 = vpop.f32.mrb[0].mxu0
      %v1419 = vadd.f32 0.0, %v1418
      %v1420 = vpop.f32.mrb[0].mxu0
      %1421 = vmatprep.mubr.bf16.mxu0 %v639
      %1422 = vmatmul.mubr.bf16.gmra.mrb[0].mxu0 %v576
      %v1423 = vpop.f32.mrb[0].mxu0
      %v1424 = vadd.f32 0.0, %v1423
      %v1425 = vpop.f32.mrb[0].mxu0
      %v1426 = vpop.f32.mrb[0].mxu0
      %v1427 = vadd.f32 0.0, %v1426
      %v1428 = vpop.f32.mrb[0].mxu0
      %1429 = vmatprep.mubr.bf16.mxu0 %v651
      %1430 = vmatmul.mubr.bf16.gmra.mrb[0].mxu0 %v577
      %v1431 = vpop.f32.mrb[0].mxu0
      %v1432 = vadd.f32 0.0, %v1431
      %v1433 = vpop.f32.mrb[0].mxu0
      %v1434 = vpop.f32.mrb[0].mxu0
      %v1435 = vadd.f32 0.0, %v1434
      %v1436 = vpop.f32.mrb[0].mxu0
      %1437 = vmatprep.mubr.bf16.mxu0 %v663
      %1438 = vmatmul.mubr.bf16.gmra.mrb[0].mxu0 %v578
      %v1439 = vpop.f32.mrb[0].mxu0
      %v1440 = vadd.f32 0.0, %v1439
      %v1441 = vpop.f32.mrb[0].mxu0
      %v1442 = vpop.f32.mrb[0].mxu0
      %v1443 = vadd.f32 0.0, %v1442
      %v1444 = vpop.f32.mrb[0].mxu0
      %1445 = vmatprep.mubr.bf16.mxu0 %v675
      %1446 = vmatmul.mubr.bf16.gmra.mrb[0].mxu0 %v579
      %v1447 = vpop.f32.mrb[0].mxu0
      %v1448 = vadd.f32 0.0, %v1447
      %v1449 = vpop.f32.mrb[0].mxu0
      %v1450 = vpop.f32.mrb[0].mxu0
      %v1451 = vadd.f32 0.0, %v1450
      %v1452 = vpop.f32.mrb[0].mxu0
      %1453 = vmatprep.mubr.bf16.mxu0 %v687
      %1454 = vmatmul.mubr.bf16.gmra.mrb[0].mxu0 %v580
      %v1455 = vpop.f32.mrb[0].mxu0
      %v1456 = vadd.f32 0.0, %v1455
      %v1457 = vpop.f32.mrb[0].mxu0
      %v1458 = vpop.f32.mrb[0].mxu0
      %v1459 = vadd.f32 0.0, %v1458
      %v1460 = vpop.f32.mrb[0].mxu0
      %1461 = vmatprep.mubr.bf16.mxu0 %v699
      %1462 = vmatmul.mubr.bf16.gmra.mrb[0].mxu0 %v581
      %v1463 = vpop.f32.mrb[0].mxu0
      %v1464 = vadd.f32 0.0, %v1463
      %v1465 = vpop.f32.mrb[0].mxu0
      %v1466 = vpop.f32.mrb[0].mxu0
      %v1467 = vadd.f32 0.0, %v1466
      %v1468 = vpop.f32.mrb[0].mxu0
      %1469 = vmatprep.mubr.bf16.mxu0 %v711
      %1470 = vmatmul.mubr.bf16.gmra.mrb[0].mxu0 %v582
      %v1471 = vpop.f32.mrb[0].mxu0
      %v1472 = vadd.f32 0.0, %v1471
      %v1473 = vpop.f32.mrb[0].mxu0
      %v1474 = vpop.f32.mrb[0].mxu0
      %v1475 = vadd.f32 0.0, %v1474
      %v1476 = vpop.f32.mrb[0].mxu0
      %1477 = vdwg.mxu0
      %1478 = vmatprep.subr.bf16.mxu0 0
      %1479 = vmatpush1.bf16.msra.mxu0 %v1253
      %1480 = vmatprep.subr.bf16.mxu0 0
      %1481 = vmatpush1.bf16.msra.mxu0 %v1254
      %1482 = vmatprep.subr.bf16.mxu0 0
      %1483 = vmatpush1.bf16.msra.mxu0 %v1255
      %1484 = vmatprep.subr.bf16.mxu0 0
      %1485 = vmatpush1.bf16.msra.mxu0 %v1256
      %1486 = vmatprep.subr.bf16.mxu0 0
      %1487 = vmatpush1.bf16.msra.mxu0 %v1257
      %1488 = vmatprep.subr.bf16.mxu0 0
      %1489 = vmatpush1.bf16.msra.mxu0 %v1258
      %1490 = vmatprep.subr.bf16.mxu0 0
      %1491 = vmatpush1.bf16.msra.mxu0 %v1259
      %1492 = vmatprep.subr.bf16.mxu0 0
      %1493 = vmatpush1.bf16.msra.mxu0 %v1260
      %1494 = vmatprep.subr.bf16.mxu0 0
      %1495 = vmatpush1.bf16.msra.mxu0 %v1261
      %1496 = vmatprep.subr.bf16.mxu0 0
      %1497 = vmatpush1.bf16.msra.mxu0 %v1262
      %1498 = vmatprep.subr.bf16.mxu0 0
      %1499 = vmatpush1.bf16.msra.mxu0 %v1263
      %1500 = vmatprep.subr.bf16.mxu0 0
      %1501 = vmatpush1.bf16.msra.mxu0 %v1264
      %1502 = vmatprep.subr.bf16.mxu0 0
      %1503 = vmatpush1.bf16.msra.mxu0 %v1265
      %1504 = vmatprep.subr.bf16.mxu0 0
      %1505 = vmatpush1.bf16.msra.mxu0 %v1266
      %1506 = vmatprep.subr.bf16.mxu0 0
      %1507 = vmatpush1.bf16.msra.mxu0 %v1267
      %1508 = vmatprep.subr.bf16.mxu0 0
      %1509 = vmatpush1.bf16.msra.mxu0 %v1268
      %1510 = vmatprep.mubr.bf16.mxu0 %v576
      %1511 = vmatmul.mubr.bf16.gmra.mrb[0].mxu0 %v723
      %v1512 = vpop.f32.mrb[0].mxu0
      %v1513 = vadd.f32 %v1416, %v1512
      %v1514 = vpop.f32.mrb[0].mxu0
      %v1515 = vpop.f32.mrb[0].mxu0
      %v1516 = vadd.f32 %v1419, %v1515
      %v1517 = vpop.f32.mrb[0].mxu0
      %1518 = vmatprep.mubr.bf16.mxu0 %v577
      %1519 = vmatmul.mubr.bf16.gmra.mrb[0].mxu0 %v726
      %v1520 = vpop.f32.mrb[0].mxu0
      %v1521 = vadd.f32 %v1424, %v1520
      %v1522 = vpop.f32.mrb[0].mxu0
      %v1523 = vpop.f32.mrb[0].mxu0
      %v1524 = vadd.f32 %v1427, %v1523
      %v1525 = vpop.f32.mrb[0].mxu0
      %1526 = vmatprep.mubr.bf16.mxu0 %v578
      %1527 = vmatmul.mubr.bf16.gmra.mrb[0].mxu0 %v729
      %v1528 = vpop.f32.mrb[0].mxu0
      %v1529 = vadd.f32 %v1432, %v1528
      %v1530 = vpop.f32.mrb[0].mxu0
      %v1531 = vpop.f32.mrb[0].mxu0
      %v1532 = vadd.f32 %v1435, %v1531
      %v1533 = vpop.f32.mrb[0].mxu0
      %1534 = vmatprep.mubr.bf16.mxu0 %v579
      %1535 = vmatmul.mubr.bf16.gmra.mrb[0].mxu0 %v732
      %v1536 = vpop.f32.mrb[0].mxu0
      %v1537 = vadd.f32 %v1440, %v1536
      %v1538 = vpop.f32.mrb[0].mxu0
      %v1539 = vpop.f32.mrb[0].mxu0
      %v1540 = vadd.f32 %v1443, %v1539
      %v1541 = vpop.f32.mrb[0].mxu0
      %1542 = vmatprep.mubr.bf16.mxu0 %v580
      %1543 = vmatmul.mubr.bf16.gmra.mrb[0].mxu0 %v735
      %v1544 = vpop.f32.mrb[0].mxu0
      %v1545 = vadd.f32 %v1448, %v1544
      %v1546 = vpop.f32.mrb[0].mxu0
      %v1547 = vpop.f32.mrb[0].mxu0
      %v1548 = vadd.f32 %v1451, %v1547
      %v1549 = vpop.f32.mrb[0].mxu0
      %1550 = vmatprep.mubr.bf16.mxu0 %v581
      %1551 = vmatmul.mubr.bf16.gmra.mrb[0].mxu0 %v738
      %v1552 = vpop.f32.mrb[0].mxu0
      %v1553 = vadd.f32 %v1456, %v1552
      %v1554 = vpop.f32.mrb[0].mxu0
      %v1555 = vpop.f32.mrb[0].mxu0
      %v1556 = vadd.f32 %v1459, %v1555
      %v1557 = vpop.f32.mrb[0].mxu0
      %1558 = vmatprep.mubr.bf16.mxu0 %v582
      %1559 = vmatmul.mubr.bf16.gmra.mrb[0].mxu0 %v741
      %v1560 = vpop.f32.mrb[0].mxu0
      %v1561 = vadd.f32 %v1464, %v1560
      %v1562 = vpop.f32.mrb[0].mxu0
      %v1563 = vpop.f32.mrb[0].mxu0
      %v1564 = vadd.f32 %v1467, %v1563
      %v1565 = vpop.f32.mrb[0].mxu0
      %1566 = vmatprep.mubr.bf16.mxu0 %v757
      %1567 = vmatmul.mubr.bf16.gmra.mrb[0].mxu0 %v744
      %v1568 = vpop.f32.mrb[0].mxu0
      %v1569 = vadd.f32 %v1472, %v1568
      %v1570 = vpop.f32.mrb[0].mxu0
      %v1571 = vpop.f32.mrb[0].mxu0
      %v1572 = vadd.f32 %v1475, %v1571
      %v1573 = vpop.f32.mrb[0].mxu0
      %1574 = vdwg.mxu0
      %1575 = vmatprep.subr.bf16.mxu0 0
      %1576 = vmatpush1.bf16.msra.mxu0 %v1269
      %1577 = vmatprep.subr.bf16.mxu0 0
      %1578 = vmatpush1.bf16.msra.mxu0 %v1270
      %1579 = vmatprep.subr.bf16.mxu0 0
      %1580 = vmatpush1.bf16.msra.mxu0 %v1271
      %1581 = vmatprep.subr.bf16.mxu0 0
      %1582 = vmatpush1.bf16.msra.mxu0 %v1272
      %1583 = vmatprep.subr.bf16.mxu0 0
      %1584 = vmatpush1.bf16.msra.mxu0 %v1273
      %1585 = vmatprep.subr.bf16.mxu0 0
      %1586 = vmatpush1.bf16.msra.mxu0 %v1274
      %1587 = vmatprep.subr.bf16.mxu0 0
      %1588 = vmatpush1.bf16.msra.mxu0 %v1275
      %1589 = vmatprep.subr.bf16.mxu0 0
      %1590 = vmatpush1.bf16.msra.mxu0 %v1276
      %1591 = vmatprep.subr.bf16.mxu0 0
      %1592 = vmatpush1.bf16.msra.mxu0 %v1277
      %1593 = vmatprep.subr.bf16.mxu0 0
      %1594 = vmatpush1.bf16.msra.mxu0 %v1278
      %1595 = vmatprep.subr.bf16.mxu0 0
      %1596 = vmatpush1.bf16.msra.mxu0 %v1279
      %1597 = vmatprep.subr.bf16.mxu0 0
      %1598 = vmatpush1.bf16.msra.mxu0 %v1280
      %1599 = vmatprep.subr.bf16.mxu0 0
      %1600 = vmatpush1.bf16.msra.mxu0 %v1281
      %1601 = vmatprep.subr.bf16.mxu0 0
      %1602 = vmatpush1.bf16.msra.mxu0 %v1282
      %1603 = vmatprep.subr.bf16.mxu0 0
      %1604 = vmatpush1.bf16.msra.mxu0 %v1283
      %1605 = vmatprep.subr.bf16.mxu0 0
      %1606 = vmatpush1.bf16.msra.mxu0 %v1284
      %1607 = vmatprep.mubr.bf16.mxu0 %v726
      %1608 = vmatmul.mubr.bf16.gmra.mrb[0].mxu0 %v639
      %v1609 = vpop.f32.mrb[0].mxu0
      %v1610 = vadd.f32 %v1513, %v1609
      %v1611 = vpop.f32.mrb[0].mxu0
      %v1612 = vpop.f32.mrb[0].mxu0
      %v1613 = vadd.f32 %v1516, %v1612
      %v1614 = vpop.f32.mrb[0].mxu0
      %1615 = vmatprep.mubr.bf16.mxu0 %v729
      %1616 = vmatmul.mubr.bf16.gmra.mrb[0].mxu0 %v651
      %v1617 = vpop.f32.mrb[0].mxu0
      %v1618 = vadd.f32 %v1521, %v1617
      %v1619 = vpop.f32.mrb[0].mxu0
      %v1620 = vpop.f32.mrb[0].mxu0
      %v1621 = vadd.f32 %v1524, %v1620
      %v1622 = vpop.f32.mrb[0].mxu0
      %1623 = vmatprep.mubr.bf16.mxu0 %v732
      %1624 = vmatmul.mubr.bf16.gmra.mrb[0].mxu0 %v663
      %v1625 = vpop.f32.mrb[0].mxu0
      %v1626 = vadd.f32 %v1529, %v1625
      %v1627 = vpop.f32.mrb[0].mxu0
      %v1628 = vpop.f32.mrb[0].mxu0
      %v1629 = vadd.f32 %v1532, %v1628
      %v1630 = vpop.f32.mrb[0].mxu0
      %1631 = vmatprep.mubr.bf16.mxu0 %v735
      %1632 = vmatmul.mubr.bf16.gmra.mrb[0].mxu0 %v675
      %v1633 = vpop.f32.mrb[0].mxu0
      %v1634 = vadd.f32 %v1537, %v1633
      %v1635 = vpop.f32.mrb[0].mxu0
      %v1636 = vpop.f32.mrb[0].mxu0
      %v1637 = vadd.f32 %v1540, %v1636
      %v1638 = vpop.f32.mrb[0].mxu0
      %1639 = vmatprep.mubr.bf16.mxu0 %v738
      %1640 = vmatmul.mubr.bf16.gmra.mrb[0].mxu0 %v687
      %v1641 = vpop.f32.mrb[0].mxu0
      %v1642 = vadd.f32 %v1545, %v1641
      %v1643 = vpop.f32.mrb[0].mxu0
      %v1644 = vpop.f32.mrb[0].mxu0
      %v1645 = vadd.f32 %v1548, %v1644
      %v1646 = vpop.f32.mrb[0].mxu0
      %1647 = vmatprep.mubr.bf16.mxu0 %v741
      %1648 = vmatmul.mubr.bf16.gmra.mrb[0].mxu0 %v699
      %v1649 = vpop.f32.mrb[0].mxu0
      %v1650 = vadd.f32 %v1553, %v1649
      %v1651 = vpop.f32.mrb[0].mxu0
      %v1652 = vpop.f32.mrb[0].mxu0
      %v1653 = vadd.f32 %v1556, %v1652
      %v1654 = vpop.f32.mrb[0].mxu0
      %1655 = vmatprep.mubr.bf16.mxu0 %v744
      %1656 = vmatmul.mubr.bf16.gmra.mrb[0].mxu0 %v711
      %v1657 = vpop.f32.mrb[0].mxu0
      %v1658 = vadd.f32 %v1561, %v1657
      %v1659 = vpop.f32.mrb[0].mxu0
      %v1660 = vpop.f32.mrb[0].mxu0
      %v1661 = vadd.f32 %v1564, %v1660
      %v1662 = vpop.f32.mrb[0].mxu0
      %1663 = vmatprep.mubr.bf16.mxu0 %v777
      %1664 = vmatmul.mubr.bf16.gmra.mrb[0].mxu0 %v773
      %v1665 = vpop.f32.mrb[0].mxu0
      %v1666 = vadd.f32 %v1569, %v1665
      %v1667 = vpop.f32.mrb[0].mxu0
      %v1668 = vpop.f32.mrb[0].mxu0
      %v1669 = vadd.f32 %v1572, %v1668
      %v1670 = vpop.f32.mrb[0].mxu0
      %1671 = vdwg.mxu0
      %1672 = vmatprep.subr.bf16.mxu0 0
      %1673 = vmatpush1.bf16.msra.mxu0 %v1285
      %1674 = vmatprep.subr.bf16.mxu0 0
      %1675 = vmatpush1.bf16.msra.mxu0 %v1286
      %1676 = vmatprep.subr.bf16.mxu0 0
      %1677 = vmatpush1.bf16.msra.mxu0 %v1287
      %1678 = vmatprep.subr.bf16.mxu0 0
      %1679 = vmatpush1.bf16.msra.mxu0 %v1288
      %1680 = vmatprep.subr.bf16.mxu0 0
      %1681 = vmatpush1.bf16.msra.mxu0 %v1289
      %1682 = vmatprep.subr.bf16.mxu0 0
      %1683 = vmatpush1.bf16.msra.mxu0 %v1290
      %1684 = vmatprep.subr.bf16.mxu0 0
      %1685 = vmatpush1.bf16.msra.mxu0 %v1291
      %1686 = vmatprep.subr.bf16.mxu0 0
      %1687 = vmatpush1.bf16.msra.mxu0 %v1292
      %1688 = vmatprep.subr.bf16.mxu0 0
      %1689 = vmatpush1.bf16.msra.mxu0 %v1293
      %1690 = vmatprep.subr.bf16.mxu0 0
      %1691 = vmatpush1.bf16.msra.mxu0 %v1294
      %1692 = vmatprep.subr.bf16.mxu0 0
      %1693 = vmatpush1.bf16.msra.mxu0 %v1295
      %1694 = vmatprep.subr.bf16.mxu0 0
      %1695 = vmatpush1.bf16.msra.mxu0 %v1296
      %1696 = vmatprep.subr.bf16.mxu0 0
      %1697 = vmatpush1.bf16.msra.mxu0 %v1297
      %1698 = vmatprep.subr.bf16.mxu0 0
      %1699 = vmatpush1.bf16.msra.mxu0 %v1298
      %1700 = vmatprep.subr.bf16.mxu0 0
      %1701 = vmatpush1.bf16.msra.mxu0 %v1299
      %1702 = vmatprep.subr.bf16.mxu0 0
      %1703 = vmatpush1.bf16.msra.mxu0 %v1300
      %1704 = vmatprep.mubr.bf16.mxu0 %v651
      %1705 = vmatmul.mubr.bf16.gmra.mrb[0].mxu0 %v577
      %v1706 = vpop.f32.mrb[0].mxu0
      %v1707 = vadd.f32 %v1610, %v1706
      %v1708 = vpop.f32.mrb[0].mxu0
      %v1709 = vpop.f32.mrb[0].mxu0
      %v1710 = vadd.f32 %v1613, %v1709
      %v1711 = vpop.f32.mrb[0].mxu0
      %1712 = vmatprep.mubr.bf16.mxu0 %v663
      %1713 = vmatmul.mubr.bf16.gmra.mrb[0].mxu0 %v578
      %v1714 = vpop.f32.mrb[0].mxu0
      %v1715 = vadd.f32 %v1618, %v1714
      %v1716 = vpop.f32.mrb[0].mxu0
      %v1717 = vpop.f32.mrb[0].mxu0
      %v1718 = vadd.f32 %v1621, %v1717
      %v1719 = vpop.f32.mrb[0].mxu0
      %1720 = vmatprep.mubr.bf16.mxu0 %v675
      %1721 = vmatmul.mubr.bf16.gmra.mrb[0].mxu0 %v579
      %v1722 = vpop.f32.mrb[0].mxu0
      %v1723 = vadd.f32 %v1626, %v1722
      %v1724 = vpop.f32.mrb[0].mxu0
      %v1725 = vpop.f32.mrb[0].mxu0
      %v1726 = vadd.f32 %v1629, %v1725
      %v1727 = vpop.f32.mrb[0].mxu0
      %1728 = vmatprep.mubr.bf16.mxu0 %v687
      %1729 = vmatmul.mubr.bf16.gmra.mrb[0].mxu0 %v580
      %v1730 = vpop.f32.mrb[0].mxu0
      %v1731 = vadd.f32 %v1634, %v1730
      %v1732 = vpop.f32.mrb[0].mxu0
      %v1733 = vpop.f32.mrb[0].mxu0
      %v1734 = vadd.f32 %v1637, %v1733
      %v1735 = vpop.f32.mrb[0].mxu0
      %1736 = vmatprep.mubr.bf16.mxu0 %v699
      %1737 = vmatmul.mubr.bf16.gmra.mrb[0].mxu0 %v581
      %v1738 = vpop.f32.mrb[0].mxu0
      %v1739 = vadd.f32 %v1642, %v1738
      %v1740 = vpop.f32.mrb[0].mxu0
      %v1741 = vpop.f32.mrb[0].mxu0
      %v1742 = vadd.f32 %v1645, %v1741
      %v1743 = vpop.f32.mrb[0].mxu0
      %1744 = vmatprep.mubr.bf16.mxu0 %v711
      %1745 = vmatmul.mubr.bf16.gmra.mrb[0].mxu0 %v582
      %v1746 = vpop.f32.mrb[0].mxu0
      %v1747 = vadd.f32 %v1650, %v1746
      %v1748 = vpop.f32.mrb[0].mxu0
      %v1749 = vpop.f32.mrb[0].mxu0
      %v1750 = vadd.f32 %v1653, %v1749
      %v1751 = vpop.f32.mrb[0].mxu0
      %1752 = vmatprep.mubr.bf16.mxu0 %v773
      %1753 = vmatmul.mubr.bf16.gmra.mrb[0].mxu0 %v757
      %v1754 = vpop.f32.mrb[0].mxu0
      %v1755 = vadd.f32 %v1658, %v1754
      %v1756 = vpop.f32.mrb[0].mxu0
      %v1757 = vpop.f32.mrb[0].mxu0
      %v1758 = vadd.f32 %v1661, %v1757
      %v1759 = vpop.f32.mrb[0].mxu0
      %1760 = vmatprep.mubr.bf16.mxu0 %v799
      %1761 = vmatmul.mubr.bf16.gmra.mrb[0].mxu0 %v783
      %v1762 = vpop.f32.mrb[0].mxu0
      %v1763 = vadd.f32 %v1666, %v1762
      %v1764 = vpop.f32.mrb[0].mxu0
      %v1765 = vpop.f32.mrb[0].mxu0
      %v1766 = vadd.f32 %v1669, %v1765
      %v1767 = vpop.f32.mrb[0].mxu0
      %1768 = vdwg.mxu0
      %1769 = vmatprep.subr.bf16.mxu0 0
      %1770 = vmatpush1.bf16.msra.mxu0 %v1301
      %1771 = vmatprep.subr.bf16.mxu0 0
      %1772 = vmatpush1.bf16.msra.mxu0 %v1302
      %1773 = vmatprep.subr.bf16.mxu0 0
      %1774 = vmatpush1.bf16.msra.mxu0 %v1303
      %1775 = vmatprep.subr.bf16.mxu0 0
      %1776 = vmatpush1.bf16.msra.mxu0 %v1304
      %1777 = vmatprep.subr.bf16.mxu0 0
      %1778 = vmatpush1.bf16.msra.mxu0 %v1305
      %1779 = vmatprep.subr.bf16.mxu0 0
      %1780 = vmatpush1.bf16.msra.mxu0 %v1306
      %1781 = vmatprep.subr.bf16.mxu0 0
      %1782 = vmatpush1.bf16.msra.mxu0 %v1307
      %1783 = vmatprep.subr.bf16.mxu0 0
      %1784 = vmatpush1.bf16.msra.mxu0 %v1308
      %1785 = vmatprep.subr.bf16.mxu0 0
      %1786 = vmatpush1.bf16.msra.mxu0 0
      %1787 = vmatprep.subr.bf16.mxu0 0
      %1788 = vmatpush1.bf16.msra.mxu0 0
      %1789 = vmatprep.subr.bf16.mxu0 0
      %1790 = vmatpush1.bf16.msra.mxu0 0
      %1791 = vmatprep.subr.bf16.mxu0 0
      %1792 = vmatpush1.bf16.msra.mxu0 0
      %1793 = vmatprep.subr.bf16.mxu0 0
      %1794 = vmatpush1.bf16.msra.mxu0 0
      %1795 = vmatprep.subr.bf16.mxu0 0
      %1796 = vmatpush1.bf16.msra.mxu0 0
      %1797 = vmatprep.subr.bf16.mxu0 0
      %1798 = vmatpush1.bf16.msra.mxu0 0
      %1799 = vmatprep.subr.bf16.mxu0 0
      %1800 = vmatpush1.bf16.msra.mxu0 0
      %1801 = vmatprep.mubr.bf16.mxu0 0
      %1802 = vmatmul.mubr.bf16.gmra.mrb[0].mxu0 %v729
      %v1803 = vpop.f32.mrb[0].mxu0
      %v1804 = vadd.f32 %v1707, %v1803
      %v1805 = vpop.f32.mrb[0].mxu0
      %v1806 = vpop.f32.mrb[0].mxu0
      %v1807 = vadd.f32 %v1710, %v1806
      %v1808 = vpop.f32.mrb[0].mxu0
      %1809 = vmatprep.mubr.bf16.mxu0 0
      %1810 = vmatmul.mubr.bf16.gmra.mrb[0].mxu0 %v732
      %v1811 = vpop.f32.mrb[0].mxu0
      %v1812 = vadd.f32 %v1715, %v1811
      %v1813 = vpop.f32.mrb[0].mxu0
      %v1814 = vpop.f32.mrb[0].mxu0
      %v1815 = vadd.f32 %v1718, %v1814
      %v1816 = vpop.f32.mrb[0].mxu0
      %1817 = vmatprep.mubr.bf16.mxu0 0
      %1818 = vmatmul.mubr.bf16.gmra.mrb[0].mxu0 %v735
      %v1819 = vpop.f32.mrb[0].mxu0
      %v1820 = vadd.f32 %v1723, %v1819
      %v1821 = vpop.f32.mrb[0].mxu0
      %v1822 = vpop.f32.mrb[0].mxu0
      %v1823 = vadd.f32 %v1726, %v1822
      %v1824 = vpop.f32.mrb[0].mxu0
      %1825 = vmatprep.mubr.bf16.mxu0 0
      %1826 = vmatmul.mubr.bf16.gmra.mrb[0].mxu0 %v738
      %v1827 = vpop.f32.mrb[0].mxu0
      %v1828 = vadd.f32 %v1731, %v1827
      %v1829 = vpop.f32.mrb[0].mxu0
      %v1830 = vpop.f32.mrb[0].mxu0
      %v1831 = vadd.f32 %v1734, %v1830
      %v1832 = vpop.f32.mrb[0].mxu0
      %1833 = vmatprep.mubr.bf16.mxu0 0
      %1834 = vmatmul.mubr.bf16.gmra.mrb[0].mxu0 %v741
      %v1835 = vpop.f32.mrb[0].mxu0
      %v1836 = vadd.f32 %v1739, %v1835
      %v1837 = vpop.f32.mrb[0].mxu0
      %v1838 = vpop.f32.mrb[0].mxu0
      %v1839 = vadd.f32 %v1742, %v1838
      %v1840 = vpop.f32.mrb[0].mxu0
      %1841 = vmatprep.mubr.bf16.mxu0 0
      %1842 = vmatmul.mubr.bf16.gmra.mrb[0].mxu0 %v744
      %v1843 = vpop.f32.mrb[0].mxu0
      %v1844 = vadd.f32 %v1747, %v1843
      %v1845 = vpop.f32.mrb[0].mxu0
      %v1846 = vpop.f32.mrb[0].mxu0
      %v1847 = vadd.f32 %v1750, %v1846
      %v1848 = vpop.f32.mrb[0].mxu0
      %1849 = vmatprep.mubr.bf16.mxu0 0
      %1850 = vmatmul.mubr.bf16.gmra.mrb[0].mxu0 %v777
      %v1851 = vpop.f32.mrb[0].mxu0
      %v1852 = vadd.f32 %v1755, %v1851
      %v1853 = vpop.f32.mrb[0].mxu0
      %v1854 = vpop.f32.mrb[0].mxu0
      %v1855 = vadd.f32 %v1758, %v1854
      %v1856 = vpop.f32.mrb[0].mxu0
      %1857 = vmatprep.mubr.bf16.mxu0 0
      %1858 = vmatmul.mubr.bf16.gmra.mrb[0].mxu0 %v803
      %v1859 = vpop.f32.mrb[0].mxu0
      %v1860 = vadd.f32 %v1763, %v1859
      %v1861 = vpop.f32.mrb[0].mxu0
      %v1862 = vpop.f32.mrb[0].mxu0
      %v1863 = vadd.f32 %v1766, %v1862
      %v1864 = vpop.f32.mrb[0].mxu0
      %1865 = vdwg.mxu0
      %v1866 = vld [vmem:[%s4] sm:$0x1]
      %v1868 = vlaneseq
      %v1869 = vshrl.u32 %v1868, 7
      %v1870 = vsub.s32 0, %v1869
      %v1871 = vrot.slane %v1866, %v1870
      %v1873 = vmul.f32 %v1804, %v1871
      %v1874 = vmul.f32 %v1807, %v1871
      %v1875 = vmul.f32 %v1812, %v1871
      %v1876 = vmul.f32 %v1815, %v1871
      %v1877 = vmul.f32 %v1820, %v1871
      %v1878 = vmul.f32 %v1823, %v1871
      %v1879 = vmul.f32 %v1828, %v1871
      %v1880 = vmul.f32 %v1831, %v1871
      %v1881 = vmul.f32 %v1836, %v1871
      %v1882 = vmul.f32 %v1839, %v1871
      %v1883 = vmul.f32 %v1844, %v1871
      %v1884 = vmul.f32 %v1847, %v1871
      %v1885 = vmul.f32 %v1852, %v1871
      %v1886 = vmul.f32 %v1855, %v1871
      %v1887 = vmul.f32 %v1860, %v1871
      %v1888 = vmul.f32 %v1863, %v1871
      %v1889 = vld [vmem:[%s5] sm:$0x1]
      %v1891 = vlaneseq
      %v1892 = vshrl.u32 %v1891, 7
      %v1893 = vsub.s32 0, %v1892
      %v1894 = vrot.slane %v1889, %v1893
      %v1896 = vadd.f32 %v1873, %v1894
      %v1897 = vadd.f32 %v1874, %v1894
      %v1898 = vadd.f32 %v1875, %v1894
      %v1899 = vadd.f32 %v1876, %v1894
      %v1900 = vadd.f32 %v1877, %v1894
      %v1901 = vadd.f32 %v1878, %v1894
      %v1902 = vadd.f32 %v1879, %v1894
      %v1903 = vadd.f32 %v1880, %v1894
      %v1904 = vadd.f32 %v1881, %v1894
      %v1905 = vadd.f32 %v1882, %v1894
      %v1906 = vadd.f32 %v1883, %v1894
      %v1907 = vadd.f32 %v1884, %v1894
      %v1908 = vadd.f32 %v1885, %v1894
      %v1909 = vadd.f32 %v1886, %v1894
      %v1910 = vadd.f32 %v1887, %v1894
      %v1911 = vadd.f32 %v1888, %v1894
      %v1912 = vmax.f32 %v1896, 0.0
      %v1913 = vmax.f32 %v1897, 0.0
      %v1914 = vmax.f32 %v1898, 0.0
      %v1915 = vmax.f32 %v1899, 0.0
      %v1916 = vmax.f32 %v1900, 0.0
      %v1917 = vmax.f32 %v1901, 0.0
      %v1918 = vmax.f32 %v1902, 0.0
      %v1919 = vmax.f32 %v1903, 0.0
      %v1920 = vmax.f32 %v1904, 0.0
      %v1921 = vmax.f32 %v1905, 0.0
      %v1922 = vmax.f32 %v1906, 0.0
      %v1923 = vmax.f32 %v1907, 0.0
      %v1924 = vmax.f32 %v1908, 0.0
      %v1925 = vmax.f32 %v1909, 0.0
      %v1926 = vmax.f32 %v1910, 0.0
      %v1927 = vmax.f32 %v1911, 0.0
      %v1928 = vpack.c.bf16 %v1913, %v1912
      %v1929 = vpack.c.bf16 %v1915, %v1914
      %v1930 = vpack.c.bf16 %v1917, %v1916
      %v1931 = vpack.c.bf16 %v1919, %v1918
      %v1932 = vpack.c.bf16 %v1921, %v1920
      %v1933 = vpack.c.bf16 %v1923, %v1922
      %v1934 = vpack.c.bf16 %v1925, %v1924
      %v1935 = vpack.c.bf16 %v1927, %v1926
      %v1936 = vld [vmem:[%s6] sm:$0xf]
      %v1937 = vld [vmem:[%s6 + $0x4] sm:$0xf]
      %v1938 = vld [vmem:[%s6 + $0x8] sm:$0xf]
      %v1939 = vld [vmem:[%s6 + $0xc] sm:$0xf]
      %v1940 = vld [vmem:[%s6 + $0x10] sm:$0xf]
      %v1941 = vld [vmem:[%s6 + $0x14] sm:$0xf]
      %v1942 = vld [vmem:[%s6 + $0x18] sm:$0xf]
      %v1943 = vld [vmem:[%s6 + $0x1c] sm:$0xf]
      %v1944 = vld [vmem:[%s6 + $0x20] sm:$0xf]
      %v1945 = vld [vmem:[%s6 + $0x24] sm:$0xf]
      %v1946 = vld [vmem:[%s6 + $0x28] sm:$0xf]
      %v1947 = vld [vmem:[%s6 + $0x2c] sm:$0xf]
      %v1948 = vld [vmem:[%s6 + $0x30] sm:$0xf]
      %v1949 = vld [vmem:[%s6 + $0x34] sm:$0xf]
      %v1950 = vld [vmem:[%s6 + $0x38] sm:$0xf]
      %v1951 = vld [vmem:[%s6 + $0x3c] sm:$0xf]
      %v1952 = vld [vmem:[%s500] sm:$0xf]
      %v1953 = vld [vmem:[%s500 + $0x4] sm:$0xf]
      %v1954 = vld [vmem:[%s500 + $0x8] sm:$0xf]
      %v1955 = vld [vmem:[%s500 + $0xc] sm:$0xf]
      %v1956 = vld [vmem:[%s500 + $0x10] sm:$0xf]
      %v1957 = vld [vmem:[%s500 + $0x14] sm:$0xf]
      %v1958 = vld [vmem:[%s500 + $0x18] sm:$0xf]
      %v1959 = vld [vmem:[%s500 + $0x1c] sm:$0xf]
      %v1960 = vld [vmem:[%s500 + $0x20] sm:$0xf]
      %v1961 = vld [vmem:[%s500 + $0x24] sm:$0xf]
      %v1962 = vld [vmem:[%s500 + $0x28] sm:$0xf]
      %v1963 = vld [vmem:[%s500 + $0x2c] sm:$0xf]
      %v1964 = vld [vmem:[%s500 + $0x30] sm:$0xf]
      %v1965 = vld [vmem:[%s500 + $0x34] sm:$0xf]
      %v1966 = vld [vmem:[%s500 + $0x38] sm:$0xf]
      %v1967 = vld [vmem:[%s500 + $0x3c] sm:$0xf]
      %v1968 = vunpack.c.l.bf16 %v1952
      %v1969 = vunpack.c.l.bf16 %v1953
      %v1970 = vunpack.c.l.bf16 %v1954
      %v1971 = vunpack.c.l.bf16 %v1955
      %v1972 = vunpack.c.l.bf16 %v1956
      %v1973 = vunpack.c.l.bf16 %v1957
      %v1974 = vunpack.c.l.bf16 %v1958
      %v1975 = vunpack.c.l.bf16 %v1959
      %v1976 = vunpack.c.l.bf16 %v1960
      %v1977 = vunpack.c.l.bf16 %v1961
      %v1978 = vunpack.c.l.bf16 %v1962
      %v1979 = vunpack.c.l.bf16 %v1963
      %v1980 = vunpack.c.l.bf16 %v1964
      %v1981 = vunpack.c.l.bf16 %v1965
      %v1982 = vunpack.c.l.bf16 %v1966
      %v1983 = vunpack.c.l.bf16 %v1967
      %v2000 = vunpack.c.l.b16 %v1936
      %v2001 = vunpack.c.l.b16 %v1937
      %v2002 = vunpack.c.l.b16 %v1938
      %v2003 = vunpack.c.l.b16 %v1939
      %v2004 = vunpack.c.l.b16 %v1940
      %v2005 = vunpack.c.l.b16 %v1941
      %v2006 = vunpack.c.l.b16 %v1942
      %v2007 = vunpack.c.l.b16 %v1943
      %v2008 = vunpack.c.l.b16 %v1944
      %v2009 = vunpack.c.l.b16 %v1945
      %v2010 = vunpack.c.l.b16 %v1946
      %v2011 = vunpack.c.l.b16 %v1947
      %v2012 = vunpack.c.l.b16 %v1948
      %v2013 = vunpack.c.l.b16 %v1949
      %v2014 = vunpack.c.l.b16 %v1950
      %v2015 = vunpack.c.l.b16 %v1951
      %v2016 = vpack.c.b16 %v2001, %v2000
      %v2017 = vpack.c.b16 %v2003, %v2002
      %v2018 = vpack.c.b16 %v2005, %v2004
      %v2019 = vpack.c.b16 %v2007, %v2006
      %v2020 = vpack.c.b16 %v2009, %v2008
      %v2021 = vpack.c.b16 %v2011, %v2010
      %v2022 = vpack.c.b16 %v2013, %v2012
      %v2023 = vpack.c.b16 %v2015, %v2014
      %2032 = vmatprep.subr.bf16.mxu0 0
      %2033 = vmatpush1.bf16.msra.mxu0 %v2016
      %2034 = vmatprep.subr.bf16.mxu0 0
      %2035 = vmatpush1.bf16.msra.mxu0 %v2017
      %2036 = vmatprep.subr.bf16.mxu0 0
      %2037 = vmatpush1.bf16.msra.mxu0 %v2018
      %2038 = vmatprep.subr.bf16.mxu0 0
      %2039 = vmatpush1.bf16.msra.mxu0 %v2019
      %2040 = vmatprep.subr.bf16.mxu0 0
      %2041 = vmatpush1.bf16.msra.mxu0 %v2020
      %2042 = vmatprep.subr.bf16.mxu0 0
      %2043 = vmatpush1.bf16.msra.mxu0 %v2021
      %2044 = vmatprep.subr.bf16.mxu0 0
      %2045 = vmatpush1.bf16.msra.mxu0 %v2022
      %2046 = vmatprep.subr.bf16.mxu0 0
      %2047 = vmatpush1.bf16.msra.mxu0 %v2023
      %2048 = vmatprep.subr.bf16.mxu0 0
      %2049 = vmatpush1.bf16.msra.mxu0 0
      %2050 = vmatprep.subr.bf16.mxu0 0
      %2051 = vmatpush1.bf16.msra.mxu0 0
      %2052 = vmatprep.subr.bf16.mxu0 0
      %2053 = vmatpush1.bf16.msra.mxu0 0
      %2054 = vmatprep.subr.bf16.mxu0 0
      %2055 = vmatpush1.bf16.msra.mxu0 0
      %2056 = vmatprep.subr.bf16.mxu0 0
      %2057 = vmatpush1.bf16.msra.mxu0 0
      %2058 = vmatprep.subr.bf16.mxu0 0
      %2059 = vmatpush1.bf16.msra.mxu0 0
      %2060 = vmatprep.subr.bf16.mxu0 0
      %2061 = vmatpush1.bf16.msra.mxu0 0
      %2062 = vmatprep.subr.bf16.mxu0 0
      %2063 = vmatpush1.bf16.msra.mxu0 0
      %2064 = vmatprep.mubr.bf16.mxu0 0
      %2065 = vmatmul.mubr.bf16.gmra.mrb[0].mxu0 %v1928
      %v2066 = vpop.f32.mrb[0].mxu0
      %v2067 = vadd.f32 %v1968, %v2066
      %v2068 = vpop.f32.mrb[0].mxu0
      %v2069 = vpop.f32.mrb[0].mxu0
      %v2070 = vadd.f32 %v1969, %v2069
      %v2071 = vpop.f32.mrb[0].mxu0
      %2072 = vmatprep.mubr.bf16.mxu0 0
      %2073 = vmatmul.mubr.bf16.gmra.mrb[0].mxu0 %v1929
      %v2074 = vpop.f32.mrb[0].mxu0
      %v2075 = vadd.f32 %v1970, %v2074
      %v2076 = vpop.f32.mrb[0].mxu0
      %v2077 = vpop.f32.mrb[0].mxu0
      %v2078 = vadd.f32 %v1971, %v2077
      %v2079 = vpop.f32.mrb[0].mxu0
      %2080 = vmatprep.mubr.bf16.mxu0 0
      %2081 = vmatmul.mubr.bf16.gmra.mrb[0].mxu0 %v1930
      %v2082 = vpop.f32.mrb[0].mxu0
      %v2083 = vadd.f32 %v1972, %v2082
      %v2084 = vpop.f32.mrb[0].mxu0
      %v2085 = vpop.f32.mrb[0].mxu0
      %v2086 = vadd.f32 %v1973, %v2085
      %v2087 = vpop.f32.mrb[0].mxu0
      %2088 = vmatprep.mubr.bf16.mxu0 0
      %2089 = vmatmul.mubr.bf16.gmra.mrb[0].mxu0 %v1931
      %v2090 = vpop.f32.mrb[0].mxu0
      %v2091 = vadd.f32 %v1974, %v2090
      %v2092 = vpop.f32.mrb[0].mxu0
      %v2093 = vpop.f32.mrb[0].mxu0
      %v2094 = vadd.f32 %v1975, %v2093
      %v2095 = vpop.f32.mrb[0].mxu0
      %2096 = vmatprep.mubr.bf16.mxu0 0
      %2097 = vmatmul.mubr.bf16.gmra.mrb[0].mxu0 %v1932
      %v2098 = vpop.f32.mrb[0].mxu0
      %v2099 = vadd.f32 %v1976, %v2098
      %v2100 = vpop.f32.mrb[0].mxu0
      %v2101 = vpop.f32.mrb[0].mxu0
      %v2102 = vadd.f32 %v1977, %v2101
      %v2103 = vpop.f32.mrb[0].mxu0
      %2104 = vmatprep.mubr.bf16.mxu0 0
      %2105 = vmatmul.mubr.bf16.gmra.mrb[0].mxu0 %v1933
      %v2106 = vpop.f32.mrb[0].mxu0
      %v2107 = vadd.f32 %v1978, %v2106
      %v2108 = vpop.f32.mrb[0].mxu0
      %v2109 = vpop.f32.mrb[0].mxu0
      %v2110 = vadd.f32 %v1979, %v2109
      %v2111 = vpop.f32.mrb[0].mxu0
      %2112 = vmatprep.mubr.bf16.mxu0 0
      %2113 = vmatmul.mubr.bf16.gmra.mrb[0].mxu0 %v1934
      %v2114 = vpop.f32.mrb[0].mxu0
      %v2115 = vadd.f32 %v1980, %v2114
      %v2116 = vpop.f32.mrb[0].mxu0
      %v2117 = vpop.f32.mrb[0].mxu0
      %v2118 = vadd.f32 %v1981, %v2117
      %v2119 = vpop.f32.mrb[0].mxu0
      %2120 = vmatprep.mubr.bf16.mxu0 0
      %2121 = vmatmul.mubr.bf16.gmra.mrb[0].mxu0 %v1935
      %v2122 = vpop.f32.mrb[0].mxu0
      %v2123 = vadd.f32 %v1982, %v2122
      %v2124 = vpop.f32.mrb[0].mxu0
      %v2125 = vpop.f32.mrb[0].mxu0
      %v2126 = vadd.f32 %v1983, %v2125
      %v2127 = vpop.f32.mrb[0].mxu0
      %2128 = vdwg.mxu0
      %2129 = vst [vmem:[%s510] sm:$0xff] %v2067
      %2130 = vst [vmem:[%s510 + $0x8] sm:$0xff] %v2070
      %2131 = vst [vmem:[%s510 + $0x10] sm:$0xff] %v2075
      %2132 = vst [vmem:[%s510 + $0x18] sm:$0xff] %v2078
      %2133 = vst [vmem:[%s510 + $0x20] sm:$0xff] %v2083
      %2134 = vst [vmem:[%s510 + $0x28] sm:$0xff] %v2086
      %2135 = vst [vmem:[%s510 + $0x30] sm:$0xff] %v2091
      %2136 = vst [vmem:[%s510 + $0x38] sm:$0xff] %v2094
      %2137 = vst [vmem:[%s510 + $0x40] sm:$0xff] %v2099
      %2138 = vst [vmem:[%s510 + $0x48] sm:$0xff] %v2102
      %2139 = vst [vmem:[%s510 + $0x50] sm:$0xff] %v2107
      %2140 = vst [vmem:[%s510 + $0x58] sm:$0xff] %v2110
      %2141 = vst [vmem:[%s510 + $0x60] sm:$0xff] %v2115
      %2142 = vst [vmem:[%s510 + $0x68] sm:$0xff] %v2118
      %2143 = vst [vmem:[%s510 + $0x70] sm:$0xff] %v2123
      %2144 = vst [vmem:[%s510 + $0x78] sm:$0xff] %v2126
      %s2145 = smul.u32 16, %s24
      %p2146 = scmp.lt.s32.totalorder %s23, 1
      %s2147 = scalar_select %p2146, %s23, 1
      %p2148 = scmp.lt.s32.totalorder %s2145, 31
      %s2149 = scalar_select %p2148, %s2145, 31
      %s2150 = smul.addr %s2147, 32
      %s2151 = sadd.s32 %s2149, %s2150
      %s2152 = smul.addr %s2151, 8
      %s2153 = scalar_lea.vmem %s8, %s2152
      // Predicated region
      $region53: #{_lambda_.3} parent=51 // pred_check
        %p2154 = pneg %p257
      $region54: #{_lambda_.3} parent=51 // pred_check_branch
        %2156 = sbr.rel (%p2154) target = $region56
      $region55: #{_lambda_.3} parent=51 // pred_region
        %s2157 = smul.u32 16, %s24
      $region56: #{_lambda_.3} parent=51 // pred_fallthru
        _
    $region52: #{_lambda_.3} parent=5 // pred_fallthru
      _
    %p2158 = scmp.le.s32.totalorder 2, %s14
    // Predicated region
    $region57: #{_lambda_.3} parent=5 // pred_check
      %p2159 = pneg %p2158
    $region58: #{_lambda_.3} parent=5 // pred_check_branch
      %2161 = sbr.rel (%p2159) target = $region60
    $region59: #{_lambda_.3} parent=5 // pred_region
      %s2162 = ssub.s32 %s14, 2
      // Predicated region
      $region61: #{_lambda_.3} parent=59 // pred_check
        %p2163 = pneg %p263
      $region62: #{_lambda_.3} parent=59 // pred_check_branch
        %2165 = sbr.rel (%p2163) target = $region64
      $region63: #{_lambda_.3} parent=59 // pred_region
        %s2166 = smul.u32 16, %s26
        %p2167 = scmp.lt.s32.totalorder %s25, 1
        %s2168 = scalar_select %p2167, %s25, 1
        %p2169 = scmp.lt.s32.totalorder %s2166, 31
        %s2170 = scalar_select %p2169, %s2166, 31
        %s2171 = smul.addr %s2168, 32
        %s2172 = sadd.s32 %s2170, %s2171
        %s2173 = smul.addr %s2172, 8
        %s2174 = scalar_lea.vmem %s8, %s2173
      $region64: #{_lambda_.3} parent=59 // pred_fallthru
        _
    $region60: #{_lambda_.3} parent=5 // pred_fallthru
      _
  $region6: #{_lambda_.3} parent=0 // loop_footer
    %s18 = sadd.s32 1, %s14
  $region7: #{_lambda_.3} parent=0 // loop_footer_branch
    %13 = sbr.rel target = $region3
  $region8: #{_lambda_.3} parent=0 // loop_exit
    _

</llo_original>
